<compile_context>
chip_gen: v6e
topology: v6e:2x2x1
jax: 0.10.0
libtpu: 0.0.40
codegen_flags: <defaults>
</compile_context>

<pallas_src>
import functools

import jax
import jax.numpy as jnp
from jax.experimental import pallas as pl
from jax.experimental.pallas import tpu as pltpu


# ----------------------------------------------------------------------------
# Fused Pallas kernel: down-conv (4x4, s2, p1) + conv_block (3x3+lrelu, 3x3+lrelu, 1x1 res, add)
# ----------------------------------------------------------------------------
def _down_conv_block_kernel(xp_ref, w0_ref, b0_ref, w1r_ref, b1_ref,
                            w2_ref, b2_ref, br_ref,
                            o_ref,
                            y0p_ref, y1p_ref, slab0_ref, slab1_ref,
                            *, ho, wo, c2, cout, neg_slope):
    """One batch image per grid step.

    xp_ref:    (1, 2*ho+2, wo+1, c2) bf16   padded input, W folded into pairs (c2 = 2*Cin)
    w0_ref:    (8*c2, cout)          bf16   4x4/s2 conv as im2col matrix (rows = kh,kw,ci)
    w1r_ref:   (9*cout, 2*cout)      bf16   [conv1 3x3 | residual 1x1 embedded at centre tap]
    w2_ref:    (9*cout, cout)        bf16   conv2 3x3 as im2col matrix
    b*_ref:    (1, cout)             f32    biases
    o_ref:     (1, cout, ho*wo)      f32    output, channels-first (== NCHW), lane-dense
    y0p/y1p:   (ho+2, wo+2, cout)    bf16   VMEM scratch, zero-padded halo for 3x3 convs
    slab0/1:   (ho*wo, 8*c2) / (ho*wo, 9*cout) bf16  im2col slabs in VMEM
    """
    P = ho * wo

    # ------------------ 1. downsample conv: 4x4 stride-2 pad-1 -------------------
    xp = xp_ref[0]                                       # (2*ho+2, wo+1, c2)
    xpr = xp.reshape(ho + 1, 2, wo + 1, c2)              # split rows into (even, odd) phases
    phases = (xpr[:, 0], xpr[:, 1])                      # each (ho+1, wo+1, c2)
    for kh in range(4):                                  # output row oh reads rows 2*oh + kh
        ph = phases[kh % 2][kh // 2: kh // 2 + ho]       # (ho, wo+1, c2)
        for j2 in range(2):                              # W-pair taps (kw folded into c2)
            win = ph[:, j2:j2 + wo, :]                   # (ho, wo, c2)
            t = kh * 2 + j2
            slab0_ref[:, t * c2:(t + 1) * c2] = win.reshape(P, c2)

    y0 = jnp.dot(slab0_ref[...], w0_ref[...],
                 preferred_element_type=jnp.float32) + b0_ref[...]      # (P, cout) f32
    y0_bf = y0.astype(jnp.bfloat16)

    # keep y0 resident in VMEM with a zero halo for the 3x3 convs
    y0p_ref[...] = jnp.zeros_like(y0p_ref)
    y0p_ref[1:ho + 1, 1:wo + 1, :] = y0_bf.reshape(ho, wo, cout)

    # ------------------ 2. conv_block ---------------------------------------------
    def build_slab3(src_ref):
        for kh in range(3):
            for kw in range(3):
                t = kh * 3 + kw
                win = src_ref[kh:kh + ho, kw:kw + wo, :]            # (ho, wo, cout) bf16
                slab1_ref[:, t * cout:(t + 1) * cout] = win.reshape(P, cout)

    # conv1 (3x3) and the 1x1 residual conv share their LHS (the centre-tap columns of the
    # slab equal y0), so they are computed with a SINGLE matmul producing 2*cout columns.
    build_slab3(y0p_ref)
    z = jnp.dot(slab1_ref[...], w1r_ref[...],
                preferred_element_type=jnp.float32)                 # (P, 2*cout) f32
    y1 = z[:, :cout] + b1_ref[...]
    y1 = jnp.where(y1 >= 0, y1, y1 * neg_slope)                     # LeakyReLU
    yr = z[:, cout:] + br_ref[...]                                  # residual branch

    y1p_ref[...] = jnp.zeros_like(y1p_ref)
    y1p_ref[1:ho + 1, 1:wo + 1, :] = y1.astype(jnp.bfloat16).reshape(ho, wo, cout)

    # conv2 (3x3) + LeakyReLU
    build_slab3(y1p_ref)
    y2 = jnp.dot(slab1_ref[...], w2_ref[...],
                 preferred_element_type=jnp.float32) + b2_ref[...]
    y2 = jnp.where(y2 >= 0, y2, y2 * neg_slope)

    out = y2 + yr                                                   # (P, cout) f32

    # store channels-first, lane-dense (last dim = P): result is already NCHW
    o_ref[0] = jnp.transpose(out)                                   # (cout, P)


# ----------------------------------------------------------------------------
# Wrapper
# ----------------------------------------------------------------------------
def down_conv_forward(x_nchw, params):
    w0, b0 = params["down"]    # (4,4,Cin,Cout)
    w1, b1 = params["conv1"]   # (3,3,Cout,Cout)
    w2, b2 = params["conv2"]   # (3,3,Cout,Cout)
    wr, br = params["res"]     # (1,1,Cout,Cout)

    N, Cin, H, W = x_nchw.shape
    Cout = w0.shape[-1]
    assert H % 2 == 0 and W % 2 == 0, "down_conv expects even spatial dims"
    ho, wo = H // 2, W // 2
    P = ho * wo
    c2 = 2 * Cin
    Hp = H + 2                    # +1 px zero pad top/bottom
    Wpair = (W + 2) // 2          # +1 px zero pad left/right, then fold column pairs

    bf = jnp.bfloat16
    # single cheap layout pass in XLA: NCHW->NHWC, 1-px zero pad, bf16 cast.
    # The W-pair fold is a contiguous (free) reshape -- no stride-phase split, no stack.
    x = jnp.transpose(x_nchw, (0, 2, 3, 1)).astype(bf)
    xp = jnp.pad(x, ((0, 0), (1, 1), (1, 1), (0, 0)))
    xp = xp.reshape(N, Hp, Wpair, c2)

    # weights as im2col matrices (rows ordered (kh, kw, cin)), bf16 for the MXU
    w0m = w0.reshape(4 * 4 * Cin, Cout).astype(bf)      # == (8*c2, Cout)
    w1m = w1.reshape(9 * Cout, Cout).astype(bf)
    w2m = w2.reshape(9 * Cout, Cout).astype(bf)
    wrm = wr.reshape(Cout, Cout).astype(bf)
    # embed the 1x1 residual weight at the centre tap (kh=1,kw=1 -> rows [4*Cout:5*Cout])
    # and append it as extra output columns of conv1's weight matrix: one fused matmul.
    wr_emb = jnp.zeros((9 * Cout, Cout), bf).at[4 * Cout:5 * Cout, :].set(wrm)
    w1rm = jnp.concatenate([w1m, wr_emb], axis=1)       # (9*Cout, 2*Cout)

    b0m = b0.reshape(1, Cout).astype(jnp.float32)
    b1m = b1.reshape(1, Cout).astype(jnp.float32)
    b2m = b2.reshape(1, Cout).astype(jnp.float32)
    brm = br.reshape(1, Cout).astype(jnp.float32)

    kernel = functools.partial(_down_conv_block_kernel, ho=ho, wo=wo, c2=c2,
                               cout=Cout, neg_slope=0.01)
    full = lambda n: (0, 0)

    out = pl.pallas_call(
        kernel,
        out_shape=jax.ShapeDtypeStruct((N, Cout, P), jnp.float32),
        grid=(N,),
        in_specs=[
            pl.BlockSpec((1, Hp, Wpair, c2), lambda n: (n, 0, 0, 0)),
            pl.BlockSpec((8 * c2, Cout), full),
            pl.BlockSpec((1, Cout), full),
            pl.BlockSpec((9 * Cout, 2 * Cout), full),
            pl.BlockSpec((1, Cout), full),
            pl.BlockSpec((9 * Cout, Cout), full),
            pl.BlockSpec((1, Cout), full),
            pl.BlockSpec((1, Cout), full),
        ],
        out_specs=pl.BlockSpec((1, Cout, P), lambda n: (n, 0, 0)),
        scratch_shapes=[
            pltpu.VMEM((ho + 2, wo + 2, Cout), bf),   # y0 with zero halo
            pltpu.VMEM((ho + 2, wo + 2, Cout), bf),   # y1 with zero halo
            pltpu.VMEM((P, 8 * c2), bf),              # im2col slab for 4x4/s2 conv
            pltpu.VMEM((P, 9 * Cout), bf),            # im2col slab for 3x3 convs
        ],
        compiler_params=pltpu.CompilerParams(
            dimension_semantics=("parallel",),        # shard batch across TCs (v7x)
        ),
    )(xp, w0m, b0m, w1rm, b1m, w2m, b2m, brm)

    return out.reshape(N, Cout, ho, wo)               # already NCHW; free reshape


# ----------------------------------------------------------------------------
# Parameters (PyTorch-style uniform init), HWIO weights
# ----------------------------------------------------------------------------
def init_down_conv_params(key, in_ch, out_ch):
    def conv_init(k, kh, kw, cin, cout):
        kw_key, kb_key = jax.random.split(k)
        bound = 1.0 / ((cin * kh * kw) ** 0.5)
        w = jax.random.uniform(kw_key, (kh, kw, cin, cout), jnp.float32, -bound, bound)
        bb = jax.random.uniform(kb_key, (cout,), jnp.float32, -bound, bound)
        return w, bb

    ks = jax.random.split(key, 4)
    return {
        "down":  conv_init(ks[0], 4, 4, in_ch, out_ch),   # Conv2d(in, out, 4, s=2, p=1)
        "conv1": conv_init(ks[1], 3, 3, out_ch, out_ch),  # conv_block conv #1
        "conv2": conv_init(ks[2], 3, 3, out_ch, out_ch),  # conv_block conv #2
        "res":   conv_init(ks[3], 1, 1, out_ch, out_ch),  # conv_block residual 1x1
    }


# ----------------------------------------------------------------------------
# Plain-JAX reference with the same bf16-inputs / f32-accumulate recipe
# ----------------------------------------------------------------------------
def _conv_ref(x, w, b, stride, padding, neg_slope=None):
    y = jax.lax.conv_general_dilated(
        x.astype(jnp.bfloat16), w.astype(jnp.bfloat16),
        (stride, stride), ((padding, padding), (padding, padding)),
        dimension_numbers=("NHWC", "HWIO", "NHWC"),
        preferred_element_type=jnp.float32)
    y = y + b.astype(jnp.float32)
    if neg_slope is not None:
        y = jnp.where(y >= 0, y, y * neg_slope)
    return y


if __name__ == "__main__":
    key = jax.random.PRNGKey(0)
    kx, kp = jax.random.split(key)
    in_ch, out_ch = 4, 8
    x = jax.random.normal(kx, (2, in_ch, 16, 16), jnp.float32)   # NCHW, like PyTorch

    params = init_down_conv_params(kp, in_ch, out_ch)

    out = jax.block_until_ready(down_conv_forward(x, params))
    assert out.shape == (2, out_ch, 8, 8), out.shape

    # cross-check against a plain-JAX reference of the same forward pass
    xn = jnp.transpose(x, (0, 2, 3, 1))
    w0, b0 = params["down"]
    w1, b1 = params["conv1"]
    w2, b2 = params["conv2"]
    wr, br = params["res"]
    r0 = _conv_ref(xn, w0, b0, 2, 1)                 # downsample (no activation)
    r1 = _conv_ref(r0, w1, b1, 1, 1, 0.01)           # conv3x3 + LeakyReLU
    r2 = _conv_ref(r1, w2, b2, 1, 1, 0.01)           # conv3x3 + LeakyReLU
    rr = _conv_ref(r0, wr, br, 1, 0)                 # 1x1 residual
    ref = jnp.transpose(r2 + rr, (0, 3, 1, 2))       # NHWC -> NCHW

    err = float(jnp.max(jnp.abs(out - ref)))
    assert err < 1e-2, f"max abs error {err}"
    print("KERNEL_OK")
</pallas_src>

<mosaic_0001>
module attributes {stable_mosaic.version = 11 : i64} {
  func.func @_down_conv_block_kernel(%arg0: i32, %arg1: memref<1x18x9x8xbf16, #tpu.memory_space<vmem>>, %arg2: memref<64x8xbf16, #tpu.memory_space<vmem>>, %arg3: memref<1x8xf32, #tpu.memory_space<vmem>>, %arg4: memref<72x16xbf16, #tpu.memory_space<vmem>>, %arg5: memref<1x8xf32, #tpu.memory_space<vmem>>, %arg6: memref<72x8xbf16, #tpu.memory_space<vmem>>, %arg7: memref<1x8xf32, #tpu.memory_space<vmem>>, %arg8: memref<1x8xf32, #tpu.memory_space<vmem>>, %arg9: memref<1x8x64xf32, #tpu.memory_space<vmem>>, %arg10: memref<10x10x8xbf16, #tpu.memory_space<vmem>>, %arg11: memref<10x10x8xbf16, #tpu.memory_space<vmem>>, %arg12: memref<64x64xbf16, #tpu.memory_space<vmem>>, %arg13: memref<64x72xbf16, #tpu.memory_space<vmem>>) attributes {dimension_semantics = [#tpu.dimension_semantics<parallel>], iteration_bounds = array<i64: 2>, scalar_prefetch = 0 : i64, scratch_operands = 4 : i64, tpu.core_type = #tpu.core_type<tc>, window_params = [{transform_indices = @transform_0, window_bounds = array<i64: 1, 18, 9, 8>}, {pipeline_mode = #tpu.pipeline_mode<synchronous>, transform_indices = @transform_1, window_bounds = array<i64: 64, 8>}, {pipeline_mode = #tpu.pipeline_mode<synchronous>, transform_indices = @transform_2, window_bounds = array<i64: 1, 8>}, {pipeline_mode = #tpu.pipeline_mode<synchronous>, transform_indices = @transform_3, window_bounds = array<i64: 72, 16>}, {pipeline_mode = #tpu.pipeline_mode<synchronous>, transform_indices = @transform_4, window_bounds = array<i64: 1, 8>}, {pipeline_mode = #tpu.pipeline_mode<synchronous>, transform_indices = @transform_5, window_bounds = array<i64: 72, 8>}, {pipeline_mode = #tpu.pipeline_mode<synchronous>, transform_indices = @transform_6, window_bounds = array<i64: 1, 8>}, {pipeline_mode = #tpu.pipeline_mode<synchronous>, transform_indices = @transform_7, window_bounds = array<i64: 1, 8>}, {transform_indices = @transform_8, window_bounds = array<i64: 1, 8, 64>}]} {
    %c0 = arith.constant 0 : index
    %c0_0 = arith.constant 0 : index
    %c0_1 = arith.constant 0 : index
    %c0_2 = arith.constant 0 : index
    %0 = vector.load %arg1[%c0, %c0_0, %c0_1, %c0_2] : memref<1x18x9x8xbf16, #tpu.memory_space<vmem>>, vector<1x18x9x8xbf16>
    %1 = vector.shape_cast %0 : vector<1x18x9x8xbf16> to vector<18x9x8xbf16>
    %2 = vector.shape_cast %1 : vector<18x9x8xbf16> to vector<9x2x9x8xbf16>
    %3 = vector.extract_strided_slice %2 {offsets = [0, 0, 0, 0], sizes = [9, 1, 9, 8], strides = [1, 1, 1, 1]} : vector<9x2x9x8xbf16> to vector<9x1x9x8xbf16>
    %4 = vector.shape_cast %3 : vector<9x1x9x8xbf16> to vector<9x9x8xbf16>
    %5 = vector.extract_strided_slice %2 {offsets = [0, 1, 0, 0], sizes = [9, 1, 9, 8], strides = [1, 1, 1, 1]} : vector<9x2x9x8xbf16> to vector<9x1x9x8xbf16>
    %6 = vector.shape_cast %5 : vector<9x1x9x8xbf16> to vector<9x9x8xbf16>
    %7 = vector.extract_strided_slice %4 {offsets = [0, 0, 0], sizes = [8, 9, 8], strides = [1, 1, 1]} : vector<9x9x8xbf16> to vector<8x9x8xbf16>
    %8 = vector.extract_strided_slice %7 {offsets = [0, 0, 0], sizes = [8, 8, 8], strides = [1, 1, 1]} : vector<8x9x8xbf16> to vector<8x8x8xbf16>
    %9 = vector.shape_cast %8 : vector<8x8x8xbf16> to vector<64x8xbf16>
    %c0_3 = arith.constant 0 : index
    %c0_4 = arith.constant 0 : index
    %10 = vector.load %arg12[%c0_3, %c0_4] : memref<64x64xbf16, #tpu.memory_space<vmem>>, vector<64x8xbf16>
    tpu.vector_store %arg12[%c0_3, %c0_4], %9 {strides = array<i32>} : memref<64x64xbf16, #tpu.memory_space<vmem>>, vector<64x8xbf16>,
    %11 = vector.extract_strided_slice %7 {offsets = [0, 1, 0], sizes = [8, 8, 8], strides = [1, 1, 1]} : vector<8x9x8xbf16> to vector<8x8x8xbf16>
    %12 = vector.shape_cast %11 : vector<8x8x8xbf16> to vector<64x8xbf16>
    %c0_5 = arith.constant 0 : index
    %c8 = arith.constant 8 : index
    %13 = vector.load %arg12[%c0_5, %c8] : memref<64x64xbf16, #tpu.memory_space<vmem>>, vector<64x8xbf16>
    tpu.vector_store %arg12[%c0_5, %c8], %12 {strides = array<i32>} : memref<64x64xbf16, #tpu.memory_space<vmem>>, vector<64x8xbf16>,
    %14 = vector.extract_strided_slice %6 {offsets = [0, 0, 0], sizes = [8, 9, 8], strides = [1, 1, 1]} : vector<9x9x8xbf16> to vector<8x9x8xbf16>
    %15 = vector.extract_strided_slice %14 {offsets = [0, 0, 0], sizes = [8, 8, 8], strides = [1, 1, 1]} : vector<8x9x8xbf16> to vector<8x8x8xbf16>
    %16 = vector.shape_cast %15 : vector<8x8x8xbf16> to vector<64x8xbf16>
    %c0_6 = arith.constant 0 : index
    %c16 = arith.constant 16 : index
    %17 = vector.load %arg12[%c0_6, %c16] : memref<64x64xbf16, #tpu.memory_space<vmem>>, vector<64x8xbf16>
    tpu.vector_store %arg12[%c0_6, %c16], %16 {strides = array<i32>} : memref<64x64xbf16, #tpu.memory_space<vmem>>, vector<64x8xbf16>,
    %18 = vector.extract_strided_slice %14 {offsets = [0, 1, 0], sizes = [8, 8, 8], strides = [1, 1, 1]} : vector<8x9x8xbf16> to vector<8x8x8xbf16>
    %19 = vector.shape_cast %18 : vector<8x8x8xbf16> to vector<64x8xbf16>
    %c0_7 = arith.constant 0 : index
    %c24 = arith.constant 24 : index
    %20 = vector.load %arg12[%c0_7, %c24] : memref<64x64xbf16, #tpu.memory_space<vmem>>, vector<64x8xbf16>
    tpu.vector_store %arg12[%c0_7, %c24], %19 {strides = array<i32>} : memref<64x64xbf16, #tpu.memory_space<vmem>>, vector<64x8xbf16>,
    %21 = vector.extract_strided_slice %4 {offsets = [1, 0, 0], sizes = [8, 9, 8], strides = [1, 1, 1]} : vector<9x9x8xbf16> to vector<8x9x8xbf16>
    %22 = vector.extract_strided_slice %21 {offsets = [0, 0, 0], sizes = [8, 8, 8], strides = [1, 1, 1]} : vector<8x9x8xbf16> to vector<8x8x8xbf16>
    %23 = vector.shape_cast %22 : vector<8x8x8xbf16> to vector<64x8xbf16>
    %c0_8 = arith.constant 0 : index
    %c32 = arith.constant 32 : index
    %24 = vector.load %arg12[%c0_8, %c32] : memref<64x64xbf16, #tpu.memory_space<vmem>>, vector<64x8xbf16>
    tpu.vector_store %arg12[%c0_8, %c32], %23 {strides = array<i32>} : memref<64x64xbf16, #tpu.memory_space<vmem>>, vector<64x8xbf16>,
    %25 = vector.extract_strided_slice %21 {offsets = [0, 1, 0], sizes = [8, 8, 8], strides = [1, 1, 1]} : vector<8x9x8xbf16> to vector<8x8x8xbf16>
    %26 = vector.shape_cast %25 : vector<8x8x8xbf16> to vector<64x8xbf16>
    %c0_9 = arith.constant 0 : index
    %c40 = arith.constant 40 : index
    %27 = vector.load %arg12[%c0_9, %c40] : memref<64x64xbf16, #tpu.memory_space<vmem>>, vector<64x8xbf16>
    tpu.vector_store %arg12[%c0_9, %c40], %26 {strides = array<i32>} : memref<64x64xbf16, #tpu.memory_space<vmem>>, vector<64x8xbf16>,
    %28 = vector.extract_strided_slice %6 {offsets = [1, 0, 0], sizes = [8, 9, 8], strides = [1, 1, 1]} : vector<9x9x8xbf16> to vector<8x9x8xbf16>
    %29 = vector.extract_strided_slice %28 {offsets = [0, 0, 0], sizes = [8, 8, 8], strides = [1, 1, 1]} : vector<8x9x8xbf16> to vector<8x8x8xbf16>
    %30 = vector.shape_cast %29 : vector<8x8x8xbf16> to vector<64x8xbf16>
    %c0_10 = arith.constant 0 : index
    %c48 = arith.constant 48 : index
    %31 = vector.load %arg12[%c0_10, %c48] : memref<64x64xbf16, #tpu.memory_space<vmem>>, vector<64x8xbf16>
    tpu.vector_store %arg12[%c0_10, %c48], %30 {strides = array<i32>} : memref<64x64xbf16, #tpu.memory_space<vmem>>, vector<64x8xbf16>,
    %32 = vector.extract_strided_slice %28 {offsets = [0, 1, 0], sizes = [8, 8, 8], strides = [1, 1, 1]} : vector<8x9x8xbf16> to vector<8x8x8xbf16>
    %33 = vector.shape_cast %32 : vector<8x8x8xbf16> to vector<64x8xbf16>
    %c0_11 = arith.constant 0 : index
    %c56 = arith.constant 56 : index
    %34 = vector.load %arg12[%c0_11, %c56] : memref<64x64xbf16, #tpu.memory_space<vmem>>, vector<64x8xbf16>
    tpu.vector_store %arg12[%c0_11, %c56], %33 {strides = array<i32>} : memref<64x64xbf16, #tpu.memory_space<vmem>>, vector<64x8xbf16>,
    %c0_12 = arith.constant 0 : index
    %c0_13 = arith.constant 0 : index
    %35 = vector.load %arg12[%c0_12, %c0_13] : memref<64x64xbf16, #tpu.memory_space<vmem>>, vector<64x64xbf16>
    %c0_14 = arith.constant 0 : index
    %c0_15 = arith.constant 0 : index
    %36 = vector.load %arg2[%c0_14, %c0_15] : memref<64x8xbf16, #tpu.memory_space<vmem>>, vector<64x8xbf16>
    %cst = arith.constant dense<0.000000e+00> : vector<64x8xf32>
    %37 = tpu.matmul %35, %36, %cst {dimension_numbers = #tpu.dot_dimension_numbers<[1], [0], [0], [1], [0, 0, 1, 1], [], []>} : vector<64x64xbf16>, vector<64x8xbf16>, vector<64x8xf32> -> vector<64x8xf32>
    %c0_16 = arith.constant 0 : index
    %c0_17 = arith.constant 0 : index
    %38 = vector.load %arg3[%c0_16, %c0_17] : memref<1x8xf32, #tpu.memory_space<vmem>>, vector<1x8xf32>
    %39 = vector.broadcast %38 : vector<1x8xf32> to vector<64x8xf32>
    %40 = arith.addf %37, %39 : vector<64x8xf32>
    %41 = arith.truncf %40 : vector<64x8xf32> to vector<64x8xbf16>
    %cst_18 = arith.constant 0.000000e+00 : bf16
    %42 = vector.broadcast %cst_18 : bf16 to vector<10x10x8xbf16>
    %c0_19 = arith.constant 0 : index
    %c0_20 = arith.constant 0 : index
    %c0_21 = arith.constant 0 : index
    %43 = vector.load %arg10[%c0_19, %c0_20, %c0_21] : memref<10x10x8xbf16, #tpu.memory_space<vmem>>, vector<10x10x8xbf16>
    tpu.vector_store %arg10[%c0_19, %c0_20, %c0_21], %42 {strides = array<i32>} : memref<10x10x8xbf16, #tpu.memory_space<vmem>>, vector<10x10x8xbf16>,
    %44 = vector.shape_cast %41 : vector<64x8xbf16> to vector<8x8x8xbf16>
    %c1 = arith.constant 1 : index
    %c1_22 = arith.constant 1 : index
    %c0_23 = arith.constant 0 : index
    %45 = vector.load %arg10[%c1, %c1_22, %c0_23] : memref<10x10x8xbf16, #tpu.memory_space<vmem>>, vector<8x8x8xbf16>
    tpu.vector_store %arg10[%c1, %c1_22, %c0_23], %44 {strides = array<i32>} : memref<10x10x8xbf16, #tpu.memory_space<vmem>>, vector<8x8x8xbf16>,
    %c0_24 = arith.constant 0 : index
    %c0_25 = arith.constant 0 : index
    %c0_26 = arith.constant 0 : index
    %46 = vector.load %arg10[%c0_24, %c0_25, %c0_26] : memref<10x10x8xbf16, #tpu.memory_space<vmem>>, vector<8x8x8xbf16>
    %47 = vector.shape_cast %46 : vector<8x8x8xbf16> to vector<64x8xbf16>
    %c0_27 = arith.constant 0 : index
    %c0_28 = arith.constant 0 : index
    %48 = vector.load %arg13[%c0_27, %c0_28] : memref<64x72xbf16, #tpu.memory_space<vmem>>, vector<64x8xbf16>
    tpu.vector_store %arg13[%c0_27, %c0_28], %47 {strides = array<i32>} : memref<64x72xbf16, #tpu.memory_space<vmem>>, vector<64x8xbf16>,
    %c0_29 = arith.constant 0 : index
    %c1_30 = arith.constant 1 : index
    %c0_31 = arith.constant 0 : index
    %49 = vector.load %arg10[%c0_29, %c1_30, %c0_31] : memref<10x10x8xbf16, #tpu.memory_space<vmem>>, vector<8x8x8xbf16>
    %50 = vector.shape_cast %49 : vector<8x8x8xbf16> to vector<64x8xbf16>
    %c0_32 = arith.constant 0 : index
    %c8_33 = arith.constant 8 : index
    %51 = vector.load %arg13[%c0_32, %c8_33] : memref<64x72xbf16, #tpu.memory_space<vmem>>, vector<64x8xbf16>
    tpu.vector_store %arg13[%c0_32, %c8_33], %50 {strides = array<i32>} : memref<64x72xbf16, #tpu.memory_space<vmem>>, vector<64x8xbf16>,
    %c0_34 = arith.constant 0 : index
    %c2 = arith.constant 2 : index
    %c0_35 = arith.constant 0 : index
    %52 = vector.load %arg10[%c0_34, %c2, %c0_35] : memref<10x10x8xbf16, #tpu.memory_space<vmem>>, vector<8x8x8xbf16>
    %53 = vector.shape_cast %52 : vector<8x8x8xbf16> to vector<64x8xbf16>
    %c0_36 = arith.constant 0 : index
    %c16_37 = arith.constant 16 : index
    %54 = vector.load %arg13[%c0_36, %c16_37] : memref<64x72xbf16, #tpu.memory_space<vmem>>, vector<64x8xbf16>
    tpu.vector_store %arg13[%c0_36, %c16_37], %53 {strides = array<i32>} : memref<64x72xbf16, #tpu.memory_space<vmem>>, vector<64x8xbf16>,
    %c1_38 = arith.constant 1 : index
    %c0_39 = arith.constant 0 : index
    %c0_40 = arith.constant 0 : index
    %55 = vector.load %arg10[%c1_38, %c0_39, %c0_40] : memref<10x10x8xbf16, #tpu.memory_space<vmem>>, vector<8x8x8xbf16>
    %56 = vector.shape_cast %55 : vector<8x8x8xbf16> to vector<64x8xbf16>
    %c0_41 = arith.constant 0 : index
    %c24_42 = arith.constant 24 : index
    %57 = vector.load %arg13[%c0_41, %c24_42] : memref<64x72xbf16, #tpu.memory_space<vmem>>, vector<64x8xbf16>
    tpu.vector_store %arg13[%c0_41, %c24_42], %56 {strides = array<i32>} : memref<64x72xbf16, #tpu.memory_space<vmem>>, vector<64x8xbf16>,
    %c1_43 = arith.constant 1 : index
    %c1_44 = arith.constant 1 : index
    %c0_45 = arith.constant 0 : index
    %58 = vector.load %arg10[%c1_43, %c1_44, %c0_45] : memref<10x10x8xbf16, #tpu.memory_space<vmem>>, vector<8x8x8xbf16>
    %59 = vector.shape_cast %58 : vector<8x8x8xbf16> to vector<64x8xbf16>
    %c0_46 = arith.constant 0 : index
    %c32_47 = arith.constant 32 : index
    %60 = vector.load %arg13[%c0_46, %c32_47] : memref<64x72xbf16, #tpu.memory_space<vmem>>, vector<64x8xbf16>
    tpu.vector_store %arg13[%c0_46, %c32_47], %59 {strides = array<i32>} : memref<64x72xbf16, #tpu.memory_space<vmem>>, vector<64x8xbf16>,
    %c1_48 = arith.constant 1 : index
    %c2_49 = arith.constant 2 : index
    %c0_50 = arith.constant 0 : index
    %61 = vector.load %arg10[%c1_48, %c2_49, %c0_50] : memref<10x10x8xbf16, #tpu.memory_space<vmem>>, vector<8x8x8xbf16>
    %62 = vector.shape_cast %61 : vector<8x8x8xbf16> to vector<64x8xbf16>
    %c0_51 = arith.constant 0 : index
    %c40_52 = arith.constant 40 : index
    %63 = vector.load %arg13[%c0_51, %c40_52] : memref<64x72xbf16, #tpu.memory_space<vmem>>, vector<64x8xbf16>
    tpu.vector_store %arg13[%c0_51, %c40_52], %62 {strides = array<i32>} : memref<64x72xbf16, #tpu.memory_space<vmem>>, vector<64x8xbf16>,
    %c2_53 = arith.constant 2 : index
    %c0_54 = arith.constant 0 : index
    %c0_55 = arith.constant 0 : index
    %64 = vector.load %arg10[%c2_53, %c0_54, %c0_55] : memref<10x10x8xbf16, #tpu.memory_space<vmem>>, vector<8x8x8xbf16>
    %65 = vector.shape_cast %64 : vector<8x8x8xbf16> to vector<64x8xbf16>
    %c0_56 = arith.constant 0 : index
    %c48_57 = arith.constant 48 : index
    %66 = vector.load %arg13[%c0_56, %c48_57] : memref<64x72xbf16, #tpu.memory_space<vmem>>, vector<64x8xbf16>
    tpu.vector_store %arg13[%c0_56, %c48_57], %65 {strides = array<i32>} : memref<64x72xbf16, #tpu.memory_space<vmem>>, vector<64x8xbf16>,
    %c2_58 = arith.constant 2 : index
    %c1_59 = arith.constant 1 : index
    %c0_60 = arith.constant 0 : index
    %67 = vector.load %arg10[%c2_58, %c1_59, %c0_60] : memref<10x10x8xbf16, #tpu.memory_space<vmem>>, vector<8x8x8xbf16>
    %68 = vector.shape_cast %67 : vector<8x8x8xbf16> to vector<64x8xbf16>
    %c0_61 = arith.constant 0 : index
    %c56_62 = arith.constant 56 : index
    %69 = vector.load %arg13[%c0_61, %c56_62] : memref<64x72xbf16, #tpu.memory_space<vmem>>, vector<64x8xbf16>
    tpu.vector_store %arg13[%c0_61, %c56_62], %68 {strides = array<i32>} : memref<64x72xbf16, #tpu.memory_space<vmem>>, vector<64x8xbf16>,
    %c2_63 = arith.constant 2 : index
    %c2_64 = arith.constant 2 : index
    %c0_65 = arith.constant 0 : index
    %70 = vector.load %arg10[%c2_63, %c2_64, %c0_65] : memref<10x10x8xbf16, #tpu.memory_space<vmem>>, vector<8x8x8xbf16>
    %71 = vector.shape_cast %70 : vector<8x8x8xbf16> to vector<64x8xbf16>
    %c0_66 = arith.constant 0 : index
    %c64 = arith.constant 64 : index
    %72 = vector.load %arg13[%c0_66, %c64] : memref<64x72xbf16, #tpu.memory_space<vmem>>, vector<64x8xbf16>
    tpu.vector_store %arg13[%c0_66, %c64], %71 {strides = array<i32>} : memref<64x72xbf16, #tpu.memory_space<vmem>>, vector<64x8xbf16>,
    %c0_67 = arith.constant 0 : index
    %c0_68 = arith.constant 0 : index
    %73 = vector.load %arg13[%c0_67, %c0_68] : memref<64x72xbf16, #tpu.memory_space<vmem>>, vector<64x72xbf16>
    %c0_69 = arith.constant 0 : index
    %c0_70 = arith.constant 0 : index
    %74 = vector.load %arg4[%c0_69, %c0_70] : memref<72x16xbf16, #tpu.memory_space<vmem>>, vector<72x16xbf16>
    %cst_71 = arith.constant dense<0.000000e+00> : vector<64x16xf32>
    %75 = tpu.matmul %73, %74, %cst_71 {dimension_numbers = #tpu.dot_dimension_numbers<[1], [0], [0], [1], [0, 0, 1, 1], [], []>} : vector<64x72xbf16>, vector<72x16xbf16>, vector<64x16xf32> -> vector<64x16xf32>
    %76 = vector.extract_strided_slice %75 {offsets = [0, 0], sizes = [64, 8], strides = [1, 1]} : vector<64x16xf32> to vector<64x8xf32>
    %c0_72 = arith.constant 0 : index
    %c0_73 = arith.constant 0 : index
    %77 = vector.load %arg5[%c0_72, %c0_73] : memref<1x8xf32, #tpu.memory_space<vmem>>, vector<1x8xf32>
    %78 = vector.broadcast %77 : vector<1x8xf32> to vector<64x8xf32>
    %79 = arith.addf %76, %78 : vector<64x8xf32>
    %cst_74 = arith.constant 0.000000e+00 : f32
    %80 = vector.broadcast %cst_74 : f32 to vector<64x8xf32>
    %81 = arith.cmpf oge, %79, %80 : vector<64x8xf32>
    %cst_75 = arith.constant 0.00999999977 : f32
    %82 = vector.broadcast %cst_75 : f32 to vector<64x8xf32>
    %83 = arith.mulf %79, %82 : vector<64x8xf32>
    %84 = arith.select %81, %79, %83 : vector<64x8xi1>, vector<64x8xf32>
    %85 = vector.extract_strided_slice %75 {offsets = [0, 8], sizes = [64, 8], strides = [1, 1]} : vector<64x16xf32> to vector<64x8xf32>
    %c0_76 = arith.constant 0 : index
    %c0_77 = arith.constant 0 : index
    %86 = vector.load %arg8[%c0_76, %c0_77] : memref<1x8xf32, #tpu.memory_space<vmem>>, vector<1x8xf32>
    %87 = vector.broadcast %86 : vector<1x8xf32> to vector<64x8xf32>
    %88 = arith.addf %85, %87 : vector<64x8xf32>
    %cst_78 = arith.constant 0.000000e+00 : bf16
    %89 = vector.broadcast %cst_78 : bf16 to vector<10x10x8xbf16>
    %c0_79 = arith.constant 0 : index
    %c0_80 = arith.constant 0 : index
    %c0_81 = arith.constant 0 : index
    %90 = vector.load %arg11[%c0_79, %c0_80, %c0_81] : memref<10x10x8xbf16, #tpu.memory_space<vmem>>, vector<10x10x8xbf16>
    tpu.vector_store %arg11[%c0_79, %c0_80, %c0_81], %89 {strides = array<i32>} : memref<10x10x8xbf16, #tpu.memory_space<vmem>>, vector<10x10x8xbf16>,
    %91 = arith.truncf %84 : vector<64x8xf32> to vector<64x8xbf16>
    %92 = vector.shape_cast %91 : vector<64x8xbf16> to vector<8x8x8xbf16>
    %c1_82 = arith.constant 1 : index
    %c1_83 = arith.constant 1 : index
    %c0_84 = arith.constant 0 : index
    %93 = vector.load %arg11[%c1_82, %c1_83, %c0_84] : memref<10x10x8xbf16, #tpu.memory_space<vmem>>, vector<8x8x8xbf16>
    tpu.vector_store %arg11[%c1_82, %c1_83, %c0_84], %92 {strides = array<i32>} : memref<10x10x8xbf16, #tpu.memory_space<vmem>>, vector<8x8x8xbf16>,
    %c0_85 = arith.constant 0 : index
    %c0_86 = arith.constant 0 : index
    %c0_87 = arith.constant 0 : index
    %94 = vector.load %arg11[%c0_85, %c0_86, %c0_87] : memref<10x10x8xbf16, #tpu.memory_space<vmem>>, vector<8x8x8xbf16>
    %95 = vector.shape_cast %94 : vector<8x8x8xbf16> to vector<64x8xbf16>
    %c0_88 = arith.constant 0 : index
    %c0_89 = arith.constant 0 : index
    %96 = vector.load %arg13[%c0_88, %c0_89] : memref<64x72xbf16, #tpu.memory_space<vmem>>, vector<64x8xbf16>
    tpu.vector_store %arg13[%c0_88, %c0_89], %95 {strides = array<i32>} : memref<64x72xbf16, #tpu.memory_space<vmem>>, vector<64x8xbf16>,
    %c0_90 = arith.constant 0 : index
    %c1_91 = arith.constant 1 : index
    %c0_92 = arith.constant 0 : index
    %97 = vector.load %arg11[%c0_90, %c1_91, %c0_92] : memref<10x10x8xbf16, #tpu.memory_space<vmem>>, vector<8x8x8xbf16>
    %98 = vector.shape_cast %97 : vector<8x8x8xbf16> to vector<64x8xbf16>
    %c0_93 = arith.constant 0 : index
    %c8_94 = arith.constant 8 : index
    %99 = vector.load %arg13[%c0_93, %c8_94] : memref<64x72xbf16, #tpu.memory_space<vmem>>, vector<64x8xbf16>
    tpu.vector_store %arg13[%c0_93, %c8_94], %98 {strides = array<i32>} : memref<64x72xbf16, #tpu.memory_space<vmem>>, vector<64x8xbf16>,
    %c0_95 = arith.constant 0 : index
    %c2_96 = arith.constant 2 : index
    %c0_97 = arith.constant 0 : index
    %100 = vector.load %arg11[%c0_95, %c2_96, %c0_97] : memref<10x10x8xbf16, #tpu.memory_space<vmem>>, vector<8x8x8xbf16>
    %101 = vector.shape_cast %100 : vector<8x8x8xbf16> to vector<64x8xbf16>
    %c0_98 = arith.constant 0 : index
    %c16_99 = arith.constant 16 : index
    %102 = vector.load %arg13[%c0_98, %c16_99] : memref<64x72xbf16, #tpu.memory_space<vmem>>, vector<64x8xbf16>
    tpu.vector_store %arg13[%c0_98, %c16_99], %101 {strides = array<i32>} : memref<64x72xbf16, #tpu.memory_space<vmem>>, vector<64x8xbf16>,
    %c1_100 = arith.constant 1 : index
    %c0_101 = arith.constant 0 : index
    %c0_102 = arith.constant 0 : index
    %103 = vector.load %arg11[%c1_100, %c0_101, %c0_102] : memref<10x10x8xbf16, #tpu.memory_space<vmem>>, vector<8x8x8xbf16>
    %104 = vector.shape_cast %103 : vector<8x8x8xbf16> to vector<64x8xbf16>
    %c0_103 = arith.constant 0 : index
    %c24_104 = arith.constant 24 : index
    %105 = vector.load %arg13[%c0_103, %c24_104] : memref<64x72xbf16, #tpu.memory_space<vmem>>, vector<64x8xbf16>
    tpu.vector_store %arg13[%c0_103, %c24_104], %104 {strides = array<i32>} : memref<64x72xbf16, #tpu.memory_space<vmem>>, vector<64x8xbf16>,
    %c1_105 = arith.constant 1 : index
    %c1_106 = arith.constant 1 : index
    %c0_107 = arith.constant 0 : index
    %106 = vector.load %arg11[%c1_105, %c1_106, %c0_107] : memref<10x10x8xbf16, #tpu.memory_space<vmem>>, vector<8x8x8xbf16>
    %107 = vector.shape_cast %106 : vector<8x8x8xbf16> to vector<64x8xbf16>
    %c0_108 = arith.constant 0 : index
    %c32_109 = arith.constant 32 : index
    %108 = vector.load %arg13[%c0_108, %c32_109] : memref<64x72xbf16, #tpu.memory_space<vmem>>, vector<64x8xbf16>
    tpu.vector_store %arg13[%c0_108, %c32_109], %107 {strides = array<i32>} : memref<64x72xbf16, #tpu.memory_space<vmem>>, vector<64x8xbf16>,
    %c1_110 = arith.constant 1 : index
    %c2_111 = arith.constant 2 : index
    %c0_112 = arith.constant 0 : index
    %109 = vector.load %arg11[%c1_110, %c2_111, %c0_112] : memref<10x10x8xbf16, #tpu.memory_space<vmem>>, vector<8x8x8xbf16>
    %110 = vector.shape_cast %109 : vector<8x8x8xbf16> to vector<64x8xbf16>
    %c0_113 = arith.constant 0 : index
    %c40_114 = arith.constant 40 : index
    %111 = vector.load %arg13[%c0_113, %c40_114] : memref<64x72xbf16, #tpu.memory_space<vmem>>, vector<64x8xbf16>
    tpu.vector_store %arg13[%c0_113, %c40_114], %110 {strides = array<i32>} : memref<64x72xbf16, #tpu.memory_space<vmem>>, vector<64x8xbf16>,
    %c2_115 = arith.constant 2 : index
    %c0_116 = arith.constant 0 : index
    %c0_117 = arith.constant 0 : index
    %112 = vector.load %arg11[%c2_115, %c0_116, %c0_117] : memref<10x10x8xbf16, #tpu.memory_space<vmem>>, vector<8x8x8xbf16>
    %113 = vector.shape_cast %112 : vector<8x8x8xbf16> to vector<64x8xbf16>
    %c0_118 = arith.constant 0 : index
    %c48_119 = arith.constant 48 : index
    %114 = vector.load %arg13[%c0_118, %c48_119] : memref<64x72xbf16, #tpu.memory_space<vmem>>, vector<64x8xbf16>
    tpu.vector_store %arg13[%c0_118, %c48_119], %113 {strides = array<i32>} : memref<64x72xbf16, #tpu.memory_space<vmem>>, vector<64x8xbf16>,
    %c2_120 = arith.constant 2 : index
    %c1_121 = arith.constant 1 : index
    %c0_122 = arith.constant 0 : index
    %115 = vector.load %arg11[%c2_120, %c1_121, %c0_122] : memref<10x10x8xbf16, #tpu.memory_space<vmem>>, vector<8x8x8xbf16>
    %116 = vector.shape_cast %115 : vector<8x8x8xbf16> to vector<64x8xbf16>
    %c0_123 = arith.constant 0 : index
    %c56_124 = arith.constant 56 : index
    %117 = vector.load %arg13[%c0_123, %c56_124] : memref<64x72xbf16, #tpu.memory_space<vmem>>, vector<64x8xbf16>
    tpu.vector_store %arg13[%c0_123, %c56_124], %116 {strides = array<i32>} : memref<64x72xbf16, #tpu.memory_space<vmem>>, vector<64x8xbf16>,
    %c2_125 = arith.constant 2 : index
    %c2_126 = arith.constant 2 : index
    %c0_127 = arith.constant 0 : index
    %118 = vector.load %arg11[%c2_125, %c2_126, %c0_127] : memref<10x10x8xbf16, #tpu.memory_space<vmem>>, vector<8x8x8xbf16>
    %119 = vector.shape_cast %118 : vector<8x8x8xbf16> to vector<64x8xbf16>
    %c0_128 = arith.constant 0 : index
    %c64_129 = arith.constant 64 : index
    %120 = vector.load %arg13[%c0_128, %c64_129] : memref<64x72xbf16, #tpu.memory_space<vmem>>, vector<64x8xbf16>
    tpu.vector_store %arg13[%c0_128, %c64_129], %119 {strides = array<i32>} : memref<64x72xbf16, #tpu.memory_space<vmem>>, vector<64x8xbf16>,
    %c0_130 = arith.constant 0 : index
    %c0_131 = arith.constant 0 : index
    %121 = vector.load %arg13[%c0_130, %c0_131] : memref<64x72xbf16, #tpu.memory_space<vmem>>, vector<64x72xbf16>
    %c0_132 = arith.constant 0 : index
    %c0_133 = arith.constant 0 : index
    %122 = vector.load %arg6[%c0_132, %c0_133] : memref<72x8xbf16, #tpu.memory_space<vmem>>, vector<72x8xbf16>
    %cst_134 = arith.constant dense<0.000000e+00> : vector<64x8xf32>
    %123 = tpu.matmul %121, %122, %cst_134 {dimension_numbers = #tpu.dot_dimension_numbers<[1], [0], [0], [1], [0, 0, 1, 1], [], []>} : vector<64x72xbf16>, vector<72x8xbf16>, vector<64x8xf32> -> vector<64x8xf32>
    %c0_135 = arith.constant 0 : index
    %c0_136 = arith.constant 0 : index
    %124 = vector.load %arg7[%c0_135, %c0_136] : memref<1x8xf32, #tpu.memory_space<vmem>>, vector<1x8xf32>
    %125 = vector.broadcast %124 : vector<1x8xf32> to vector<64x8xf32>
    %126 = arith.addf %123, %125 : vector<64x8xf32>
    %cst_137 = arith.constant 0.000000e+00 : f32
    %127 = vector.broadcast %cst_137 : f32 to vector<64x8xf32>
    %128 = arith.cmpf oge, %126, %127 : vector<64x8xf32>
    %cst_138 = arith.constant 0.00999999977 : f32
    %129 = vector.broadcast %cst_138 : f32 to vector<64x8xf32>
    %130 = arith.mulf %126, %129 : vector<64x8xf32>
    %131 = arith.select %128, %126, %130 : vector<64x8xi1>, vector<64x8xf32>
    %132 = arith.addf %131, %88 : vector<64x8xf32>
    %133 = tpu.transpose %132, [1, 0] : vector<64x8xf32> -> vector<8x64xf32>
    %c0_139 = arith.constant 0 : index
    %c0_140 = arith.constant 0 : index
    %c0_141 = arith.constant 0 : index
    %134 = vector.load %arg9[%c0_139, %c0_140, %c0_141] : memref<1x8x64xf32, #tpu.memory_space<vmem>>, vector<1x8x64xf32>
    %135 = vector.shape_cast %134 : vector<1x8x64xf32> to vector<8x64xf32>
    %136 = vector.shape_cast %133 : vector<8x64xf32> to vector<1x8x64xf32>
    tpu.vector_store %arg9[%c0_139, %c0_140, %c0_141], %136 {strides = array<i32>} : memref<1x8x64xf32, #tpu.memory_space<vmem>>, vector<1x8x64xf32>,
    return
  }
  func.func @transform_0(%arg0: i32) -> (i32, i32, i32, i32) {
    %c0_i32 = arith.constant 0 : i32
    %c0_i32_0 = arith.constant 0 : i32
    %c0_i32_1 = arith.constant 0 : i32
    %c0_i32_2 = arith.constant 0 : i32
    return %arg0, %c0_i32, %c0_i32_0, %c0_i32_1 : i32, i32, i32, i32
  }
  func.func @transform_1(%arg0: i32) -> (i32, i32) {
    %c0_i32 = arith.constant 0 : i32
    %c0_i32_0 = arith.constant 0 : i32
    %c0_i32_1 = arith.constant 0 : i32
    return %c0_i32, %c0_i32_0 : i32, i32
  }
  func.func @transform_2(%arg0: i32) -> (i32, i32) {
    %c0_i32 = arith.constant 0 : i32
    %c0_i32_0 = arith.constant 0 : i32
    %c0_i32_1 = arith.constant 0 : i32
    return %c0_i32, %c0_i32_0 : i32, i32
  }
  func.func @transform_3(%arg0: i32) -> (i32, i32) {
    %c0_i32 = arith.constant 0 : i32
    %c0_i32_0 = arith.constant 0 : i32
    %c0_i32_1 = arith.constant 0 : i32
    return %c0_i32, %c0_i32_0 : i32, i32
  }
  func.func @transform_4(%arg0: i32) -> (i32, i32) {
    %c0_i32 = arith.constant 0 : i32
    %c0_i32_0 = arith.constant 0 : i32
    %c0_i32_1 = arith.constant 0 : i32
    return %c0_i32, %c0_i32_0 : i32, i32
  }
  func.func @transform_5(%arg0: i32) -> (i32, i32) {
    %c0_i32 = arith.constant 0 : i32
    %c0_i32_0 = arith.constant 0 : i32
    %c0_i32_1 = arith.constant 0 : i32
    return %c0_i32, %c0_i32_0 : i32, i32
  }
  func.func @transform_6(%arg0: i32) -> (i32, i32) {
    %c0_i32 = arith.constant 0 : i32
    %c0_i32_0 = arith.constant 0 : i32
    %c0_i32_1 = arith.constant 0 : i32
    return %c0_i32, %c0_i32_0 : i32, i32
  }
  func.func @transform_7(%arg0: i32) -> (i32, i32) {
    %c0_i32 = arith.constant 0 : i32
    %c0_i32_0 = arith.constant 0 : i32
    %c0_i32_1 = arith.constant 0 : i32
    return %c0_i32, %c0_i32_0 : i32, i32
  }
  func.func @transform_8(%arg0: i32) -> (i32, i32, i32) {
    %c0_i32 = arith.constant 0 : i32
    %c0_i32_0 = arith.constant 0 : i32
    %c0_i32_1 = arith.constant 0 : i32
    return %arg0, %c0_i32, %c0_i32_0 : i32, i32, i32
  }
}

</mosaic_0001>

<llo_original>
// kernel: tpu_custom_call.1
$region0: #{tpu_custom_call.1}
  #allocation0 [shape = 'u32[]', space=smem, size = 0x4, offset = 0x4, fixed_abs, tag = 'smem constant byte address 0x4 - core index']
  #allocation1 [shape = 'u32[144,128]{1,0:T(1,128)}', space=vmem, size = 0x12000, scoped, tag = 'internal scratch']
  #allocation2 [shape = 'bf16[10,10,8]{2,1,0:T(8,128)(2,1)}', space=vmem, size = 0xa000, scoped, tag = 'scratch operand']
  #allocation3 [shape = 'bf16[10,10,8]{2,1,0:T(8,128)(2,1)}', space=vmem, size = 0xa000, scoped, tag = 'scratch operand']
  #allocation4 [shape = 'bf16[64,64]{1,0:T(8,128)(2,1)}', space=vmem, size = 0x4000, scoped, tag = 'scratch operand']
  #allocation5 [shape = 'bf16[64,72]{1,0:T(8,128)(2,1)}', space=vmem, size = 0x4000, scoped, tag = 'scratch operand']
  %s0 = inlined_call_operand.vmem [shape: bf16[2,18,9,8], index: 0, kind: input, shape index: {}]
  %s1 = inlined_call_operand.vmem [shape: bf16[64,8], index: 1, kind: input, shape index: {}]
  %s2 = inlined_call_operand.vmem [shape: f32[1,8], index: 2, kind: input, shape index: {}]
  %s3 = inlined_call_operand.vmem [shape: bf16[72,16], index: 3, kind: input, shape index: {}]
  %s4 = inlined_call_operand.vmem [shape: f32[1,8], index: 4, kind: input, shape index: {}]
  %s5 = inlined_call_operand.vmem [shape: bf16[72,8], index: 5, kind: input, shape index: {}]
  %s6 = inlined_call_operand.vmem [shape: f32[1,8], index: 6, kind: input, shape index: {}]
  %s7 = inlined_call_operand.vmem [shape: f32[1,8], index: 7, kind: input, shape index: {}]
  %s8 = inlined_call_operand.hbm [shape: f32[2,8,64], index: 8, kind: output, shape index: {}]
  %s9 = sld [smem:[#allocation0]]
  $region65: #{tpu_custom_call.1} parent=0
    _
  %s11 = ssub.s32 1, %s9
  %s12 = scalar_select 0, %s11, %s9
  $region1: #{tpu_custom_call.1} parent=0
    #allocation6 [shape = 'u8[8192]{0}', space=vmem, size = 0x2000, scoped, tag = 'output window, operand 0']
    #allocation7 [shape = 's32[2]{0}', space=sflag, size = 0x8, scoped, tag = 'scoped memory for tpu_custom_call.1']
    %13 = vsyncpa [#allocation7], 0
    %s14 = scalar_lea.sflag [#allocation7], 1
    %15 = vsyncpa %s14, 0
    loop: start=0, step=1, limit=4
    $region2: #{tpu_custom_call.1} parent=1 // loop_pre_header
      _
    $region3: #{tpu_custom_call.1} parent=1 // loop_header
      %s17 = sphi 0, %s21
      %p18 = scmp.ge.s32.totalorder %s17, 4
      %s27 = sphi 0, %s29
      %s30 = sphi 0, %s27
      %s31 = sphi 0, %s30
      %s47 = sphi 0, %s31
      %s51 = sphi 0, %s51
      %s53 = sphi 0, %s51
      %s54 = sphi 0, %s53
      %s68 = sphi 0, %s54
      %s72 = sphi 0, %s72
      %s74 = sphi 0, %s72
      %s75 = sphi 0, %s74
      %s89 = sphi 0, %s75
      %s93 = sphi 0, %s93
      %s95 = sphi 0, %s93
      %s96 = sphi 0, %s95
      %s110 = sphi 0, %s96
      %s114 = sphi 0, %s114
      %s116 = sphi 0, %s114
      %s117 = sphi 0, %s116
      %s131 = sphi 0, %s117
      %s135 = sphi 0, %s135
      %s137 = sphi 0, %s135
      %s138 = sphi 0, %s137
      %s152 = sphi 0, %s138
      %s156 = sphi 0, %s156
      %s158 = sphi 0, %s156
      %s159 = sphi 0, %s158
      %s173 = sphi 0, %s159
      %s177 = sphi 0, %s177
      %s179 = sphi 0, %s177
      %s180 = sphi 0, %s179
      %s194 = sphi 0, %s180
      %s200 = sphi 0, %s202
      %s203 = sphi 0, %s200
      %s204 = sphi 0, %s203
      %s220 = sphi 0, %s204
    $region4: #{tpu_custom_call.1} parent=1 // loop_header_branch
      %20 = sbr.rel (%p18) target = $region8
    $region5: #{tpu_custom_call.1} parent=1 // loop_body
      %s22 = ssub.s32 %s17, 1
      %s23 = ssub.s32 %s17, 2
      %s24 = sadd.s32 %s17, 1
      %s25 = ssub.s32 %s17, %s24
      %p26 = scmp.eq.s32.totalorder %s25, 0
      %s28 = sadd.s32 %s27, 1
      %s29 = scalar_select %p26, %s27, %s28
      %p32 = pneg %p26
      %p33 = scmp.eq.s32.totalorder %s17, 1
      %p34 = por %p32, %p33
      %p35 = scmp.ne.s32.totalorder %s27, %s30
      %p36 = scmp.eq.s32.totalorder %s17, 0
      %p37 = por %p35, %p36
      %p38 = scmp.ne.s32.totalorder %s27, %s30
      %p39 = scmp.eq.s32.totalorder %s22, 1
      %p40 = por %p38, %p39
      %p41 = scmp.ne.s32.totalorder %s30, %s31
      %p42 = scmp.eq.s32.totalorder %s22, 0
      %p43 = por %p41, %p42
      %p44 = scmp.ne.s32.totalorder %s30, %s31
      %p45 = scmp.eq.s32.totalorder %s23, 1
      %p46 = por %p44, %p45
      %p48 = scmp.ne.s32.totalorder %s31, %s47
      %p49 = scmp.eq.s32.totalorder %s23, 0
      %p50 = por %p48, %p49
      %s52 = sadd.s32 %s51, 1
      %p55 = scmp.eq.s32.totalorder %s17, 1
      %p56 = scmp.ne.s32.totalorder %s51, %s53
      %p57 = scmp.eq.s32.totalorder %s17, 0
      %p58 = por %p56, %p57
      %p59 = scmp.ne.s32.totalorder %s51, %s53
      %p60 = scmp.eq.s32.totalorder %s22, 1
      %p61 = por %p59, %p60
      %p62 = scmp.ne.s32.totalorder %s53, %s54
      %p63 = scmp.eq.s32.totalorder %s22, 0
      %p64 = por %p62, %p63
      %p65 = scmp.ne.s32.totalorder %s53, %s54
      %p66 = scmp.eq.s32.totalorder %s23, 1
      %p67 = por %p65, %p66
      %p69 = scmp.ne.s32.totalorder %s54, %s68
      %p70 = scmp.eq.s32.totalorder %s23, 0
      %p71 = por %p69, %p70
      %s73 = sadd.s32 %s72, 1
      %p76 = scmp.eq.s32.totalorder %s17, 1
      %p77 = scmp.ne.s32.totalorder %s72, %s74
      %p78 = scmp.eq.s32.totalorder %s17, 0
      %p79 = por %p77, %p78
      %p80 = scmp.ne.s32.totalorder %s72, %s74
      %p81 = scmp.eq.s32.totalorder %s22, 1
      %p82 = por %p80, %p81
      %p83 = scmp.ne.s32.totalorder %s74, %s75
      %p84 = scmp.eq.s32.totalorder %s22, 0
      %p85 = por %p83, %p84
      %p86 = scmp.ne.s32.totalorder %s74, %s75
      %p87 = scmp.eq.s32.totalorder %s23, 1
      %p88 = por %p86, %p87
      %p90 = scmp.ne.s32.totalorder %s75, %s89
      %p91 = scmp.eq.s32.totalorder %s23, 0
      %p92 = por %p90, %p91
      %s94 = sadd.s32 %s93, 1
      %p97 = scmp.eq.s32.totalorder %s17, 1
      %p98 = scmp.ne.s32.totalorder %s93, %s95
      %p99 = scmp.eq.s32.totalorder %s17, 0
      %p100 = por %p98, %p99
      %p101 = scmp.ne.s32.totalorder %s93, %s95
      %p102 = scmp.eq.s32.totalorder %s22, 1
      %p103 = por %p101, %p102
      %p104 = scmp.ne.s32.totalorder %s95, %s96
      %p105 = scmp.eq.s32.totalorder %s22, 0
      %p106 = por %p104, %p105
      %p107 = scmp.ne.s32.totalorder %s95, %s96
      %p108 = scmp.eq.s32.totalorder %s23, 1
      %p109 = por %p107, %p108
      %p111 = scmp.ne.s32.totalorder %s96, %s110
      %p112 = scmp.eq.s32.totalorder %s23, 0
      %p113 = por %p111, %p112
      %s115 = sadd.s32 %s114, 1
      %p118 = scmp.eq.s32.totalorder %s17, 1
      %p119 = scmp.ne.s32.totalorder %s114, %s116
      %p120 = scmp.eq.s32.totalorder %s17, 0
      %p121 = por %p119, %p120
      %p122 = scmp.ne.s32.totalorder %s114, %s116
      %p123 = scmp.eq.s32.totalorder %s22, 1
      %p124 = por %p122, %p123
      %p125 = scmp.ne.s32.totalorder %s116, %s117
      %p126 = scmp.eq.s32.totalorder %s22, 0
      %p127 = por %p125, %p126
      %p128 = scmp.ne.s32.totalorder %s116, %s117
      %p129 = scmp.eq.s32.totalorder %s23, 1
      %p130 = por %p128, %p129
      %p132 = scmp.ne.s32.totalorder %s117, %s131
      %p133 = scmp.eq.s32.totalorder %s23, 0
      %p134 = por %p132, %p133
      %s136 = sadd.s32 %s135, 1
      %p139 = scmp.eq.s32.totalorder %s17, 1
      %p140 = scmp.ne.s32.totalorder %s135, %s137
      %p141 = scmp.eq.s32.totalorder %s17, 0
      %p142 = por %p140, %p141
      %p143 = scmp.ne.s32.totalorder %s135, %s137
      %p144 = scmp.eq.s32.totalorder %s22, 1
      %p145 = por %p143, %p144
      %p146 = scmp.ne.s32.totalorder %s137, %s138
      %p147 = scmp.eq.s32.totalorder %s22, 0
      %p148 = por %p146, %p147
      %p149 = scmp.ne.s32.totalorder %s137, %s138
      %p150 = scmp.eq.s32.totalorder %s23, 1
      %p151 = por %p149, %p150
      %p153 = scmp.ne.s32.totalorder %s138, %s152
      %p154 = scmp.eq.s32.totalorder %s23, 0
      %p155 = por %p153, %p154
      %s157 = sadd.s32 %s156, 1
      %p160 = scmp.eq.s32.totalorder %s17, 1
      %p161 = scmp.ne.s32.totalorder %s156, %s158
      %p162 = scmp.eq.s32.totalorder %s17, 0
      %p163 = por %p161, %p162
      %p164 = scmp.ne.s32.totalorder %s156, %s158
      %p165 = scmp.eq.s32.totalorder %s22, 1
      %p166 = por %p164, %p165
      %p167 = scmp.ne.s32.totalorder %s158, %s159
      %p168 = scmp.eq.s32.totalorder %s22, 0
      %p169 = por %p167, %p168
      %p170 = scmp.ne.s32.totalorder %s158, %s159
      %p171 = scmp.eq.s32.totalorder %s23, 1
      %p172 = por %p170, %p171
      %p174 = scmp.ne.s32.totalorder %s159, %s173
      %p175 = scmp.eq.s32.totalorder %s23, 0
      %p176 = por %p174, %p175
      %s178 = sadd.s32 %s177, 1
      %p181 = scmp.eq.s32.totalorder %s17, 1
      %p182 = scmp.ne.s32.totalorder %s177, %s179
      %p183 = scmp.eq.s32.totalorder %s17, 0
      %p184 = por %p182, %p183
      %p185 = scmp.ne.s32.totalorder %s177, %s179
      %p186 = scmp.eq.s32.totalorder %s22, 1
      %p187 = por %p185, %p186
      %p188 = scmp.ne.s32.totalorder %s179, %s180
      %p189 = scmp.eq.s32.totalorder %s22, 0
      %p190 = por %p188, %p189
      %p191 = scmp.ne.s32.totalorder %s179, %s180
      %p192 = scmp.eq.s32.totalorder %s23, 1
      %p193 = por %p191, %p192
      %p195 = scmp.ne.s32.totalorder %s180, %s194
      %p196 = scmp.eq.s32.totalorder %s23, 0
      %p197 = por %p195, %p196
      %s198 = ssub.s32 %s17, %s24
      %p199 = scmp.eq.s32.totalorder %s198, 0
      %s201 = sadd.s32 %s200, 1
      %s202 = scalar_select %p199, %s200, %s201
      %p205 = pneg %p199
      %p206 = scmp.eq.s32.totalorder %s17, 1
      %p207 = por %p205, %p206
      %p208 = scmp.ne.s32.totalorder %s200, %s203
      %p209 = scmp.eq.s32.totalorder %s17, 0
      %p210 = por %p208, %p209
      %p211 = scmp.ne.s32.totalorder %s200, %s203
      %p212 = scmp.eq.s32.totalorder %s22, 1
      %p213 = por %p211, %p212
      %p214 = scmp.ne.s32.totalorder %s203, %s204
      %p215 = scmp.eq.s32.totalorder %s22, 0
      %p216 = por %p214, %p215
      %p217 = scmp.ne.s32.totalorder %s203, %s204
      %p218 = scmp.eq.s32.totalorder %s23, 1
      %p219 = por %p217, %p218
      %p221 = scmp.ne.s32.totalorder %s204, %s220
      %p222 = scmp.eq.s32.totalorder %s23, 0
      %p223 = por %p221, %p222
      %p224 = scmp.le.s32.totalorder 1, %s17
      %p225 = scmp.lt.s32.totalorder %s17, 3
      %p226 = pnand %p224, %p225
      %p227 = pneg %p226
      // Predicated region
      $region9: #{tpu_custom_call.1} parent=5 // pred_check
        _
      $region10: #{tpu_custom_call.1} parent=5 // pred_check_branch
        %229 = sbr.rel (%p226) target = $region12
      $region11: #{tpu_custom_call.1} parent=5 // pred_region
        %s230 = ssub.s32 %s17, 1
        // Predicated region
        $region13: #{tpu_custom_call.1} parent=11 // pred_check
          %p231 = pneg %p64
        $region14: #{tpu_custom_call.1} parent=11 // pred_check_branch
          %233 = sbr.rel (%p231) target = $region16
        $region15: #{tpu_custom_call.1} parent=11 // pred_region
          _
        $region16: #{tpu_custom_call.1} parent=11 // pred_fallthru
          _
        // Predicated region
        $region17: #{tpu_custom_call.1} parent=11 // pred_check
          %p234 = pneg %p85
        $region18: #{tpu_custom_call.1} parent=11 // pred_check_branch
          %236 = sbr.rel (%p234) target = $region20
        $region19: #{tpu_custom_call.1} parent=11 // pred_region
          _
        $region20: #{tpu_custom_call.1} parent=11 // pred_fallthru
          _
        // Predicated region
        $region21: #{tpu_custom_call.1} parent=11 // pred_check
          %p237 = pneg %p106
        $region22: #{tpu_custom_call.1} parent=11 // pred_check_branch
          %239 = sbr.rel (%p237) target = $region24
        $region23: #{tpu_custom_call.1} parent=11 // pred_region
          _
        $region24: #{tpu_custom_call.1} parent=11 // pred_fallthru
          _
        // Predicated region
        $region25: #{tpu_custom_call.1} parent=11 // pred_check
          %p240 = pneg %p127
        $region26: #{tpu_custom_call.1} parent=11 // pred_check_branch
          %242 = sbr.rel (%p240) target = $region28
        $region27: #{tpu_custom_call.1} parent=11 // pred_region
          _
        $region28: #{tpu_custom_call.1} parent=11 // pred_fallthru
          _
        // Predicated region
        $region29: #{tpu_custom_call.1} parent=11 // pred_check
          %p243 = pneg %p148
        $region30: #{tpu_custom_call.1} parent=11 // pred_check_branch
          %245 = sbr.rel (%p243) target = $region32
        $region31: #{tpu_custom_call.1} parent=11 // pred_region
          _
        $region32: #{tpu_custom_call.1} parent=11 // pred_fallthru
          _
        // Predicated region
        $region33: #{tpu_custom_call.1} parent=11 // pred_check
          %p246 = pneg %p169
        $region34: #{tpu_custom_call.1} parent=11 // pred_check_branch
          %248 = sbr.rel (%p246) target = $region36
        $region35: #{tpu_custom_call.1} parent=11 // pred_region
          _
        $region36: #{tpu_custom_call.1} parent=11 // pred_fallthru
          _
        // Predicated region
        $region37: #{tpu_custom_call.1} parent=11 // pred_check
          %p249 = pneg %p190
        $region38: #{tpu_custom_call.1} parent=11 // pred_check_branch
          %251 = sbr.rel (%p249) target = $region40
        $region39: #{tpu_custom_call.1} parent=11 // pred_region
          _
        $region40: #{tpu_custom_call.1} parent=11 // pred_fallthru
          _
      $region12: #{tpu_custom_call.1} parent=5 // pred_fallthru
        _
      %p252 = scmp.lt.s32.totalorder %s17, 2
      // Predicated region
      $region41: #{tpu_custom_call.1} parent=5 // pred_check
        %p253 = pneg %p252
      $region42: #{tpu_custom_call.1} parent=5 // pred_check_branch
        %255 = sbr.rel (%p253) target = $region44
      $region43: #{tpu_custom_call.1} parent=5 // pred_region
        // Predicated region
        $region45: #{tpu_custom_call.1} parent=43 // pred_check
          %p256 = pneg %p37
        $region46: #{tpu_custom_call.1} parent=43 // pred_check_branch
          %258 = sbr.rel (%p256) target = $region48
        $region47: #{tpu_custom_call.1} parent=43 // pred_region
          %p259 = scmp.lt.s32.totalorder %s17, 1
          %s260 = scalar_select %p259, %s17, 1
          %s261 = smul.addr %s260, 36
          %s262 = smul.addr %s261, 4
          %s263 = scalar_lea.vmem %s0, %s262
        $region48: #{tpu_custom_call.1} parent=43 // pred_fallthru
          _
      $region44: #{tpu_custom_call.1} parent=5 // pred_fallthru
        _
      %p264 = scmp.le.s32.totalorder 1, %s17
      %p265 = scmp.lt.s32.totalorder %s17, 3
      %p266 = pnand %p264, %p265
      %p267 = pneg %p266
      // Predicated region
      $region49: #{tpu_custom_call.1} parent=5 // pred_check
        _
      $region50: #{tpu_custom_call.1} parent=5 // pred_check_branch
        %269 = sbr.rel (%p266) target = $region52
      $region51: #{tpu_custom_call.1} parent=5 // pred_region
        %s270 = ssub.s32 %s17, 1
        %p271 = scmp.lt.s32.totalorder %s22, 1
        %s272 = scalar_select %p271, %s22, 1
        %s273 = smul.addr %s272, 36
        %s274 = smul.addr %s273, 4
        %s275 = scalar_lea.vmem %s0, %s274
        %p276 = pneg %p43
        %p277 = pneg %p40
        %p278 = pneg %p64
        %p279 = pneg %p61
        %p280 = pneg %p85
        %p281 = pneg %p82
        %p282 = pneg %p106
        %p283 = pneg %p103
        %p284 = pneg %p127
        %p285 = pneg %p124
        %p286 = pneg %p148
        %p287 = pneg %p145
        %p288 = pneg %p169
        %p289 = pneg %p166
        %p290 = pneg %p190
        %p291 = pneg %p187
        %p292 = pneg %p216
        %p293 = pneg %p213
        %s294 = sand.u32 %s203, 1
        %s295 = scalar_lea.sflag [#allocation7], %s294
        %s296 = sand.u32 %s203, 1
        %s297 = smul.addr %s296, 8
        %s298 = scalar_lea.vmem [#allocation6], %s297
        %p299 = scmp.lt.s32.totalorder %s22, 1
        %s300 = scalar_select %p299, %s22, 1
        %s301 = smul.addr %s300, 36
        %s302 = smul.addr %s301, 4
        %s303 = scalar_lea.vmem %s0, %s302
        %v305 = vld [vmem:[%s303] sm:$0xf]
        %v306 = vld [vmem:[%s303 + $0x4] sm:$0x1]
        %v307 = vld [vmem:[%s303 + $0x8] sm:$0xf]
        %v308 = vld [vmem:[%s303 + $0xc] sm:$0x1]
        %v309 = vld [vmem:[%s303 + $0x10] sm:$0xf]
        %v310 = vld [vmem:[%s303 + $0x14] sm:$0x1]
        %v311 = vld [vmem:[%s303 + $0x18] sm:$0xf]
        %v312 = vld [vmem:[%s303 + $0x1c] sm:$0x1]
        %v313 = vld [vmem:[%s303 + $0x20] sm:$0xf]
        %v314 = vld [vmem:[%s303 + $0x24] sm:$0x1]
        %v315 = vld [vmem:[%s303 + $0x28] sm:$0xf]
        %v316 = vld [vmem:[%s303 + $0x2c] sm:$0x1]
        %v317 = vld [vmem:[%s303 + $0x30] sm:$0xf]
        %v318 = vld [vmem:[%s303 + $0x34] sm:$0x1]
        %v319 = vld [vmem:[%s303 + $0x38] sm:$0xf]
        %v320 = vld [vmem:[%s303 + $0x3c] sm:$0x1]
        %v321 = vld [vmem:[%s303 + $0x40] sm:$0xf]
        %v322 = vld [vmem:[%s303 + $0x44] sm:$0x1]
        %v323 = vld [vmem:[%s303 + $0x48] sm:$0xf]
        %v324 = vld [vmem:[%s303 + $0x4c] sm:$0x1]
        %v325 = vld [vmem:[%s303 + $0x50] sm:$0xf]
        %v326 = vld [vmem:[%s303 + $0x54] sm:$0x1]
        %v327 = vld [vmem:[%s303 + $0x58] sm:$0xf]
        %v328 = vld [vmem:[%s303 + $0x5c] sm:$0x1]
        %v329 = vld [vmem:[%s303 + $0x60] sm:$0xf]
        %v330 = vld [vmem:[%s303 + $0x64] sm:$0x1]
        %v331 = vld [vmem:[%s303 + $0x68] sm:$0xf]
        %v332 = vld [vmem:[%s303 + $0x6c] sm:$0x1]
        %v333 = vld [vmem:[%s303 + $0x70] sm:$0xf]
        %v334 = vld [vmem:[%s303 + $0x74] sm:$0x1]
        %v335 = vld [vmem:[%s303 + $0x78] sm:$0xf]
        %v336 = vld [vmem:[%s303 + $0x7c] sm:$0x1]
        %v337 = vld [vmem:[%s303 + $0x80] sm:$0xf]
        %v338 = vld [vmem:[%s303 + $0x84] sm:$0x1]
        %v339 = vld [vmem:[%s303 + $0x88] sm:$0xf]
        %v340 = vld [vmem:[%s303 + $0x8c] sm:$0x1]
        %vm341 = vcmask 60416
        %342 = vst.msk [vmem:[#allocation4] sm:$0xf] %vm341, %v305
        %343 = vst.msk [vmem:[#allocation4 + $0x4] sm:$0xf] %vm341, %v309
        %344 = vst.msk [vmem:[#allocation4 + $0x8] sm:$0xf] %vm341, %v313
        %345 = vst.msk [vmem:[#allocation4 + $0xc] sm:$0xf] %vm341, %v317
        %346 = vst.msk [vmem:[#allocation4 + $0x10] sm:$0xf] %vm341, %v321
        %347 = vst.msk [vmem:[#allocation4 + $0x14] sm:$0xf] %vm341, %v325
        %348 = vst.msk [vmem:[#allocation4 + $0x18] sm:$0xf] %vm341, %v329
        %349 = vst.msk [vmem:[#allocation4 + $0x1c] sm:$0xf] %vm341, %v333
        %vm350 = vsmask.f32 3328
        %vm351 = vsmask.f32 7440
        %vm352 = vmor %vm350, %vm351
        %v354 = vshrl.u32 %v305, 16
        %v356 = vrot.slane %v354, 4
        %v357 = vshll.u32 %v305, 16
        %v359 = vrot.slane %v357, 5
        %v360 = vor.u32 %v356, %v359
        %v361 = vrot.slane %v360, 4
        %v363 = vshll.u32 %v306, 16
        %v365 = vrot.slane %v363, 5
        %v366 = vsel %vm352, %v361, %v365
        %v368 = vshrl.u32 %v309, 16
        %v370 = vrot.slane %v368, 4
        %v371 = vshll.u32 %v309, 16
        %v373 = vrot.slane %v371, 5
        %v374 = vor.u32 %v370, %v373
        %v375 = vrot.slane %v374, 4
        %v377 = vshll.u32 %v310, 16
        %v379 = vrot.slane %v377, 5
        %v380 = vsel %vm352, %v375, %v379
        %v382 = vshrl.u32 %v313, 16
        %v384 = vrot.slane %v382, 4
        %v385 = vshll.u32 %v313, 16
        %v387 = vrot.slane %v385, 5
        %v388 = vor.u32 %v384, %v387
        %v389 = vrot.slane %v388, 4
        %v391 = vshll.u32 %v314, 16
        %v393 = vrot.slane %v391, 5
        %v394 = vsel %vm352, %v389, %v393
        %v396 = vshrl.u32 %v317, 16
        %v398 = vrot.slane %v396, 4
        %v399 = vshll.u32 %v317, 16
        %v401 = vrot.slane %v399, 5
        %v402 = vor.u32 %v398, %v401
        %v403 = vrot.slane %v402, 4
        %v405 = vshll.u32 %v318, 16
        %v407 = vrot.slane %v405, 5
        %v408 = vsel %vm352, %v403, %v407
        %v410 = vshrl.u32 %v321, 16
        %v412 = vrot.slane %v410, 4
        %v413 = vshll.u32 %v321, 16
        %v415 = vrot.slane %v413, 5
        %v416 = vor.u32 %v412, %v415
        %v417 = vrot.slane %v416, 4
        %v419 = vshll.u32 %v322, 16
        %v421 = vrot.slane %v419, 5
        %v422 = vsel %vm352, %v417, %v421
        %v424 = vshrl.u32 %v325, 16
        %v426 = vrot.slane %v424, 4
        %v427 = vshll.u32 %v325, 16
        %v429 = vrot.slane %v427, 5
        %v430 = vor.u32 %v426, %v429
        %v431 = vrot.slane %v430, 4
        %v433 = vshll.u32 %v326, 16
        %v435 = vrot.slane %v433, 5
        %v436 = vsel %vm352, %v431, %v435
        %v438 = vshrl.u32 %v329, 16
        %v440 = vrot.slane %v438, 4
        %v441 = vshll.u32 %v329, 16
        %v443 = vrot.slane %v441, 5
        %v444 = vor.u32 %v440, %v443
        %v445 = vrot.slane %v444, 4
        %v447 = vshll.u32 %v330, 16
        %v449 = vrot.slane %v447, 5
        %v450 = vsel %vm352, %v445, %v449
        %v452 = vshrl.u32 %v333, 16
        %v454 = vrot.slane %v452, 4
        %v455 = vshll.u32 %v333, 16
        %v457 = vrot.slane %v455, 5
        %v458 = vor.u32 %v454, %v457
        %v459 = vrot.slane %v458, 4
        %v461 = vshll.u32 %v334, 16
        %v463 = vrot.slane %v461, 5
        %v464 = vsel %vm352, %v459, %v463
        %465 = vrot.lane.b32.xlu0 %v366, 8
        %v466 = vpop.permute.xlu0 %465
        %467 = vrot.lane.b32.xlu0 %v380, 8
        %v468 = vpop.permute.xlu0 %467
        %469 = vrot.lane.b32.xlu0 %v394, 8
        %v470 = vpop.permute.xlu0 %469
        %471 = vrot.lane.b32.xlu0 %v408, 8
        %v472 = vpop.permute.xlu0 %471
        %473 = vrot.lane.b32.xlu0 %v422, 8
        %v474 = vpop.permute.xlu0 %473
        %475 = vrot.lane.b32.xlu0 %v436, 8
        %v476 = vpop.permute.xlu0 %475
        %477 = vrot.lane.b32.xlu0 %v450, 8
        %v478 = vpop.permute.xlu0 %477
        %479 = vrot.lane.b32.xlu0 %v464, 8
        %v480 = vpop.permute.xlu0 %479
        %vm489 = vcmask 126016
        %490 = vst.msk [vmem:[#allocation4] sm:$0xf] %vm489, %v466
        %491 = vst.msk [vmem:[#allocation4 + $0x4] sm:$0xf] %vm489, %v468
        %492 = vst.msk [vmem:[#allocation4 + $0x8] sm:$0xf] %vm489, %v470
        %493 = vst.msk [vmem:[#allocation4 + $0xc] sm:$0xf] %vm489, %v472
        %494 = vst.msk [vmem:[#allocation4 + $0x10] sm:$0xf] %vm489, %v474
        %495 = vst.msk [vmem:[#allocation4 + $0x14] sm:$0xf] %vm489, %v476
        %496 = vst.msk [vmem:[#allocation4 + $0x18] sm:$0xf] %vm489, %v478
        %497 = vst.msk [vmem:[#allocation4 + $0x1c] sm:$0xf] %vm489, %v480
        %506 = vrot.lane.b32.xlu0 %v307, 16
        %v507 = vpop.permute.xlu0 %506
        %508 = vrot.lane.b32.xlu0 %v311, 16
        %v509 = vpop.permute.xlu0 %508
        %510 = vrot.lane.b32.xlu0 %v315, 16
        %v511 = vpop.permute.xlu0 %510
        %512 = vrot.lane.b32.xlu0 %v319, 16
        %v513 = vpop.permute.xlu0 %512
        %514 = vrot.lane.b32.xlu0 %v323, 16
        %v515 = vpop.permute.xlu0 %514
        %516 = vrot.lane.b32.xlu0 %v327, 16
        %v517 = vpop.permute.xlu0 %516
        %518 = vrot.lane.b32.xlu0 %v331, 16
        %v519 = vpop.permute.xlu0 %518
        %520 = vrot.lane.b32.xlu0 %v335, 16
        %v521 = vpop.permute.xlu0 %520
        %vm530 = vcmask 191616
        %531 = vst.msk [vmem:[#allocation4] sm:$0xf] %vm530, %v507
        %532 = vst.msk [vmem:[#allocation4 + $0x4] sm:$0xf] %vm530, %v509
        %533 = vst.msk [vmem:[#allocation4 + $0x8] sm:$0xf] %vm530, %v511
        %534 = vst.msk [vmem:[#allocation4 + $0xc] sm:$0xf] %vm530, %v513
        %535 = vst.msk [vmem:[#allocation4 + $0x10] sm:$0xf] %vm530, %v515
        %536 = vst.msk [vmem:[#allocation4 + $0x14] sm:$0xf] %vm530, %v517
        %537 = vst.msk [vmem:[#allocation4 + $0x18] sm:$0xf] %vm530, %v519
        %538 = vst.msk [vmem:[#allocation4 + $0x1c] sm:$0xf] %vm530, %v521
        %v540 = vshrl.u32 %v307, 16
        %v542 = vrot.slane %v540, 4
        %v543 = vshll.u32 %v307, 16
        %v545 = vrot.slane %v543, 5
        %v546 = vor.u32 %v542, %v545
        %v547 = vrot.slane %v546, 4
        %v549 = vshll.u32 %v308, 16
        %v551 = vrot.slane %v549, 5
        %v552 = vsel %vm352, %v547, %v551
        %v554 = vshrl.u32 %v311, 16
        %v556 = vrot.slane %v554, 4
        %v557 = vshll.u32 %v311, 16
        %v559 = vrot.slane %v557, 5
        %v560 = vor.u32 %v556, %v559
        %v561 = vrot.slane %v560, 4
        %v563 = vshll.u32 %v312, 16
        %v565 = vrot.slane %v563, 5
        %v566 = vsel %vm352, %v561, %v565
        %v568 = vshrl.u32 %v315, 16
        %v570 = vrot.slane %v568, 4
        %v571 = vshll.u32 %v315, 16
        %v573 = vrot.slane %v571, 5
        %v574 = vor.u32 %v570, %v573
        %v575 = vrot.slane %v574, 4
        %v577 = vshll.u32 %v316, 16
        %v579 = vrot.slane %v577, 5
        %v580 = vsel %vm352, %v575, %v579
        %v582 = vshrl.u32 %v319, 16
        %v584 = vrot.slane %v582, 4
        %v585 = vshll.u32 %v319, 16
        %v587 = vrot.slane %v585, 5
        %v588 = vor.u32 %v584, %v587
        %v589 = vrot.slane %v588, 4
        %v591 = vshll.u32 %v320, 16
        %v593 = vrot.slane %v591, 5
        %v594 = vsel %vm352, %v589, %v593
        %v596 = vshrl.u32 %v323, 16
        %v598 = vrot.slane %v596, 4
        %v599 = vshll.u32 %v323, 16
        %v601 = vrot.slane %v599, 5
        %v602 = vor.u32 %v598, %v601
        %v603 = vrot.slane %v602, 4
        %v605 = vshll.u32 %v324, 16
        %v607 = vrot.slane %v605, 5
        %v608 = vsel %vm352, %v603, %v607
        %v610 = vshrl.u32 %v327, 16
        %v612 = vrot.slane %v610, 4
        %v613 = vshll.u32 %v327, 16
        %v615 = vrot.slane %v613, 5
        %v616 = vor.u32 %v612, %v615
        %v617 = vrot.slane %v616, 4
        %v619 = vshll.u32 %v328, 16
        %v621 = vrot.slane %v619, 5
        %v622 = vsel %vm352, %v617, %v621
        %v624 = vshrl.u32 %v331, 16
        %v626 = vrot.slane %v624, 4
        %v627 = vshll.u32 %v331, 16
        %v629 = vrot.slane %v627, 5
        %v630 = vor.u32 %v626, %v629
        %v631 = vrot.slane %v630, 4
        %v633 = vshll.u32 %v332, 16
        %v635 = vrot.slane %v633, 5
        %v636 = vsel %vm352, %v631, %v635
        %v638 = vshrl.u32 %v335, 16
        %v640 = vrot.slane %v638, 4
        %v641 = vshll.u32 %v335, 16
        %v643 = vrot.slane %v641, 5
        %v644 = vor.u32 %v640, %v643
        %v645 = vrot.slane %v644, 4
        %v647 = vshll.u32 %v336, 16
        %v649 = vrot.slane %v647, 5
        %v650 = vsel %vm352, %v645, %v649
        %651 = vrot.lane.b32.xlu0 %v552, 24
        %v652 = vpop.permute.xlu0 %651
        %653 = vrot.lane.b32.xlu0 %v566, 24
        %v654 = vpop.permute.xlu0 %653
        %655 = vrot.lane.b32.xlu0 %v580, 24
        %v656 = vpop.permute.xlu0 %655
        %657 = vrot.lane.b32.xlu0 %v594, 24
        %v658 = vpop.permute.xlu0 %657
        %659 = vrot.lane.b32.xlu0 %v608, 24
        %v660 = vpop.permute.xlu0 %659
        %661 = vrot.lane.b32.xlu0 %v622, 24
        %v662 = vpop.permute.xlu0 %661
        %663 = vrot.lane.b32.xlu0 %v636, 24
        %v664 = vpop.permute.xlu0 %663
        %665 = vrot.lane.b32.xlu0 %v650, 24
        %v666 = vpop.permute.xlu0 %665
        %vm675 = vcmask 257216
        %676 = vst.msk [vmem:[#allocation4] sm:$0xf] %vm675, %v652
        %677 = vst.msk [vmem:[#allocation4 + $0x4] sm:$0xf] %vm675, %v654
        %678 = vst.msk [vmem:[#allocation4 + $0x8] sm:$0xf] %vm675, %v656
        %679 = vst.msk [vmem:[#allocation4 + $0xc] sm:$0xf] %vm675, %v658
        %680 = vst.msk [vmem:[#allocation4 + $0x10] sm:$0xf] %vm675, %v660
        %681 = vst.msk [vmem:[#allocation4 + $0x14] sm:$0xf] %vm675, %v662
        %682 = vst.msk [vmem:[#allocation4 + $0x18] sm:$0xf] %vm675, %v664
        %683 = vst.msk [vmem:[#allocation4 + $0x1c] sm:$0xf] %vm675, %v666
        %692 = vrot.lane.b32.xlu0 %v309, 32
        %v693 = vpop.permute.xlu0 %692
        %694 = vrot.lane.b32.xlu0 %v313, 32
        %v695 = vpop.permute.xlu0 %694
        %696 = vrot.lane.b32.xlu0 %v317, 32
        %v697 = vpop.permute.xlu0 %696
        %698 = vrot.lane.b32.xlu0 %v321, 32
        %v699 = vpop.permute.xlu0 %698
        %700 = vrot.lane.b32.xlu0 %v325, 32
        %v701 = vpop.permute.xlu0 %700
        %702 = vrot.lane.b32.xlu0 %v329, 32
        %v703 = vpop.permute.xlu0 %702
        %704 = vrot.lane.b32.xlu0 %v333, 32
        %v705 = vpop.permute.xlu0 %704
        %706 = vrot.lane.b32.xlu0 %v337, 32
        %v707 = vpop.permute.xlu0 %706
        %vm716 = vcmask 322816
        %717 = vst.msk [vmem:[#allocation4] sm:$0xf] %vm716, %v693
        %718 = vst.msk [vmem:[#allocation4 + $0x4] sm:$0xf] %vm716, %v695
        %719 = vst.msk [vmem:[#allocation4 + $0x8] sm:$0xf] %vm716, %v697
        %720 = vst.msk [vmem:[#allocation4 + $0xc] sm:$0xf] %vm716, %v699
        %721 = vst.msk [vmem:[#allocation4 + $0x10] sm:$0xf] %vm716, %v701
        %722 = vst.msk [vmem:[#allocation4 + $0x14] sm:$0xf] %vm716, %v703
        %723 = vst.msk [vmem:[#allocation4 + $0x18] sm:$0xf] %vm716, %v705
        %724 = vst.msk [vmem:[#allocation4 + $0x1c] sm:$0xf] %vm716, %v707
        %v726 = vshrl.u32 %v337, 16
        %v728 = vrot.slane %v726, 4
        %v729 = vshll.u32 %v337, 16
        %v731 = vrot.slane %v729, 5
        %v732 = vor.u32 %v728, %v731
        %v733 = vrot.slane %v732, 4
        %v735 = vshll.u32 %v338, 16
        %v737 = vrot.slane %v735, 5
        %v738 = vsel %vm352, %v733, %v737
        %739 = vrot.lane.b32.xlu0 %v380, 40
        %v740 = vpop.permute.xlu0 %739
        %741 = vrot.lane.b32.xlu0 %v394, 40
        %v742 = vpop.permute.xlu0 %741
        %743 = vrot.lane.b32.xlu0 %v408, 40
        %v744 = vpop.permute.xlu0 %743
        %745 = vrot.lane.b32.xlu0 %v422, 40
        %v746 = vpop.permute.xlu0 %745
        %747 = vrot.lane.b32.xlu0 %v436, 40
        %v748 = vpop.permute.xlu0 %747
        %749 = vrot.lane.b32.xlu0 %v450, 40
        %v750 = vpop.permute.xlu0 %749
        %751 = vrot.lane.b32.xlu0 %v464, 40
        %v752 = vpop.permute.xlu0 %751
        %753 = vrot.lane.b32.xlu0 %v738, 40
        %v754 = vpop.permute.xlu0 %753
        %vm763 = vcmask 388416
        %764 = vst.msk [vmem:[#allocation4] sm:$0xf] %vm763, %v740
        %765 = vst.msk [vmem:[#allocation4 + $0x4] sm:$0xf] %vm763, %v742
        %766 = vst.msk [vmem:[#allocation4 + $0x8] sm:$0xf] %vm763, %v744
        %767 = vst.msk [vmem:[#allocation4 + $0xc] sm:$0xf] %vm763, %v746
        %768 = vst.msk [vmem:[#allocation4 + $0x10] sm:$0xf] %vm763, %v748
        %769 = vst.msk [vmem:[#allocation4 + $0x14] sm:$0xf] %vm763, %v750
        %770 = vst.msk [vmem:[#allocation4 + $0x18] sm:$0xf] %vm763, %v752
        %771 = vst.msk [vmem:[#allocation4 + $0x1c] sm:$0xf] %vm763, %v754
        %773 = vrot.lane.b32.xlu0 %v311, 48
        %v774 = vpop.permute.xlu0 %773
        %775 = vrot.lane.b32.xlu0 %v315, 48
        %v776 = vpop.permute.xlu0 %775
        %777 = vrot.lane.b32.xlu0 %v319, 48
        %v778 = vpop.permute.xlu0 %777
        %779 = vrot.lane.b32.xlu0 %v323, 48
        %v780 = vpop.permute.xlu0 %779
        %781 = vrot.lane.b32.xlu0 %v327, 48
        %v782 = vpop.permute.xlu0 %781
        %783 = vrot.lane.b32.xlu0 %v331, 48
        %v784 = vpop.permute.xlu0 %783
        %785 = vrot.lane.b32.xlu0 %v335, 48
        %v786 = vpop.permute.xlu0 %785
        %787 = vrot.lane.b32.xlu0 %v339, 48
        %v788 = vpop.permute.xlu0 %787
        %vm797 = vcmask 454016
        %798 = vst.msk [vmem:[#allocation4] sm:$0xf] %vm797, %v774
        %799 = vst.msk [vmem:[#allocation4 + $0x4] sm:$0xf] %vm797, %v776
        %800 = vst.msk [vmem:[#allocation4 + $0x8] sm:$0xf] %vm797, %v778
        %801 = vst.msk [vmem:[#allocation4 + $0xc] sm:$0xf] %vm797, %v780
        %802 = vst.msk [vmem:[#allocation4 + $0x10] sm:$0xf] %vm797, %v782
        %803 = vst.msk [vmem:[#allocation4 + $0x14] sm:$0xf] %vm797, %v784
        %804 = vst.msk [vmem:[#allocation4 + $0x18] sm:$0xf] %vm797, %v786
        %805 = vst.msk [vmem:[#allocation4 + $0x1c] sm:$0xf] %vm797, %v788
        %v807 = vshrl.u32 %v339, 16
        %v809 = vrot.slane %v807, 4
        %v810 = vshll.u32 %v339, 16
        %v812 = vrot.slane %v810, 5
        %v813 = vor.u32 %v809, %v812
        %v814 = vrot.slane %v813, 4
        %v816 = vshll.u32 %v340, 16
        %v818 = vrot.slane %v816, 5
        %v819 = vsel %vm352, %v814, %v818
        %820 = vrot.lane.b32.xlu0 %v566, 56
        %v821 = vpop.permute.xlu0 %820
        %822 = vrot.lane.b32.xlu0 %v580, 56
        %v823 = vpop.permute.xlu0 %822
        %824 = vrot.lane.b32.xlu0 %v594, 56
        %v825 = vpop.permute.xlu0 %824
        %826 = vrot.lane.b32.xlu0 %v608, 56
        %v827 = vpop.permute.xlu0 %826
        %828 = vrot.lane.b32.xlu0 %v622, 56
        %v829 = vpop.permute.xlu0 %828
        %830 = vrot.lane.b32.xlu0 %v636, 56
        %v831 = vpop.permute.xlu0 %830
        %832 = vrot.lane.b32.xlu0 %v650, 56
        %v833 = vpop.permute.xlu0 %832
        %834 = vrot.lane.b32.xlu0 %v819, 56
        %v835 = vpop.permute.xlu0 %834
        %vm844 = vcmask 519616
        %845 = vst.msk [vmem:[#allocation4] sm:$0xf] %vm844, %v821
        %846 = vst.msk [vmem:[#allocation4 + $0x4] sm:$0xf] %vm844, %v823
        %847 = vst.msk [vmem:[#allocation4 + $0x8] sm:$0xf] %vm844, %v825
        %848 = vst.msk [vmem:[#allocation4 + $0xc] sm:$0xf] %vm844, %v827
        %849 = vst.msk [vmem:[#allocation4 + $0x10] sm:$0xf] %vm844, %v829
        %850 = vst.msk [vmem:[#allocation4 + $0x14] sm:$0xf] %vm844, %v831
        %851 = vst.msk [vmem:[#allocation4 + $0x18] sm:$0xf] %vm844, %v833
        %852 = vst.msk [vmem:[#allocation4 + $0x1c] sm:$0xf] %vm844, %v835
        %v853 = vld [vmem:[#allocation4] sm:$0xf]
        %v854 = vld [vmem:[#allocation4 + $0x4] sm:$0xf]
        %v855 = vld [vmem:[#allocation4 + $0x8] sm:$0xf]
        %v856 = vld [vmem:[#allocation4 + $0xc] sm:$0xf]
        %v857 = vld [vmem:[#allocation4 + $0x10] sm:$0xf]
        %v858 = vld [vmem:[#allocation4 + $0x14] sm:$0xf]
        %v859 = vld [vmem:[#allocation4 + $0x18] sm:$0xf]
        %v860 = vld [vmem:[#allocation4 + $0x1c] sm:$0xf]
        %v861 = vld [vmem:[%s1] sm:$0xf]
        %v862 = vld [vmem:[%s1 + $0x4] sm:$0xf]
        %v863 = vld [vmem:[%s1 + $0x8] sm:$0xf]
        %v864 = vld [vmem:[%s1 + $0xc] sm:$0xf]
        %v865 = vld [vmem:[%s1 + $0x10] sm:$0xf]
        %v866 = vld [vmem:[%s1 + $0x14] sm:$0xf]
        %v867 = vld [vmem:[%s1 + $0x18] sm:$0xf]
        %v868 = vld [vmem:[%s1 + $0x1c] sm:$0xf]
        %v869 = vld [vmem:[%s2] sm:$0x1]
        %v871 = vlaneseq
        %v872 = vshrl.u32 %v871, 7
        %v873 = vsub.s32 0, %v872
        %v874 = vrot.slane %v869, %v873
        %v884 = vunpack.c.l.b16 %v853
        %v885 = vunpack.c.l.b16 %v854
        %v886 = vunpack.c.l.b16 %v855
        %v887 = vunpack.c.l.b16 %v856
        %v888 = vunpack.c.l.b16 %v857
        %v889 = vunpack.c.l.b16 %v858
        %v890 = vunpack.c.l.b16 %v859
        %v891 = vunpack.c.l.b16 %v860
        %v892 = vpack.c.b16 %v885, %v884
        %v893 = vpack.c.b16 %v887, %v886
        %v894 = vpack.c.b16 %v889, %v888
        %v895 = vpack.c.b16 %v891, %v890
        %v904 = vunpack.c.l.b16 %v861
        %v905 = vunpack.c.l.b16 %v862
        %v906 = vunpack.c.l.b16 %v863
        %v907 = vunpack.c.l.b16 %v864
        %v908 = vunpack.c.l.b16 %v865
        %v909 = vunpack.c.l.b16 %v866
        %v910 = vunpack.c.l.b16 %v867
        %v911 = vunpack.c.l.b16 %v868
        %v912 = vpack.c.b16 %v905, %v904
        %v913 = vpack.c.b16 %v907, %v906
        %v914 = vpack.c.b16 %v909, %v908
        %v915 = vpack.c.b16 %v911, %v910
        %vm920 = vcmask 523264
        %v922 = vsel %vm920, %v892, 0
        %v925 = vsel %vm920, %v893, 0
        %v928 = vsel %vm920, %v894, 0
        %v931 = vsel %vm920, %v895, 0
        %933 = vmatprep.subr.bf16.mxu0 0
        %934 = vmatpush1.bf16.msra.mxu0 0
        %935 = vmatprep.subr.bf16.mxu0 0
        %936 = vmatpush1.bf16.msra.mxu0 0
        %937 = vmatprep.subr.bf16.mxu0 0
        %938 = vmatpush1.bf16.msra.mxu0 0
        %939 = vmatprep.subr.bf16.mxu0 0
        %940 = vmatpush1.bf16.msra.mxu0 0
        %941 = vmatprep.subr.bf16.mxu0 0
        %942 = vmatpush1.bf16.msra.mxu0 %v915
        %943 = vmatprep.subr.bf16.mxu0 0
        %944 = vmatpush1.bf16.msra.mxu0 %v914
        %945 = vmatprep.subr.bf16.mxu0 0
        %946 = vmatpush1.bf16.msra.mxu0 %v913
        %947 = vmatprep.subr.bf16.mxu0 0
        %948 = vmatpush1.bf16.msra.mxu0 %v912
        %949 = vmatprep.subr.bf16.mxu0 0
        %950 = vmatpush2.bf16.msra.mxu0 0
        %951 = vmatprep.subr.bf16.mxu0 0
        %952 = vmatpush2.bf16.msra.mxu0 0
        %953 = vmatprep.subr.bf16.mxu0 0
        %954 = vmatpush2.bf16.msra.mxu0 0
        %955 = vmatprep.subr.bf16.mxu0 0
        %956 = vmatpush2.bf16.msra.mxu0 0
        %957 = vmatprep.subr.bf16.mxu0 0
        %958 = vmatpush2.bf16.msra.mxu0 0
        %959 = vmatprep.subr.bf16.mxu0 0
        %960 = vmatpush2.bf16.msra.mxu0 0
        %961 = vmatprep.subr.bf16.mxu0 0
        %962 = vmatpush2.bf16.msra.mxu0 0
        %963 = vmatprep.subr.bf16.mxu0 0
        %964 = vmatpush2.bf16.msra.mxu0 0
        %965 = vmatprep.mubr.bf16.mxu0 0
        %966 = vmatmul.mubr.bf16.gmra.mxu0 %v922
        %v967 = vpop.f32.mrf.mxu0
        %v968 = vadd.f32 %v874, %v967
        %v969 = vpop.f32.mrf.mxu0
        %v970 = vpop.f32.mrf.mxu0
        %v971 = vadd.f32 %v874, %v970
        %v972 = vpop.f32.mrf.mxu0
        %973 = vmatprep.mubr.bf16.mxu0 0
        %974 = vmatmul.mubr.bf16.gmra.mxu0 %v925
        %v975 = vpop.f32.mrf.mxu0
        %v976 = vadd.f32 %v874, %v975
        %v977 = vpop.f32.mrf.mxu0
        %v978 = vpop.f32.mrf.mxu0
        %v979 = vadd.f32 %v874, %v978
        %v980 = vpop.f32.mrf.mxu0
        %981 = vmatprep.mubr.bf16.mxu0 0
        %982 = vmatmul.mubr.bf16.gmra.mxu0 %v928
        %v983 = vpop.f32.mrf.mxu0
        %v984 = vadd.f32 %v874, %v983
        %v985 = vpop.f32.mrf.mxu0
        %v986 = vpop.f32.mrf.mxu0
        %v987 = vadd.f32 %v874, %v986
        %v988 = vpop.f32.mrf.mxu0
        %989 = vmatprep.mubr.bf16.mxu0 0
        %990 = vmatmul.mubr.bf16.gmra.mxu0 %v931
        %v991 = vpop.f32.mrf.mxu0
        %v992 = vadd.f32 %v874, %v991
        %v993 = vpop.f32.mrf.mxu0
        %v994 = vpop.f32.mrf.mxu0
        %v995 = vadd.f32 %v874, %v994
        %v996 = vpop.f32.mrf.mxu0
        %997 = vdwg.mxu0
        %v998 = vpack.c.bf16 %v971, %v968
        %v999 = vpack.c.bf16 %v979, %v976
        %v1000 = vpack.c.bf16 %v987, %v984
        %v1001 = vpack.c.bf16 %v995, %v992
        %1002 = vst.msk [vmem:[#allocation2] sm:$0xf] %vm341, 0
        %vm1003 = vcmask 57344
        %1004 = vst.msk [vmem:[#allocation2 + $0x4] sm:$0x1] %vm1003, 0
        %1005 = vst.msk [vmem:[#allocation2 + $0x8] sm:$0xf] %vm341, 0
        %1006 = vst.msk [vmem:[#allocation2 + $0xc] sm:$0x1] %vm1003, 0
        %1007 = vst.msk [vmem:[#allocation2 + $0x10] sm:$0xf] %vm341, 0
        %1008 = vst.msk [vmem:[#allocation2 + $0x14] sm:$0x1] %vm1003, 0
        %1009 = vst.msk [vmem:[#allocation2 + $0x18] sm:$0xf] %vm341, 0
        %1010 = vst.msk [vmem:[#allocation2 + $0x1c] sm:$0x1] %vm1003, 0
        %1011 = vst.msk [vmem:[#allocation2 + $0x20] sm:$0xf] %vm341, 0
        %1012 = vst.msk [vmem:[#allocation2 + $0x24] sm:$0x1] %vm1003, 0
        %1013 = vst.msk [vmem:[#allocation2 + $0x28] sm:$0xf] %vm341, 0
        %1014 = vst.msk [vmem:[#allocation2 + $0x2c] sm:$0x1] %vm1003, 0
        %1015 = vst.msk [vmem:[#allocation2 + $0x30] sm:$0xf] %vm341, 0
        %1016 = vst.msk [vmem:[#allocation2 + $0x34] sm:$0x1] %vm1003, 0
        %1017 = vst.msk [vmem:[#allocation2 + $0x38] sm:$0xf] %vm341, 0
        %1018 = vst.msk [vmem:[#allocation2 + $0x3c] sm:$0x1] %vm1003, 0
        %1019 = vst.msk [vmem:[#allocation2 + $0x40] sm:$0xf] %vm341, 0
        %1020 = vst.msk [vmem:[#allocation2 + $0x44] sm:$0x1] %vm1003, 0
        %1021 = vst.msk [vmem:[#allocation2 + $0x48] sm:$0xf] %vm341, 0
        %1022 = vst.msk [vmem:[#allocation2 + $0x4c] sm:$0x1] %vm1003, 0
        %v1027 = vunpack.c.l.b16 %v998
        %v1028 = vunpack.c.h.b16 %v998
        %v1029 = vunpack.c.l.b16 %v999
        %v1030 = vunpack.c.h.b16 %v999
        %v1031 = vunpack.c.l.b16 %v1000
        %v1032 = vunpack.c.h.b16 %v1000
        %v1033 = vunpack.c.l.b16 %v1001
        %v1034 = vunpack.c.h.b16 %v1001
        %v1035 = vpack.c.b16 %v1027, %v1027
        %v1036 = vpack.c.b16 %v1028, %v1028
        %v1037 = vpack.c.b16 %v1029, %v1029
        %v1038 = vpack.c.b16 %v1030, %v1030
        %v1039 = vpack.c.b16 %v1031, %v1031
        %v1040 = vpack.c.b16 %v1032, %v1032
        %v1041 = vpack.c.b16 %v1033, %v1033
        %v1042 = vpack.c.b16 %v1034, %v1034
        %v1044 = vshrl.u32 %v1035, 16
        %v1046 = vrot.slane %v1044, 7
        %v1047 = vshll.u32 %v1035, 16
        %v1049 = vor.u32 %v1046, %v1047
        %v1050 = vrot.slane %v1046, 4
        %v1052 = vshrl.u32 %v1036, 16
        %v1054 = vrot.slane %v1052, 7
        %v1055 = vshll.u32 %v1036, 16
        %v1057 = vor.u32 %v1054, %v1055
        %v1058 = vrot.slane %v1054, 4
        %v1060 = vshrl.u32 %v1037, 16
        %v1062 = vrot.slane %v1060, 7
        %v1063 = vshll.u32 %v1037, 16
        %v1065 = vor.u32 %v1062, %v1063
        %v1066 = vrot.slane %v1062, 4
        %v1068 = vshrl.u32 %v1038, 16
        %v1070 = vrot.slane %v1068, 7
        %v1071 = vshll.u32 %v1038, 16
        %v1073 = vor.u32 %v1070, %v1071
        %v1074 = vrot.slane %v1070, 4
        %v1076 = vshrl.u32 %v1039, 16
        %v1078 = vrot.slane %v1076, 7
        %v1079 = vshll.u32 %v1039, 16
        %v1081 = vor.u32 %v1078, %v1079
        %v1082 = vrot.slane %v1078, 4
        %v1084 = vshrl.u32 %v1040, 16
        %v1086 = vrot.slane %v1084, 7
        %v1087 = vshll.u32 %v1040, 16
        %v1089 = vor.u32 %v1086, %v1087
        %v1090 = vrot.slane %v1086, 4
        %v1092 = vshrl.u32 %v1041, 16
        %v1094 = vrot.slane %v1092, 7
        %v1095 = vshll.u32 %v1041, 16
        %v1097 = vor.u32 %v1094, %v1095
        %v1098 = vrot.slane %v1094, 4
        %v1100 = vshrl.u32 %v1042, 16
        %v1102 = vrot.slane %v1100, 7
        %v1103 = vshll.u32 %v1042, 16
        %v1105 = vor.u32 %v1102, %v1103
        %v1106 = vrot.slane %v1102, 4
        %s1123 = scalar_lea.vmem [#allocation2], 8
        %vm1124 = vcmask 60416
        %vm1125 = vsmask.f32 7938
        %vm1126 = vmand %vm1124, %vm1125
        %v1127 = vld [vmem:[%s1123] sm:$0xf]
        %v1128 = vsel %vm1126, %v1049, %v1127
        %1129 = vst [vmem:[%s1123] sm:$0xf] %v1128
        %vm1130 = vcmask 57344
        %vm1131 = vsmask.f32 256
        %vm1132 = vmand %vm1130, %vm1131
        %v1133 = vld [vmem:[%s1123 + $0x4] sm:$0x1]
        %v1134 = vsel %vm1132, %v1050, %v1133
        %1135 = vst [vmem:[%s1123 + $0x4] sm:$0x1] %v1134
        %v1136 = vld [vmem:[%s1123 + $0x8] sm:$0xf]
        %v1137 = vsel %vm1126, %v1057, %v1136
        %1138 = vst [vmem:[%s1123 + $0x8] sm:$0xf] %v1137
        %v1139 = vld [vmem:[%s1123 + $0xc] sm:$0x1]
        %v1140 = vsel %vm1132, %v1058, %v1139
        %1141 = vst [vmem:[%s1123 + $0xc] sm:$0x1] %v1140
        %v1142 = vld [vmem:[%s1123 + $0x10] sm:$0xf]
        %v1143 = vsel %vm1126, %v1065, %v1142
        %1144 = vst [vmem:[%s1123 + $0x10] sm:$0xf] %v1143
        %v1145 = vld [vmem:[%s1123 + $0x14] sm:$0x1]
        %v1146 = vsel %vm1132, %v1066, %v1145
        %1147 = vst [vmem:[%s1123 + $0x14] sm:$0x1] %v1146
        %v1148 = vld [vmem:[%s1123 + $0x18] sm:$0xf]
        %v1149 = vsel %vm1126, %v1073, %v1148
        %1150 = vst [vmem:[%s1123 + $0x18] sm:$0xf] %v1149
        %v1151 = vld [vmem:[%s1123 + $0x1c] sm:$0x1]
        %v1152 = vsel %vm1132, %v1074, %v1151
        %1153 = vst [vmem:[%s1123 + $0x1c] sm:$0x1] %v1152
        %v1154 = vld [vmem:[%s1123 + $0x20] sm:$0xf]
        %v1155 = vsel %vm1126, %v1081, %v1154
        %1156 = vst [vmem:[%s1123 + $0x20] sm:$0xf] %v1155
        %v1157 = vld [vmem:[%s1123 + $0x24] sm:$0x1]
        %v1158 = vsel %vm1132, %v1082, %v1157
        %1159 = vst [vmem:[%s1123 + $0x24] sm:$0x1] %v1158
        %v1160 = vld [vmem:[%s1123 + $0x28] sm:$0xf]
        %v1161 = vsel %vm1126, %v1089, %v1160
        %1162 = vst [vmem:[%s1123 + $0x28] sm:$0xf] %v1161
        %v1163 = vld [vmem:[%s1123 + $0x2c] sm:$0x1]
        %v1164 = vsel %vm1132, %v1090, %v1163
        %1165 = vst [vmem:[%s1123 + $0x2c] sm:$0x1] %v1164
        %v1166 = vld [vmem:[%s1123 + $0x30] sm:$0xf]
        %v1167 = vsel %vm1126, %v1097, %v1166
        %1168 = vst [vmem:[%s1123 + $0x30] sm:$0xf] %v1167
        %v1169 = vld [vmem:[%s1123 + $0x34] sm:$0x1]
        %v1170 = vsel %vm1132, %v1098, %v1169
        %1171 = vst [vmem:[%s1123 + $0x34] sm:$0x1] %v1170
        %v1172 = vld [vmem:[%s1123 + $0x38] sm:$0xf]
        %v1173 = vsel %vm1126, %v1105, %v1172
        %1174 = vst [vmem:[%s1123 + $0x38] sm:$0xf] %v1173
        %v1175 = vld [vmem:[%s1123 + $0x3c] sm:$0x1]
        %v1176 = vsel %vm1132, %v1106, %v1175
        %1177 = vst [vmem:[%s1123 + $0x3c] sm:$0x1] %v1176
        %v1178 = vld [vmem:[#allocation2] sm:$0xf]
        %v1179 = vld [vmem:[#allocation2 + $0x8] sm:$0xf]
        %v1180 = vld [vmem:[#allocation2 + $0x10] sm:$0xf]
        %v1181 = vld [vmem:[#allocation2 + $0x18] sm:$0xf]
        %v1182 = vld [vmem:[#allocation2 + $0x20] sm:$0xf]
        %v1183 = vld [vmem:[#allocation2 + $0x28] sm:$0xf]
        %v1184 = vld [vmem:[#allocation2 + $0x30] sm:$0xf]
        %v1185 = vld [vmem:[#allocation2 + $0x38] sm:$0xf]
        %1186 = vst.msk [vmem:[#allocation5] sm:$0xf] %vm341, %v1178
        %1187 = vst.msk [vmem:[#allocation5 + $0x4] sm:$0xf] %vm341, %v1179
        %1188 = vst.msk [vmem:[#allocation5 + $0x8] sm:$0xf] %vm341, %v1180
        %1189 = vst.msk [vmem:[#allocation5 + $0xc] sm:$0xf] %vm341, %v1181
        %1190 = vst.msk [vmem:[#allocation5 + $0x10] sm:$0xf] %vm341, %v1182
        %1191 = vst.msk [vmem:[#allocation5 + $0x14] sm:$0xf] %vm341, %v1183
        %1192 = vst.msk [vmem:[#allocation5 + $0x18] sm:$0xf] %vm341, %v1184
        %1193 = vst.msk [vmem:[#allocation5 + $0x1c] sm:$0xf] %vm341, %v1185
        %v1194 = vld [vmem:[#allocation2] sm:$0xf]
        %v1195 = vld [vmem:[#allocation2 + $0x4] sm:$0x1]
        %v1196 = vld [vmem:[#allocation2 + $0x8] sm:$0xf]
        %v1197 = vld [vmem:[#allocation2 + $0xc] sm:$0x1]
        %v1198 = vld [vmem:[#allocation2 + $0x10] sm:$0xf]
        %v1199 = vld [vmem:[#allocation2 + $0x14] sm:$0x1]
        %v1200 = vld [vmem:[#allocation2 + $0x18] sm:$0xf]
        %v1201 = vld [vmem:[#allocation2 + $0x1c] sm:$0x1]
        %v1202 = vld [vmem:[#allocation2 + $0x20] sm:$0xf]
        %v1203 = vld [vmem:[#allocation2 + $0x24] sm:$0x1]
        %v1204 = vld [vmem:[#allocation2 + $0x28] sm:$0xf]
        %v1205 = vld [vmem:[#allocation2 + $0x2c] sm:$0x1]
        %v1206 = vld [vmem:[#allocation2 + $0x30] sm:$0xf]
        %v1207 = vld [vmem:[#allocation2 + $0x34] sm:$0x1]
        %v1208 = vld [vmem:[#allocation2 + $0x38] sm:$0xf]
        %v1209 = vld [vmem:[#allocation2 + $0x3c] sm:$0x1]
        %v1211 = vshrl.u32 %v1194, 16
        %v1213 = vrot.slane %v1211, 4
        %v1214 = vshll.u32 %v1194, 16
        %v1216 = vrot.slane %v1214, 5
        %v1217 = vor.u32 %v1213, %v1216
        %v1218 = vrot.slane %v1217, 4
        %v1220 = vshll.u32 %v1195, 16
        %v1222 = vrot.slane %v1220, 5
        %v1223 = vsel %vm352, %v1218, %v1222
        %v1225 = vshrl.u32 %v1196, 16
        %v1227 = vrot.slane %v1225, 4
        %v1228 = vshll.u32 %v1196, 16
        %v1230 = vrot.slane %v1228, 5
        %v1231 = vor.u32 %v1227, %v1230
        %v1232 = vrot.slane %v1231, 4
        %v1234 = vshll.u32 %v1197, 16
        %v1236 = vrot.slane %v1234, 5
        %v1237 = vsel %vm352, %v1232, %v1236
        %v1239 = vshrl.u32 %v1198, 16
        %v1241 = vrot.slane %v1239, 4
        %v1242 = vshll.u32 %v1198, 16
        %v1244 = vrot.slane %v1242, 5
        %v1245 = vor.u32 %v1241, %v1244
        %v1246 = vrot.slane %v1245, 4
        %v1248 = vshll.u32 %v1199, 16
        %v1250 = vrot.slane %v1248, 5
        %v1251 = vsel %vm352, %v1246, %v1250
        %v1253 = vshrl.u32 %v1200, 16
        %v1255 = vrot.slane %v1253, 4
        %v1256 = vshll.u32 %v1200, 16
        %v1258 = vrot.slane %v1256, 5
        %v1259 = vor.u32 %v1255, %v1258
        %v1260 = vrot.slane %v1259, 4
        %v1262 = vshll.u32 %v1201, 16
        %v1264 = vrot.slane %v1262, 5
        %v1265 = vsel %vm352, %v1260, %v1264
        %v1267 = vshrl.u32 %v1202, 16
        %v1269 = vrot.slane %v1267, 4
        %v1270 = vshll.u32 %v1202, 16
        %v1272 = vrot.slane %v1270, 5
        %v1273 = vor.u32 %v1269, %v1272
        %v1274 = vrot.slane %v1273, 4
        %v1276 = vshll.u32 %v1203, 16
        %v1278 = vrot.slane %v1276, 5
        %v1279 = vsel %vm352, %v1274, %v1278
        %v1281 = vshrl.u32 %v1204, 16
        %v1283 = vrot.slane %v1281, 4
        %v1284 = vshll.u32 %v1204, 16
        %v1286 = vrot.slane %v1284, 5
        %v1287 = vor.u32 %v1283, %v1286
        %v1288 = vrot.slane %v1287, 4
        %v1290 = vshll.u32 %v1205, 16
        %v1292 = vrot.slane %v1290, 5
        %v1293 = vsel %vm352, %v1288, %v1292
        %v1295 = vshrl.u32 %v1206, 16
        %v1297 = vrot.slane %v1295, 4
        %v1298 = vshll.u32 %v1206, 16
        %v1300 = vrot.slane %v1298, 5
        %v1301 = vor.u32 %v1297, %v1300
        %v1302 = vrot.slane %v1301, 4
        %v1304 = vshll.u32 %v1207, 16
        %v1306 = vrot.slane %v1304, 5
        %v1307 = vsel %vm352, %v1302, %v1306
        %v1309 = vshrl.u32 %v1208, 16
        %v1311 = vrot.slane %v1309, 4
        %v1312 = vshll.u32 %v1208, 16
        %v1314 = vrot.slane %v1312, 5
        %v1315 = vor.u32 %v1311, %v1314
        %v1316 = vrot.slane %v1315, 4
        %v1318 = vshll.u32 %v1209, 16
        %v1320 = vrot.slane %v1318, 5
        %v1321 = vsel %vm352, %v1316, %v1320
        %1322 = vrot.lane.b32.xlu0 %v1223, 8
        %v1323 = vpop.permute.xlu0 %1322
        %1324 = vrot.lane.b32.xlu0 %v1237, 8
        %v1325 = vpop.permute.xlu0 %1324
        %1326 = vrot.lane.b32.xlu0 %v1251, 8
        %v1327 = vpop.permute.xlu0 %1326
        %1328 = vrot.lane.b32.xlu0 %v1265, 8
        %v1329 = vpop.permute.xlu0 %1328
        %1330 = vrot.lane.b32.xlu0 %v1279, 8
        %v1331 = vpop.permute.xlu0 %1330
        %1332 = vrot.lane.b32.xlu0 %v1293, 8
        %v1333 = vpop.permute.xlu0 %1332
        %1334 = vrot.lane.b32.xlu0 %v1307, 8
        %v1335 = vpop.permute.xlu0 %1334
        %1336 = vrot.lane.b32.xlu0 %v1321, 8
        %v1337 = vpop.permute.xlu0 %1336
        %1346 = vst.msk [vmem:[#allocation5] sm:$0xf] %vm489, %v1323
        %1347 = vst.msk [vmem:[#allocation5 + $0x4] sm:$0xf] %vm489, %v1325
        %1348 = vst.msk [vmem:[#allocation5 + $0x8] sm:$0xf] %vm489, %v1327
        %1349 = vst.msk [vmem:[#allocation5 + $0xc] sm:$0xf] %vm489, %v1329
        %1350 = vst.msk [vmem:[#allocation5 + $0x10] sm:$0xf] %vm489, %v1331
        %1351 = vst.msk [vmem:[#allocation5 + $0x14] sm:$0xf] %vm489, %v1333
        %1352 = vst.msk [vmem:[#allocation5 + $0x18] sm:$0xf] %vm489, %v1335
        %1353 = vst.msk [vmem:[#allocation5 + $0x1c] sm:$0xf] %vm489, %v1337
        %v1354 = vld [vmem:[#allocation2] sm:$0xe]
        %v1355 = vld [vmem:[#allocation2 + $0x4] sm:$0x1]
        %v1356 = vld [vmem:[#allocation2 + $0x8] sm:$0xe]
        %v1357 = vld [vmem:[#allocation2 + $0xc] sm:$0x1]
        %v1358 = vld [vmem:[#allocation2 + $0x10] sm:$0xe]
        %v1359 = vld [vmem:[#allocation2 + $0x14] sm:$0x1]
        %v1360 = vld [vmem:[#allocation2 + $0x18] sm:$0xe]
        %v1361 = vld [vmem:[#allocation2 + $0x1c] sm:$0x1]
        %v1362 = vld [vmem:[#allocation2 + $0x20] sm:$0xe]
        %v1363 = vld [vmem:[#allocation2 + $0x24] sm:$0x1]
        %v1364 = vld [vmem:[#allocation2 + $0x28] sm:$0xe]
        %v1365 = vld [vmem:[#allocation2 + $0x2c] sm:$0x1]
        %v1366 = vld [vmem:[#allocation2 + $0x30] sm:$0xe]
        %v1367 = vld [vmem:[#allocation2 + $0x34] sm:$0x1]
        %v1368 = vld [vmem:[#allocation2 + $0x38] sm:$0xe]
        %v1369 = vld [vmem:[#allocation2 + $0x3c] sm:$0x1]
        %vm1386 = vcmask 1042432
        %vm1387 = vcmask 1046532
        %vm1388 = vmor %vm1386, %vm1387
        %v1389 = vrot.slane %v1354, 5
        %v1390 = vrot.slane %v1389, 4
        %v1391 = vrot.slane %v1355, 5
        %v1392 = vsel %vm1388, %v1390, %v1391
        %v1393 = vrot.slane %v1356, 5
        %v1394 = vrot.slane %v1393, 4
        %v1395 = vrot.slane %v1357, 5
        %v1396 = vsel %vm1388, %v1394, %v1395
        %v1397 = vrot.slane %v1358, 5
        %v1398 = vrot.slane %v1397, 4
        %v1399 = vrot.slane %v1359, 5
        %v1400 = vsel %vm1388, %v1398, %v1399
        %v1401 = vrot.slane %v1360, 5
        %v1402 = vrot.slane %v1401, 4
        %v1403 = vrot.slane %v1361, 5
        %v1404 = vsel %vm1388, %v1402, %v1403
        %v1405 = vrot.slane %v1362, 5
        %v1406 = vrot.slane %v1405, 4
        %v1407 = vrot.slane %v1363, 5
        %v1408 = vsel %vm1388, %v1406, %v1407
        %v1409 = vrot.slane %v1364, 5
        %v1410 = vrot.slane %v1409, 4
        %v1411 = vrot.slane %v1365, 5
        %v1412 = vsel %vm1388, %v1410, %v1411
        %v1413 = vrot.slane %v1366, 5
        %v1414 = vrot.slane %v1413, 4
        %v1415 = vrot.slane %v1367, 5
        %v1416 = vsel %vm1388, %v1414, %v1415
        %v1417 = vrot.slane %v1368, 5
        %v1418 = vrot.slane %v1417, 4
        %v1419 = vrot.slane %v1369, 5
        %v1420 = vsel %vm1388, %v1418, %v1419
        %1421 = vrot.lane.b32.xlu0 %v1392, 16
        %v1422 = vpop.permute.xlu0 %1421
        %1423 = vrot.lane.b32.xlu0 %v1396, 16
        %v1424 = vpop.permute.xlu0 %1423
        %1425 = vrot.lane.b32.xlu0 %v1400, 16
        %v1426 = vpop.permute.xlu0 %1425
        %1427 = vrot.lane.b32.xlu0 %v1404, 16
        %v1428 = vpop.permute.xlu0 %1427
        %1429 = vrot.lane.b32.xlu0 %v1408, 16
        %v1430 = vpop.permute.xlu0 %1429
        %1431 = vrot.lane.b32.xlu0 %v1412, 16
        %v1432 = vpop.permute.xlu0 %1431
        %1433 = vrot.lane.b32.xlu0 %v1416, 16
        %v1434 = vpop.permute.xlu0 %1433
        %1435 = vrot.lane.b32.xlu0 %v1420, 16
        %v1436 = vpop.permute.xlu0 %1435
        %1445 = vst.msk [vmem:[#allocation5] sm:$0xf] %vm530, %v1422
        %1446 = vst.msk [vmem:[#allocation5 + $0x4] sm:$0xf] %vm530, %v1424
        %1447 = vst.msk [vmem:[#allocation5 + $0x8] sm:$0xf] %vm530, %v1426
        %1448 = vst.msk [vmem:[#allocation5 + $0xc] sm:$0xf] %vm530, %v1428
        %1449 = vst.msk [vmem:[#allocation5 + $0x10] sm:$0xf] %vm530, %v1430
        %1450 = vst.msk [vmem:[#allocation5 + $0x14] sm:$0xf] %vm530, %v1432
        %1451 = vst.msk [vmem:[#allocation5 + $0x18] sm:$0xf] %vm530, %v1434
        %1452 = vst.msk [vmem:[#allocation5 + $0x1c] sm:$0xf] %vm530, %v1436
        %v1453 = vld [vmem:[%s1123] sm:$0xf]
        %v1454 = vld [vmem:[%s1123 + $0x8] sm:$0xf]
        %v1455 = vld [vmem:[%s1123 + $0x10] sm:$0xf]
        %v1456 = vld [vmem:[%s1123 + $0x18] sm:$0xf]
        %v1457 = vld [vmem:[%s1123 + $0x20] sm:$0xf]
        %v1458 = vld [vmem:[%s1123 + $0x28] sm:$0xf]
        %v1459 = vld [vmem:[%s1123 + $0x30] sm:$0xf]
        %v1460 = vld [vmem:[%s1123 + $0x38] sm:$0xf]
        %1469 = vrot.lane.b32.xlu0 %v1453, 24
        %v1470 = vpop.permute.xlu0 %1469
        %1471 = vrot.lane.b32.xlu0 %v1454, 24
        %v1472 = vpop.permute.xlu0 %1471
        %1473 = vrot.lane.b32.xlu0 %v1455, 24
        %v1474 = vpop.permute.xlu0 %1473
        %1475 = vrot.lane.b32.xlu0 %v1456, 24
        %v1476 = vpop.permute.xlu0 %1475
        %1477 = vrot.lane.b32.xlu0 %v1457, 24
        %v1478 = vpop.permute.xlu0 %1477
        %1479 = vrot.lane.b32.xlu0 %v1458, 24
        %v1480 = vpop.permute.xlu0 %1479
        %1481 = vrot.lane.b32.xlu0 %v1459, 24
        %v1482 = vpop.permute.xlu0 %1481
        %1483 = vrot.lane.b32.xlu0 %v1460, 24
        %v1484 = vpop.permute.xlu0 %1483
        %1493 = vst.msk [vmem:[#allocation5] sm:$0xf] %vm675, %v1470
        %1494 = vst.msk [vmem:[#allocation5 + $0x4] sm:$0xf] %vm675, %v1472
        %1495 = vst.msk [vmem:[#allocation5 + $0x8] sm:$0xf] %vm675, %v1474
        %1496 = vst.msk [vmem:[#allocation5 + $0xc] sm:$0xf] %vm675, %v1476
        %1497 = vst.msk [vmem:[#allocation5 + $0x10] sm:$0xf] %vm675, %v1478
        %1498 = vst.msk [vmem:[#allocation5 + $0x14] sm:$0xf] %vm675, %v1480
        %1499 = vst.msk [vmem:[#allocation5 + $0x18] sm:$0xf] %vm675, %v1482
        %1500 = vst.msk [vmem:[#allocation5 + $0x1c] sm:$0xf] %vm675, %v1484
        %v1501 = vld [vmem:[%s1123] sm:$0xf]
        %v1502 = vld [vmem:[%s1123 + $0x4] sm:$0x1]
        %v1503 = vld [vmem:[%s1123 + $0x8] sm:$0xf]
        %v1504 = vld [vmem:[%s1123 + $0xc] sm:$0x1]
        %v1505 = vld [vmem:[%s1123 + $0x10] sm:$0xf]
        %v1506 = vld [vmem:[%s1123 + $0x14] sm:$0x1]
        %v1507 = vld [vmem:[%s1123 + $0x18] sm:$0xf]
        %v1508 = vld [vmem:[%s1123 + $0x1c] sm:$0x1]
        %v1509 = vld [vmem:[%s1123 + $0x20] sm:$0xf]
        %v1510 = vld [vmem:[%s1123 + $0x24] sm:$0x1]
        %v1511 = vld [vmem:[%s1123 + $0x28] sm:$0xf]
        %v1512 = vld [vmem:[%s1123 + $0x2c] sm:$0x1]
        %v1513 = vld [vmem:[%s1123 + $0x30] sm:$0xf]
        %v1514 = vld [vmem:[%s1123 + $0x34] sm:$0x1]
        %v1515 = vld [vmem:[%s1123 + $0x38] sm:$0xf]
        %v1516 = vld [vmem:[%s1123 + $0x3c] sm:$0x1]
        %v1518 = vshrl.u32 %v1501, 16
        %v1520 = vrot.slane %v1518, 4
        %v1521 = vshll.u32 %v1501, 16
        %v1523 = vrot.slane %v1521, 5
        %v1524 = vor.u32 %v1520, %v1523
        %v1525 = vrot.slane %v1524, 4
        %v1527 = vshll.u32 %v1502, 16
        %v1529 = vrot.slane %v1527, 5
        %v1530 = vsel %vm352, %v1525, %v1529
        %v1532 = vshrl.u32 %v1503, 16
        %v1534 = vrot.slane %v1532, 4
        %v1535 = vshll.u32 %v1503, 16
        %v1537 = vrot.slane %v1535, 5
        %v1538 = vor.u32 %v1534, %v1537
        %v1539 = vrot.slane %v1538, 4
        %v1541 = vshll.u32 %v1504, 16
        %v1543 = vrot.slane %v1541, 5
        %v1544 = vsel %vm352, %v1539, %v1543
        %v1546 = vshrl.u32 %v1505, 16
        %v1548 = vrot.slane %v1546, 4
        %v1549 = vshll.u32 %v1505, 16
        %v1551 = vrot.slane %v1549, 5
        %v1552 = vor.u32 %v1548, %v1551
        %v1553 = vrot.slane %v1552, 4
        %v1555 = vshll.u32 %v1506, 16
        %v1557 = vrot.slane %v1555, 5
        %v1558 = vsel %vm352, %v1553, %v1557
        %v1560 = vshrl.u32 %v1507, 16
        %v1562 = vrot.slane %v1560, 4
        %v1563 = vshll.u32 %v1507, 16
        %v1565 = vrot.slane %v1563, 5
        %v1566 = vor.u32 %v1562, %v1565
        %v1567 = vrot.slane %v1566, 4
        %v1569 = vshll.u32 %v1508, 16
        %v1571 = vrot.slane %v1569, 5
        %v1572 = vsel %vm352, %v1567, %v1571
        %v1574 = vshrl.u32 %v1509, 16
        %v1576 = vrot.slane %v1574, 4
        %v1577 = vshll.u32 %v1509, 16
        %v1579 = vrot.slane %v1577, 5
        %v1580 = vor.u32 %v1576, %v1579
        %v1581 = vrot.slane %v1580, 4
        %v1583 = vshll.u32 %v1510, 16
        %v1585 = vrot.slane %v1583, 5
        %v1586 = vsel %vm352, %v1581, %v1585
        %v1588 = vshrl.u32 %v1511, 16
        %v1590 = vrot.slane %v1588, 4
        %v1591 = vshll.u32 %v1511, 16
        %v1593 = vrot.slane %v1591, 5
        %v1594 = vor.u32 %v1590, %v1593
        %v1595 = vrot.slane %v1594, 4
        %v1597 = vshll.u32 %v1512, 16
        %v1599 = vrot.slane %v1597, 5
        %v1600 = vsel %vm352, %v1595, %v1599
        %v1602 = vshrl.u32 %v1513, 16
        %v1604 = vrot.slane %v1602, 4
        %v1605 = vshll.u32 %v1513, 16
        %v1607 = vrot.slane %v1605, 5
        %v1608 = vor.u32 %v1604, %v1607
        %v1609 = vrot.slane %v1608, 4
        %v1611 = vshll.u32 %v1514, 16
        %v1613 = vrot.slane %v1611, 5
        %v1614 = vsel %vm352, %v1609, %v1613
        %v1616 = vshrl.u32 %v1515, 16
        %v1618 = vrot.slane %v1616, 4
        %v1619 = vshll.u32 %v1515, 16
        %v1621 = vrot.slane %v1619, 5
        %v1622 = vor.u32 %v1618, %v1621
        %v1623 = vrot.slane %v1622, 4
        %v1625 = vshll.u32 %v1516, 16
        %v1627 = vrot.slane %v1625, 5
        %v1628 = vsel %vm352, %v1623, %v1627
        %1629 = vrot.lane.b32.xlu0 %v1530, 32
        %v1630 = vpop.permute.xlu0 %1629
        %1631 = vrot.lane.b32.xlu0 %v1544, 32
        %v1632 = vpop.permute.xlu0 %1631
        %1633 = vrot.lane.b32.xlu0 %v1558, 32
        %v1634 = vpop.permute.xlu0 %1633
        %1635 = vrot.lane.b32.xlu0 %v1572, 32
        %v1636 = vpop.permute.xlu0 %1635
        %1637 = vrot.lane.b32.xlu0 %v1586, 32
        %v1638 = vpop.permute.xlu0 %1637
        %1639 = vrot.lane.b32.xlu0 %v1600, 32
        %v1640 = vpop.permute.xlu0 %1639
        %1641 = vrot.lane.b32.xlu0 %v1614, 32
        %v1642 = vpop.permute.xlu0 %1641
        %1643 = vrot.lane.b32.xlu0 %v1628, 32
        %v1644 = vpop.permute.xlu0 %1643
        %1653 = vst.msk [vmem:[#allocation5] sm:$0xf] %vm716, %v1630
        %1654 = vst.msk [vmem:[#allocation5 + $0x4] sm:$0xf] %vm716, %v1632
        %1655 = vst.msk [vmem:[#allocation5 + $0x8] sm:$0xf] %vm716, %v1634
        %1656 = vst.msk [vmem:[#allocation5 + $0xc] sm:$0xf] %vm716, %v1636
        %1657 = vst.msk [vmem:[#allocation5 + $0x10] sm:$0xf] %vm716, %v1638
        %1658 = vst.msk [vmem:[#allocation5 + $0x14] sm:$0xf] %vm716, %v1640
        %1659 = vst.msk [vmem:[#allocation5 + $0x18] sm:$0xf] %vm716, %v1642
        %1660 = vst.msk [vmem:[#allocation5 + $0x1c] sm:$0xf] %vm716, %v1644
        %v1661 = vld [vmem:[%s1123] sm:$0xe]
        %v1662 = vld [vmem:[%s1123 + $0x4] sm:$0x1]
        %v1663 = vld [vmem:[%s1123 + $0x8] sm:$0xe]
        %v1664 = vld [vmem:[%s1123 + $0xc] sm:$0x1]
        %v1665 = vld [vmem:[%s1123 + $0x10] sm:$0xe]
        %v1666 = vld [vmem:[%s1123 + $0x14] sm:$0x1]
        %v1667 = vld [vmem:[%s1123 + $0x18] sm:$0xe]
        %v1668 = vld [vmem:[%s1123 + $0x1c] sm:$0x1]
        %v1669 = vld [vmem:[%s1123 + $0x20] sm:$0xe]
        %v1670 = vld [vmem:[%s1123 + $0x24] sm:$0x1]
        %v1671 = vld [vmem:[%s1123 + $0x28] sm:$0xe]
        %v1672 = vld [vmem:[%s1123 + $0x2c] sm:$0x1]
        %v1673 = vld [vmem:[%s1123 + $0x30] sm:$0xe]
        %v1674 = vld [vmem:[%s1123 + $0x34] sm:$0x1]
        %v1675 = vld [vmem:[%s1123 + $0x38] sm:$0xe]
        %v1676 = vld [vmem:[%s1123 + $0x3c] sm:$0x1]
        %v1693 = vrot.slane %v1661, 5
        %v1694 = vrot.slane %v1693, 4
        %v1695 = vrot.slane %v1662, 5
        %v1696 = vsel %vm1388, %v1694, %v1695
        %v1697 = vrot.slane %v1663, 5
        %v1698 = vrot.slane %v1697, 4
        %v1699 = vrot.slane %v1664, 5
        %v1700 = vsel %vm1388, %v1698, %v1699
        %v1701 = vrot.slane %v1665, 5
        %v1702 = vrot.slane %v1701, 4
        %v1703 = vrot.slane %v1666, 5
        %v1704 = vsel %vm1388, %v1702, %v1703
        %v1705 = vrot.slane %v1667, 5
        %v1706 = vrot.slane %v1705, 4
        %v1707 = vrot.slane %v1668, 5
        %v1708 = vsel %vm1388, %v1706, %v1707
        %v1709 = vrot.slane %v1669, 5
        %v1710 = vrot.slane %v1709, 4
        %v1711 = vrot.slane %v1670, 5
        %v1712 = vsel %vm1388, %v1710, %v1711
        %v1713 = vrot.slane %v1671, 5
        %v1714 = vrot.slane %v1713, 4
        %v1715 = vrot.slane %v1672, 5
        %v1716 = vsel %vm1388, %v1714, %v1715
        %v1717 = vrot.slane %v1673, 5
        %v1718 = vrot.slane %v1717, 4
        %v1719 = vrot.slane %v1674, 5
        %v1720 = vsel %vm1388, %v1718, %v1719
        %v1721 = vrot.slane %v1675, 5
        %v1722 = vrot.slane %v1721, 4
        %v1723 = vrot.slane %v1676, 5
        %v1724 = vsel %vm1388, %v1722, %v1723
        %1725 = vrot.lane.b32.xlu0 %v1696, 40
        %v1726 = vpop.permute.xlu0 %1725
        %1727 = vrot.lane.b32.xlu0 %v1700, 40
        %v1728 = vpop.permute.xlu0 %1727
        %1729 = vrot.lane.b32.xlu0 %v1704, 40
        %v1730 = vpop.permute.xlu0 %1729
        %1731 = vrot.lane.b32.xlu0 %v1708, 40
        %v1732 = vpop.permute.xlu0 %1731
        %1733 = vrot.lane.b32.xlu0 %v1712, 40
        %v1734 = vpop.permute.xlu0 %1733
        %1735 = vrot.lane.b32.xlu0 %v1716, 40
        %v1736 = vpop.permute.xlu0 %1735
        %1737 = vrot.lane.b32.xlu0 %v1720, 40
        %v1738 = vpop.permute.xlu0 %1737
        %1739 = vrot.lane.b32.xlu0 %v1724, 40
        %v1740 = vpop.permute.xlu0 %1739
        %1749 = vst.msk [vmem:[#allocation5] sm:$0xf] %vm763, %v1726
        %1750 = vst.msk [vmem:[#allocation5 + $0x4] sm:$0xf] %vm763, %v1728
        %1751 = vst.msk [vmem:[#allocation5 + $0x8] sm:$0xf] %vm763, %v1730
        %1752 = vst.msk [vmem:[#allocation5 + $0xc] sm:$0xf] %vm763, %v1732
        %1753 = vst.msk [vmem:[#allocation5 + $0x10] sm:$0xf] %vm763, %v1734
        %1754 = vst.msk [vmem:[#allocation5 + $0x14] sm:$0xf] %vm763, %v1736
        %1755 = vst.msk [vmem:[#allocation5 + $0x18] sm:$0xf] %vm763, %v1738
        %1756 = vst.msk [vmem:[#allocation5 + $0x1c] sm:$0xf] %vm763, %v1740
        %s1757 = scalar_lea.vmem [#allocation2], 16
        %v1758 = vld [vmem:[%s1757] sm:$0xf]
        %v1759 = vld [vmem:[%s1757 + $0x8] sm:$0xf]
        %v1760 = vld [vmem:[%s1757 + $0x10] sm:$0xf]
        %v1761 = vld [vmem:[%s1757 + $0x18] sm:$0xf]
        %v1762 = vld [vmem:[%s1757 + $0x20] sm:$0xf]
        %v1763 = vld [vmem:[%s1757 + $0x28] sm:$0xf]
        %v1764 = vld [vmem:[%s1757 + $0x30] sm:$0xf]
        %v1765 = vld [vmem:[%s1757 + $0x38] sm:$0xf]
        %1774 = vrot.lane.b32.xlu0 %v1758, 48
        %v1775 = vpop.permute.xlu0 %1774
        %1776 = vrot.lane.b32.xlu0 %v1759, 48
        %v1777 = vpop.permute.xlu0 %1776
        %1778 = vrot.lane.b32.xlu0 %v1760, 48
        %v1779 = vpop.permute.xlu0 %1778
        %1780 = vrot.lane.b32.xlu0 %v1761, 48
        %v1781 = vpop.permute.xlu0 %1780
        %1782 = vrot.lane.b32.xlu0 %v1762, 48
        %v1783 = vpop.permute.xlu0 %1782
        %1784 = vrot.lane.b32.xlu0 %v1763, 48
        %v1785 = vpop.permute.xlu0 %1784
        %1786 = vrot.lane.b32.xlu0 %v1764, 48
        %v1787 = vpop.permute.xlu0 %1786
        %1788 = vrot.lane.b32.xlu0 %v1765, 48
        %v1789 = vpop.permute.xlu0 %1788
        %1798 = vst.msk [vmem:[#allocation5] sm:$0xf] %vm797, %v1775
        %1799 = vst.msk [vmem:[#allocation5 + $0x4] sm:$0xf] %vm797, %v1777
        %1800 = vst.msk [vmem:[#allocation5 + $0x8] sm:$0xf] %vm797, %v1779
        %1801 = vst.msk [vmem:[#allocation5 + $0xc] sm:$0xf] %vm797, %v1781
        %1802 = vst.msk [vmem:[#allocation5 + $0x10] sm:$0xf] %vm797, %v1783
        %1803 = vst.msk [vmem:[#allocation5 + $0x14] sm:$0xf] %vm797, %v1785
        %1804 = vst.msk [vmem:[#allocation5 + $0x18] sm:$0xf] %vm797, %v1787
        %1805 = vst.msk [vmem:[#allocation5 + $0x1c] sm:$0xf] %vm797, %v1789
        %v1806 = vld [vmem:[%s1757] sm:$0xf]
        %v1807 = vld [vmem:[%s1757 + $0x4] sm:$0x1]
        %v1808 = vld [vmem:[%s1757 + $0x8] sm:$0xf]
        %v1809 = vld [vmem:[%s1757 + $0xc] sm:$0x1]
        %v1810 = vld [vmem:[%s1757 + $0x10] sm:$0xf]
        %v1811 = vld [vmem:[%s1757 + $0x14] sm:$0x1]
        %v1812 = vld [vmem:[%s1757 + $0x18] sm:$0xf]
        %v1813 = vld [vmem:[%s1757 + $0x1c] sm:$0x1]
        %v1814 = vld [vmem:[%s1757 + $0x20] sm:$0xf]
        %v1815 = vld [vmem:[%s1757 + $0x24] sm:$0x1]
        %v1816 = vld [vmem:[%s1757 + $0x28] sm:$0xf]
        %v1817 = vld [vmem:[%s1757 + $0x2c] sm:$0x1]
        %v1818 = vld [vmem:[%s1757 + $0x30] sm:$0xf]
        %v1819 = vld [vmem:[%s1757 + $0x34] sm:$0x1]
        %v1820 = vld [vmem:[%s1757 + $0x38] sm:$0xf]
        %v1821 = vld [vmem:[%s1757 + $0x3c] sm:$0x1]
        %v1823 = vshrl.u32 %v1806, 16
        %v1825 = vrot.slane %v1823, 4
        %v1826 = vshll.u32 %v1806, 16
        %v1828 = vrot.slane %v1826, 5
        %v1829 = vor.u32 %v1825, %v1828
        %v1830 = vrot.slane %v1829, 4
        %v1832 = vshll.u32 %v1807, 16
        %v1834 = vrot.slane %v1832, 5
        %v1835 = vsel %vm352, %v1830, %v1834
        %v1837 = vshrl.u32 %v1808, 16
        %v1839 = vrot.slane %v1837, 4
        %v1840 = vshll.u32 %v1808, 16
        %v1842 = vrot.slane %v1840, 5
        %v1843 = vor.u32 %v1839, %v1842
        %v1844 = vrot.slane %v1843, 4
        %v1846 = vshll.u32 %v1809, 16
        %v1848 = vrot.slane %v1846, 5
        %v1849 = vsel %vm352, %v1844, %v1848
        %v1851 = vshrl.u32 %v1810, 16
        %v1853 = vrot.slane %v1851, 4
        %v1854 = vshll.u32 %v1810, 16
        %v1856 = vrot.slane %v1854, 5
        %v1857 = vor.u32 %v1853, %v1856
        %v1858 = vrot.slane %v1857, 4
        %v1860 = vshll.u32 %v1811, 16
        %v1862 = vrot.slane %v1860, 5
        %v1863 = vsel %vm352, %v1858, %v1862
        %v1865 = vshrl.u32 %v1812, 16
        %v1867 = vrot.slane %v1865, 4
        %v1868 = vshll.u32 %v1812, 16
        %v1870 = vrot.slane %v1868, 5
        %v1871 = vor.u32 %v1867, %v1870
        %v1872 = vrot.slane %v1871, 4
        %v1874 = vshll.u32 %v1813, 16
        %v1876 = vrot.slane %v1874, 5
        %v1877 = vsel %vm352, %v1872, %v1876
        %v1879 = vshrl.u32 %v1814, 16
        %v1881 = vrot.slane %v1879, 4
        %v1882 = vshll.u32 %v1814, 16
        %v1884 = vrot.slane %v1882, 5
        %v1885 = vor.u32 %v1881, %v1884
        %v1886 = vrot.slane %v1885, 4
        %v1888 = vshll.u32 %v1815, 16
        %v1890 = vrot.slane %v1888, 5
        %v1891 = vsel %vm352, %v1886, %v1890
        %v1893 = vshrl.u32 %v1816, 16
        %v1895 = vrot.slane %v1893, 4
        %v1896 = vshll.u32 %v1816, 16
        %v1898 = vrot.slane %v1896, 5
        %v1899 = vor.u32 %v1895, %v1898
        %v1900 = vrot.slane %v1899, 4
        %v1902 = vshll.u32 %v1817, 16
        %v1904 = vrot.slane %v1902, 5
        %v1905 = vsel %vm352, %v1900, %v1904
        %v1907 = vshrl.u32 %v1818, 16
        %v1909 = vrot.slane %v1907, 4
        %v1910 = vshll.u32 %v1818, 16
        %v1912 = vrot.slane %v1910, 5
        %v1913 = vor.u32 %v1909, %v1912
        %v1914 = vrot.slane %v1913, 4
        %v1916 = vshll.u32 %v1819, 16
        %v1918 = vrot.slane %v1916, 5
        %v1919 = vsel %vm352, %v1914, %v1918
        %v1921 = vshrl.u32 %v1820, 16
        %v1923 = vrot.slane %v1921, 4
        %v1924 = vshll.u32 %v1820, 16
        %v1926 = vrot.slane %v1924, 5
        %v1927 = vor.u32 %v1923, %v1926
        %v1928 = vrot.slane %v1927, 4
        %v1930 = vshll.u32 %v1821, 16
        %v1932 = vrot.slane %v1930, 5
        %v1933 = vsel %vm352, %v1928, %v1932
        %1934 = vrot.lane.b32.xlu0 %v1835, 56
        %v1935 = vpop.permute.xlu0 %1934
        %1936 = vrot.lane.b32.xlu0 %v1849, 56
        %v1937 = vpop.permute.xlu0 %1936
        %1938 = vrot.lane.b32.xlu0 %v1863, 56
        %v1939 = vpop.permute.xlu0 %1938
        %1940 = vrot.lane.b32.xlu0 %v1877, 56
        %v1941 = vpop.permute.xlu0 %1940
        %1942 = vrot.lane.b32.xlu0 %v1891, 56
        %v1943 = vpop.permute.xlu0 %1942
        %1944 = vrot.lane.b32.xlu0 %v1905, 56
        %v1945 = vpop.permute.xlu0 %1944
        %1946 = vrot.lane.b32.xlu0 %v1919, 56
        %v1947 = vpop.permute.xlu0 %1946
        %1948 = vrot.lane.b32.xlu0 %v1933, 56
        %v1949 = vpop.permute.xlu0 %1948
        %1958 = vst.msk [vmem:[#allocation5] sm:$0xf] %vm844, %v1935
        %1959 = vst.msk [vmem:[#allocation5 + $0x4] sm:$0xf] %vm844, %v1937
        %1960 = vst.msk [vmem:[#allocation5 + $0x8] sm:$0xf] %vm844, %v1939
        %1961 = vst.msk [vmem:[#allocation5 + $0xc] sm:$0xf] %vm844, %v1941
        %1962 = vst.msk [vmem:[#allocation5 + $0x10] sm:$0xf] %vm844, %v1943
        %1963 = vst.msk [vmem:[#allocation5 + $0x14] sm:$0xf] %vm844, %v1945
        %1964 = vst.msk [vmem:[#allocation5 + $0x18] sm:$0xf] %vm844, %v1947
        %1965 = vst.msk [vmem:[#allocation5 + $0x1c] sm:$0xf] %vm844, %v1949
        %v1966 = vld [vmem:[%s1757] sm:$0xe]
        %v1967 = vld [vmem:[%s1757 + $0x4] sm:$0x1]
        %v1968 = vld [vmem:[%s1757 + $0x8] sm:$0xe]
        %v1969 = vld [vmem:[%s1757 + $0xc] sm:$0x1]
        %v1970 = vld [vmem:[%s1757 + $0x10] sm:$0xe]
        %v1971 = vld [vmem:[%s1757 + $0x14] sm:$0x1]
        %v1972 = vld [vmem:[%s1757 + $0x18] sm:$0xe]
        %v1973 = vld [vmem:[%s1757 + $0x1c] sm:$0x1]
        %v1974 = vld [vmem:[%s1757 + $0x20] sm:$0xe]
        %v1975 = vld [vmem:[%s1757 + $0x24] sm:$0x1]
        %v1976 = vld [vmem:[%s1757 + $0x28] sm:$0xe]
        %v1977 = vld [vmem:[%s1757 + $0x2c] sm:$0x1]
        %v1978 = vld [vmem:[%s1757 + $0x30] sm:$0xe]
        %v1979 = vld [vmem:[%s1757 + $0x34] sm:$0x1]
        %v1980 = vld [vmem:[%s1757 + $0x38] sm:$0xe]
        %v1981 = vld [vmem:[%s1757 + $0x3c] sm:$0x1]
        %v1998 = vrot.slane %v1966, 5
        %v1999 = vrot.slane %v1998, 4
        %v2000 = vrot.slane %v1967, 5
        %v2001 = vsel %vm1388, %v1999, %v2000
        %v2002 = vrot.slane %v1968, 5
        %v2003 = vrot.slane %v2002, 4
        %v2004 = vrot.slane %v1969, 5
        %v2005 = vsel %vm1388, %v2003, %v2004
        %v2006 = vrot.slane %v1970, 5
        %v2007 = vrot.slane %v2006, 4
        %v2008 = vrot.slane %v1971, 5
        %v2009 = vsel %vm1388, %v2007, %v2008
        %v2010 = vrot.slane %v1972, 5
        %v2011 = vrot.slane %v2010, 4
        %v2012 = vrot.slane %v1973, 5
        %v2013 = vsel %vm1388, %v2011, %v2012
        %v2014 = vrot.slane %v1974, 5
        %v2015 = vrot.slane %v2014, 4
        %v2016 = vrot.slane %v1975, 5
        %v2017 = vsel %vm1388, %v2015, %v2016
        %v2018 = vrot.slane %v1976, 5
        %v2019 = vrot.slane %v2018, 4
        %v2020 = vrot.slane %v1977, 5
        %v2021 = vsel %vm1388, %v2019, %v2020
        %v2022 = vrot.slane %v1978, 5
        %v2023 = vrot.slane %v2022, 4
        %v2024 = vrot.slane %v1979, 5
        %v2025 = vsel %vm1388, %v2023, %v2024
        %v2026 = vrot.slane %v1980, 5
        %v2027 = vrot.slane %v2026, 4
        %v2028 = vrot.slane %v1981, 5
        %v2029 = vsel %vm1388, %v2027, %v2028
        %2030 = vrot.lane.b32.xlu0 %v2001, 64
        %v2031 = vpop.permute.xlu0 %2030
        %2032 = vrot.lane.b32.xlu0 %v2005, 64
        %v2033 = vpop.permute.xlu0 %2032
        %2034 = vrot.lane.b32.xlu0 %v2009, 64
        %v2035 = vpop.permute.xlu0 %2034
        %2036 = vrot.lane.b32.xlu0 %v2013, 64
        %v2037 = vpop.permute.xlu0 %2036
        %2038 = vrot.lane.b32.xlu0 %v2017, 64
        %v2039 = vpop.permute.xlu0 %2038
        %2040 = vrot.lane.b32.xlu0 %v2021, 64
        %v2041 = vpop.permute.xlu0 %2040
        %2042 = vrot.lane.b32.xlu0 %v2025, 64
        %v2043 = vpop.permute.xlu0 %2042
        %2044 = vrot.lane.b32.xlu0 %v2029, 64
        %v2045 = vpop.permute.xlu0 %2044
        %vm2054 = vcmask 585216
        %2055 = vst.msk [vmem:[#allocation5] sm:$0xf] %vm2054, %v2031
        %2056 = vst.msk [vmem:[#allocation5 + $0x4] sm:$0xf] %vm2054, %v2033
        %2057 = vst.msk [vmem:[#allocation5 + $0x8] sm:$0xf] %vm2054, %v2035
        %2058 = vst.msk [vmem:[#allocation5 + $0xc] sm:$0xf] %vm2054, %v2037
        %2059 = vst.msk [vmem:[#allocation5 + $0x10] sm:$0xf] %vm2054, %v2039
        %2060 = vst.msk [vmem:[#allocation5 + $0x14] sm:$0xf] %vm2054, %v2041
        %2061 = vst.msk [vmem:[#allocation5 + $0x18] sm:$0xf] %vm2054, %v2043
        %2062 = vst.msk [vmem:[#allocation5 + $0x1c] sm:$0xf] %vm2054, %v2045
        %v2063 = vld [vmem:[#allocation5] sm:$0xf]
        %v2064 = vld [vmem:[#allocation5 + $0x4] sm:$0xf]
        %v2065 = vld [vmem:[#allocation5 + $0x8] sm:$0xf]
        %v2066 = vld [vmem:[#allocation5 + $0xc] sm:$0xf]
        %v2067 = vld [vmem:[#allocation5 + $0x10] sm:$0xf]
        %v2068 = vld [vmem:[#allocation5 + $0x14] sm:$0xf]
        %v2069 = vld [vmem:[#allocation5 + $0x18] sm:$0xf]
        %v2070 = vld [vmem:[#allocation5 + $0x1c] sm:$0xf]
        %v2071 = vld [vmem:[%s3] sm:$0xf]
        %v2072 = vld [vmem:[%s3 + $0x4] sm:$0xf]
        %v2073 = vld [vmem:[%s3 + $0x8] sm:$0xf]
        %v2074 = vld [vmem:[%s3 + $0xc] sm:$0xf]
        %v2075 = vld [vmem:[%s3 + $0x10] sm:$0xf]
        %v2076 = vld [vmem:[%s3 + $0x14] sm:$0xf]
        %v2077 = vld [vmem:[%s3 + $0x18] sm:$0xf]
        %v2078 = vld [vmem:[%s3 + $0x1c] sm:$0xf]
        %v2079 = vld [vmem:[%s3 + $0x20] sm:$0xf]
        %v2088 = vunpack.c.l.b16 %v2063
        %v2089 = vunpack.c.l.b16 %v2064
        %v2090 = vunpack.c.l.b16 %v2065
        %v2091 = vunpack.c.l.b16 %v2066
        %v2092 = vunpack.c.l.b16 %v2067
        %v2093 = vunpack.c.l.b16 %v2068
        %v2094 = vunpack.c.l.b16 %v2069
        %v2095 = vunpack.c.l.b16 %v2070
        %v2096 = vpack.c.b16 %v2089, %v2088
        %v2097 = vpack.c.b16 %v2091, %v2090
        %v2098 = vpack.c.b16 %v2093, %v2092
        %v2099 = vpack.c.b16 %v2095, %v2094
        %v2109 = vunpack.c.l.b16 %v2071
        %v2110 = vunpack.c.l.b16 %v2072
        %v2111 = vunpack.c.l.b16 %v2073
        %v2112 = vunpack.c.l.b16 %v2074
        %v2113 = vunpack.c.l.b16 %v2075
        %v2114 = vunpack.c.l.b16 %v2076
        %v2115 = vunpack.c.l.b16 %v2077
        %v2116 = vunpack.c.l.b16 %v2078
        %v2117 = vunpack.c.l.b16 %v2079
        %v2118 = vpack.c.b16 %v2110, %v2109
        %v2119 = vpack.c.b16 %v2112, %v2111
        %v2120 = vpack.c.b16 %v2114, %v2113
        %v2121 = vpack.c.b16 %v2116, %v2115
        %v2122 = vpack.c.b16 %v2117, %v2117
        %vm2127 = vcmask 588800
        %v2129 = vsel %vm2127, %v2096, 0
        %v2132 = vsel %vm2127, %v2097, 0
        %v2135 = vsel %vm2127, %v2098, 0
        %v2138 = vsel %vm2127, %v2099, 0
        %vm2140 = vcmask 1043456
        %v2142 = vsel %vm2140, %v2122, 0
        %2144 = vmatprep.subr.bf16.mxu0 0
        %2145 = vmatpush1.bf16.msra.mxu0 0
        %2146 = vmatprep.subr.bf16.mxu0 0
        %2147 = vmatpush1.bf16.msra.mxu0 0
        %2148 = vmatprep.subr.bf16.mxu0 0
        %2149 = vmatpush1.bf16.msra.mxu0 0
        %2150 = vmatprep.subr.bf16.mxu0 0
        %2151 = vmatpush1.bf16.msra.mxu0 %v2142
        %2152 = vmatprep.subr.bf16.mxu0 0
        %2153 = vmatpush1.bf16.msra.mxu0 %v2121
        %2154 = vmatprep.subr.bf16.mxu0 0
        %2155 = vmatpush1.bf16.msra.mxu0 %v2120
        %2156 = vmatprep.subr.bf16.mxu0 0
        %2157 = vmatpush1.bf16.msra.mxu0 %v2119
        %2158 = vmatprep.subr.bf16.mxu0 0
        %2159 = vmatpush1.bf16.msra.mxu0 %v2118
        %2160 = vmatprep.subr.bf16.mxu0 0
        %2161 = vmatpush2.bf16.msra.mxu0 0
        %2162 = vmatprep.subr.bf16.mxu0 0
        %2163 = vmatpush2.bf16.msra.mxu0 0
        %2164 = vmatprep.subr.bf16.mxu0 0
        %2165 = vmatpush2.bf16.msra.mxu0 0
        %2166 = vmatprep.subr.bf16.mxu0 0
        %2167 = vmatpush2.bf16.msra.mxu0 0
        %2168 = vmatprep.subr.bf16.mxu0 0
        %2169 = vmatpush2.bf16.msra.mxu0 0
        %2170 = vmatprep.subr.bf16.mxu0 0
        %2171 = vmatpush2.bf16.msra.mxu0 0
        %2172 = vmatprep.subr.bf16.mxu0 0
        %2173 = vmatpush2.bf16.msra.mxu0 0
        %2174 = vmatprep.subr.bf16.mxu0 0
        %2175 = vmatpush2.bf16.msra.mxu0 0
        %2176 = vmatprep.mubr.bf16.mxu0 0
        %2177 = vmatmul.mubr.bf16.gmra.mxu0 %v2129
        %v2178 = vpop.f32.mrf.mxu0
        %v2179 = vadd.f32 0.0, %v2178
        %v2180 = vpop.f32.mrf.mxu0
        %v2181 = vpop.f32.mrf.mxu0
        %v2182 = vadd.f32 0.0, %v2181
        %v2183 = vpop.f32.mrf.mxu0
        %2184 = vmatprep.mubr.bf16.mxu0 0
        %2185 = vmatmul.mubr.bf16.gmra.mxu0 %v2132
        %v2186 = vpop.f32.mrf.mxu0
        %v2187 = vadd.f32 0.0, %v2186
        %v2188 = vpop.f32.mrf.mxu0
        %v2189 = vpop.f32.mrf.mxu0
        %v2190 = vadd.f32 0.0, %v2189
        %v2191 = vpop.f32.mrf.mxu0
        %2192 = vmatprep.mubr.bf16.mxu0 0
        %2193 = vmatmul.mubr.bf16.gmra.mxu0 %v2135
        %v2194 = vpop.f32.mrf.mxu0
        %v2195 = vadd.f32 0.0, %v2194
        %v2196 = vpop.f32.mrf.mxu0
        %v2197 = vpop.f32.mrf.mxu0
        %v2198 = vadd.f32 0.0, %v2197
        %v2199 = vpop.f32.mrf.mxu0
        %2200 = vmatprep.mubr.bf16.mxu0 0
        %2201 = vmatmul.mubr.bf16.gmra.mxu0 %v2138
        %v2202 = vpop.f32.mrf.mxu0
        %v2203 = vadd.f32 0.0, %v2202
        %v2204 = vpop.f32.mrf.mxu0
        %v2205 = vpop.f32.mrf.mxu0
        %v2206 = vadd.f32 0.0, %v2205
        %v2207 = vpop.f32.mrf.mxu0
        %2208 = vdwg.mxu0
        %v2209 = vld [vmem:[%s4] sm:$0x1]
        %v2211 = vlaneseq
        %v2212 = vshrl.u32 %v2211, 7
        %v2213 = vsub.s32 0, %v2212
        %v2214 = vrot.slane %v2209, %v2213
        %v2216 = vadd.f32 %v2179, %v2214
        %v2217 = vadd.f32 %v2182, %v2214
        %v2218 = vadd.f32 %v2187, %v2214
        %v2219 = vadd.f32 %v2190, %v2214
        %v2220 = vadd.f32 %v2195, %v2214
        %v2221 = vadd.f32 %v2198, %v2214
        %v2222 = vadd.f32 %v2203, %v2214
        %v2223 = vadd.f32 %v2206, %v2214
        %vm2224 = vcmp.ge.f32.partialorder %v2216, 0.0
        %vm2225 = vcmp.ge.f32.partialorder %v2217, 0.0
        %vm2226 = vcmp.ge.f32.partialorder %v2218, 0.0
        %vm2227 = vcmp.ge.f32.partialorder %v2219, 0.0
        %vm2228 = vcmp.ge.f32.partialorder %v2220, 0.0
        %vm2229 = vcmp.ge.f32.partialorder %v2221, 0.0
        %vm2230 = vcmp.ge.f32.partialorder %v2222, 0.0
        %vm2231 = vcmp.ge.f32.partialorder %v2223, 0.0
        %v2232 = vmul.f32 %v2216, 0.01
        %v2233 = vmul.f32 %v2217, 0.01
        %v2234 = vmul.f32 %v2218, 0.01
        %v2235 = vmul.f32 %v2219, 0.01
        %v2236 = vmul.f32 %v2220, 0.01
        %v2237 = vmul.f32 %v2221, 0.01
        %v2238 = vmul.f32 %v2222, 0.01
        %v2239 = vmul.f32 %v2223, 0.01
        %v2240 = vsel %vm2224, %v2216, %v2232
        %v2241 = vsel %vm2225, %v2217, %v2233
        %v2242 = vsel %vm2226, %v2218, %v2234
        %v2243 = vsel %vm2227, %v2219, %v2235
        %v2244 = vsel %vm2228, %v2220, %v2236
        %v2245 = vsel %vm2229, %v2221, %v2237
        %v2246 = vsel %vm2230, %v2222, %v2238
        %v2247 = vsel %vm2231, %v2223, %v2239
        %v2248 = vld [vmem:[%s7] sm:$0x1]
        %v2250 = vlaneseq
        %v2251 = vshrl.u32 %v2250, 7
        %v2252 = vsub.s32 0, %v2251
        %v2253 = vrot.slane %v2248, %v2252
        %2254 = vrot.lane.b32.xlu0 %v2253, 8
        %v2255 = vpop.permute.xlu0 %2254
        %v2257 = vadd.f32 %v2179, %v2255
        %v2258 = vadd.f32 %v2182, %v2255
        %v2259 = vadd.f32 %v2187, %v2255
        %v2260 = vadd.f32 %v2190, %v2255
        %v2261 = vadd.f32 %v2195, %v2255
        %v2262 = vadd.f32 %v2198, %v2255
        %v2263 = vadd.f32 %v2203, %v2255
        %v2264 = vadd.f32 %v2206, %v2255
        %2265 = vst.msk [vmem:[#allocation3] sm:$0xf] %vm341, 0
        %2266 = vst.msk [vmem:[#allocation3 + $0x4] sm:$0x1] %vm1003, 0
        %2267 = vst.msk [vmem:[#allocation3 + $0x8] sm:$0xf] %vm341, 0
        %2268 = vst.msk [vmem:[#allocation3 + $0xc] sm:$0x1] %vm1003, 0
        %2269 = vst.msk [vmem:[#allocation3 + $0x10] sm:$0xf] %vm341, 0
        %2270 = vst.msk [vmem:[#allocation3 + $0x14] sm:$0x1] %vm1003, 0
        %2271 = vst.msk [vmem:[#allocation3 + $0x18] sm:$0xf] %vm341, 0
        %2272 = vst.msk [vmem:[#allocation3 + $0x1c] sm:$0x1] %vm1003, 0
        %2273 = vst.msk [vmem:[#allocation3 + $0x20] sm:$0xf] %vm341, 0
        %2274 = vst.msk [vmem:[#allocation3 + $0x24] sm:$0x1] %vm1003, 0
        %2275 = vst.msk [vmem:[#allocation3 + $0x28] sm:$0xf] %vm341, 0
        %2276 = vst.msk [vmem:[#allocation3 + $0x2c] sm:$0x1] %vm1003, 0
        %2277 = vst.msk [vmem:[#allocation3 + $0x30] sm:$0xf] %vm341, 0
        %2278 = vst.msk [vmem:[#allocation3 + $0x34] sm:$0x1] %vm1003, 0
        %2279 = vst.msk [vmem:[#allocation3 + $0x38] sm:$0xf] %vm341, 0
        %2280 = vst.msk [vmem:[#allocation3 + $0x3c] sm:$0x1] %vm1003, 0
        %2281 = vst.msk [vmem:[#allocation3 + $0x40] sm:$0xf] %vm341, 0
        %2282 = vst.msk [vmem:[#allocation3 + $0x44] sm:$0x1] %vm1003, 0
        %2283 = vst.msk [vmem:[#allocation3 + $0x48] sm:$0xf] %vm341, 0
        %2284 = vst.msk [vmem:[#allocation3 + $0x4c] sm:$0x1] %vm1003, 0
        %v2285 = vpack.c.bf16 %v2241, %v2240
        %v2286 = vpack.c.bf16 %v2243, %v2242
        %v2287 = vpack.c.bf16 %v2245, %v2244
        %v2288 = vpack.c.bf16 %v2247, %v2246
        %v2293 = vunpack.c.l.b16 %v2285
        %v2294 = vunpack.c.h.b16 %v2285
        %v2295 = vunpack.c.l.b16 %v2286
        %v2296 = vunpack.c.h.b16 %v2286
        %v2297 = vunpack.c.l.b16 %v2287
        %v2298 = vunpack.c.h.b16 %v2287
        %v2299 = vunpack.c.l.b16 %v2288
        %v2300 = vunpack.c.h.b16 %v2288
        %v2301 = vpack.c.b16 %v2293, %v2293
        %v2302 = vpack.c.b16 %v2294, %v2294
        %v2303 = vpack.c.b16 %v2295, %v2295
        %v2304 = vpack.c.b16 %v2296, %v2296
        %v2305 = vpack.c.b16 %v2297, %v2297
        %v2306 = vpack.c.b16 %v2298, %v2298
        %v2307 = vpack.c.b16 %v2299, %v2299
        %v2308 = vpack.c.b16 %v2300, %v2300
        %v2310 = vshrl.u32 %v2301, 16
        %v2312 = vrot.slane %v2310, 7
        %v2313 = vshll.u32 %v2301, 16
        %v2315 = vor.u32 %v2312, %v2313
        %v2316 = vrot.slane %v2312, 4
        %v2318 = vshrl.u32 %v2302, 16
        %v2320 = vrot.slane %v2318, 7
        %v2321 = vshll.u32 %v2302, 16
        %v2323 = vor.u32 %v2320, %v2321
        %v2324 = vrot.slane %v2320, 4
        %v2326 = vshrl.u32 %v2303, 16
        %v2328 = vrot.slane %v2326, 7
        %v2329 = vshll.u32 %v2303, 16
        %v2331 = vor.u32 %v2328, %v2329
        %v2332 = vrot.slane %v2328, 4
        %v2334 = vshrl.u32 %v2304, 16
        %v2336 = vrot.slane %v2334, 7
        %v2337 = vshll.u32 %v2304, 16
        %v2339 = vor.u32 %v2336, %v2337
        %v2340 = vrot.slane %v2336, 4
        %v2342 = vshrl.u32 %v2305, 16
        %v2344 = vrot.slane %v2342, 7
        %v2345 = vshll.u32 %v2305, 16
        %v2347 = vor.u32 %v2344, %v2345
        %v2348 = vrot.slane %v2344, 4
        %v2350 = vshrl.u32 %v2306, 16
        %v2352 = vrot.slane %v2350, 7
        %v2353 = vshll.u32 %v2306, 16
        %v2355 = vor.u32 %v2352, %v2353
        %v2356 = vrot.slane %v2352, 4
        %v2358 = vshrl.u32 %v2307, 16
        %v2360 = vrot.slane %v2358, 7
        %v2361 = vshll.u32 %v2307, 16
        %v2363 = vor.u32 %v2360, %v2361
        %v2364 = vrot.slane %v2360, 4
        %v2366 = vshrl.u32 %v2308, 16
        %v2368 = vrot.slane %v2366, 7
        %v2369 = vshll.u32 %v2308, 16
        %v2371 = vor.u32 %v2368, %v2369
        %v2372 = vrot.slane %v2368, 4
        %s2389 = scalar_lea.vmem [#allocation3], 8
        %v2390 = vld [vmem:[%s2389] sm:$0xf]
        %v2391 = vsel %vm1126, %v2315, %v2390
        %2392 = vst [vmem:[%s2389] sm:$0xf] %v2391
        %v2393 = vld [vmem:[%s2389 + $0x4] sm:$0x1]
        %v2394 = vsel %vm1132, %v2316, %v2393
        %2395 = vst [vmem:[%s2389 + $0x4] sm:$0x1] %v2394
        %v2396 = vld [vmem:[%s2389 + $0x8] sm:$0xf]
        %v2397 = vsel %vm1126, %v2323, %v2396
        %2398 = vst [vmem:[%s2389 + $0x8] sm:$0xf] %v2397
        %v2399 = vld [vmem:[%s2389 + $0xc] sm:$0x1]
        %v2400 = vsel %vm1132, %v2324, %v2399
        %2401 = vst [vmem:[%s2389 + $0xc] sm:$0x1] %v2400
        %v2402 = vld [vmem:[%s2389 + $0x10] sm:$0xf]
        %v2403 = vsel %vm1126, %v2331, %v2402
        %2404 = vst [vmem:[%s2389 + $0x10] sm:$0xf] %v2403
        %v2405 = vld [vmem:[%s2389 + $0x14] sm:$0x1]
        %v2406 = vsel %vm1132, %v2332, %v2405
        %2407 = vst [vmem:[%s2389 + $0x14] sm:$0x1] %v2406
        %v2408 = vld [vmem:[%s2389 + $0x18] sm:$0xf]
        %v2409 = vsel %vm1126, %v2339, %v2408
        %2410 = vst [vmem:[%s2389 + $0x18] sm:$0xf] %v2409
        %v2411 = vld [vmem:[%s2389 + $0x1c] sm:$0x1]
        %v2412 = vsel %vm1132, %v2340, %v2411
        %2413 = vst [vmem:[%s2389 + $0x1c] sm:$0x1] %v2412
        %v2414 = vld [vmem:[%s2389 + $0x20] sm:$0xf]
        %v2415 = vsel %vm1126, %v2347, %v2414
        %2416 = vst [vmem:[%s2389 + $0x20] sm:$0xf] %v2415
        %v2417 = vld [vmem:[%s2389 + $0x24] sm:$0x1]
        %v2418 = vsel %vm1132, %v2348, %v2417
        %2419 = vst [vmem:[%s2389 + $0x24] sm:$0x1] %v2418
        %v2420 = vld [vmem:[%s2389 + $0x28] sm:$0xf]
        %v2421 = vsel %vm1126, %v2355, %v2420
        %2422 = vst [vmem:[%s2389 + $0x28] sm:$0xf] %v2421
        %v2423 = vld [vmem:[%s2389 + $0x2c] sm:$0x1]
        %v2424 = vsel %vm1132, %v2356, %v2423
        %2425 = vst [vmem:[%s2389 + $0x2c] sm:$0x1] %v2424
        %v2426 = vld [vmem:[%s2389 + $0x30] sm:$0xf]
        %v2427 = vsel %vm1126, %v2363, %v2426
        %2428 = vst [vmem:[%s2389 + $0x30] sm:$0xf] %v2427
        %v2429 = vld [vmem:[%s2389 + $0x34] sm:$0x1]
        %v2430 = vsel %vm1132, %v2364, %v2429
        %2431 = vst [vmem:[%s2389 + $0x34] sm:$0x1] %v2430
        %v2432 = vld [vmem:[%s2389 + $0x38] sm:$0xf]
        %v2433 = vsel %vm1126, %v2371, %v2432
        %2434 = vst [vmem:[%s2389 + $0x38] sm:$0xf] %v2433
        %v2435 = vld [vmem:[%s2389 + $0x3c] sm:$0x1]
        %v2436 = vsel %vm1132, %v2372, %v2435
        %2437 = vst [vmem:[%s2389 + $0x3c] sm:$0x1] %v2436
        %v2438 = vld [vmem:[#allocation3] sm:$0xf]
        %v2439 = vld [vmem:[#allocation3 + $0x8] sm:$0xf]
        %v2440 = vld [vmem:[#allocation3 + $0x10] sm:$0xf]
        %v2441 = vld [vmem:[#allocation3 + $0x18] sm:$0xf]
        %v2442 = vld [vmem:[#allocation3 + $0x20] sm:$0xf]
        %v2443 = vld [vmem:[#allocation3 + $0x28] sm:$0xf]
        %v2444 = vld [vmem:[#allocation3 + $0x30] sm:$0xf]
        %v2445 = vld [vmem:[#allocation3 + $0x38] sm:$0xf]
        %2446 = vst.msk [vmem:[#allocation5] sm:$0xf] %vm341, %v2438
        %2447 = vst.msk [vmem:[#allocation5 + $0x4] sm:$0xf] %vm341, %v2439
        %2448 = vst.msk [vmem:[#allocation5 + $0x8] sm:$0xf] %vm341, %v2440
        %2449 = vst.msk [vmem:[#allocation5 + $0xc] sm:$0xf] %vm341, %v2441
        %2450 = vst.msk [vmem:[#allocation5 + $0x10] sm:$0xf] %vm341, %v2442
        %2451 = vst.msk [vmem:[#allocation5 + $0x14] sm:$0xf] %vm341, %v2443
        %2452 = vst.msk [vmem:[#allocation5 + $0x18] sm:$0xf] %vm341, %v2444
        %2453 = vst.msk [vmem:[#allocation5 + $0x1c] sm:$0xf] %vm341, %v2445
        %v2454 = vld [vmem:[#allocation3] sm:$0xf]
        %v2455 = vld [vmem:[#allocation3 + $0x4] sm:$0x1]
        %v2456 = vld [vmem:[#allocation3 + $0x8] sm:$0xf]
        %v2457 = vld [vmem:[#allocation3 + $0xc] sm:$0x1]
        %v2458 = vld [vmem:[#allocation3 + $0x10] sm:$0xf]
        %v2459 = vld [vmem:[#allocation3 + $0x14] sm:$0x1]
        %v2460 = vld [vmem:[#allocation3 + $0x18] sm:$0xf]
        %v2461 = vld [vmem:[#allocation3 + $0x1c] sm:$0x1]
        %v2462 = vld [vmem:[#allocation3 + $0x20] sm:$0xf]
        %v2463 = vld [vmem:[#allocation3 + $0x24] sm:$0x1]
        %v2464 = vld [vmem:[#allocation3 + $0x28] sm:$0xf]
        %v2465 = vld [vmem:[#allocation3 + $0x2c] sm:$0x1]
        %v2466 = vld [vmem:[#allocation3 + $0x30] sm:$0xf]
        %v2467 = vld [vmem:[#allocation3 + $0x34] sm:$0x1]
        %v2468 = vld [vmem:[#allocation3 + $0x38] sm:$0xf]
        %v2469 = vld [vmem:[#allocation3 + $0x3c] sm:$0x1]
        %v2471 = vshrl.u32 %v2454, 16
        %v2473 = vrot.slane %v2471, 4
        %v2474 = vshll.u32 %v2454, 16
        %v2476 = vrot.slane %v2474, 5
        %v2477 = vor.u32 %v2473, %v2476
        %v2478 = vrot.slane %v2477, 4
        %v2480 = vshll.u32 %v2455, 16
        %v2482 = vrot.slane %v2480, 5
        %v2483 = vsel %vm352, %v2478, %v2482
        %v2485 = vshrl.u32 %v2456, 16
        %v2487 = vrot.slane %v2485, 4
        %v2488 = vshll.u32 %v2456, 16
        %v2490 = vrot.slane %v2488, 5
        %v2491 = vor.u32 %v2487, %v2490
        %v2492 = vrot.slane %v2491, 4
        %v2494 = vshll.u32 %v2457, 16
        %v2496 = vrot.slane %v2494, 5
        %v2497 = vsel %vm352, %v2492, %v2496
        %v2499 = vshrl.u32 %v2458, 16
        %v2501 = vrot.slane %v2499, 4
        %v2502 = vshll.u32 %v2458, 16
        %v2504 = vrot.slane %v2502, 5
        %v2505 = vor.u32 %v2501, %v2504
        %v2506 = vrot.slane %v2505, 4
        %v2508 = vshll.u32 %v2459, 16
        %v2510 = vrot.slane %v2508, 5
        %v2511 = vsel %vm352, %v2506, %v2510
        %v2513 = vshrl.u32 %v2460, 16
        %v2515 = vrot.slane %v2513, 4
        %v2516 = vshll.u32 %v2460, 16
        %v2518 = vrot.slane %v2516, 5
        %v2519 = vor.u32 %v2515, %v2518
        %v2520 = vrot.slane %v2519, 4
        %v2522 = vshll.u32 %v2461, 16
        %v2524 = vrot.slane %v2522, 5
        %v2525 = vsel %vm352, %v2520, %v2524
        %v2527 = vshrl.u32 %v2462, 16
        %v2529 = vrot.slane %v2527, 4
        %v2530 = vshll.u32 %v2462, 16
        %v2532 = vrot.slane %v2530, 5
        %v2533 = vor.u32 %v2529, %v2532
        %v2534 = vrot.slane %v2533, 4
        %v2536 = vshll.u32 %v2463, 16
        %v2538 = vrot.slane %v2536, 5
        %v2539 = vsel %vm352, %v2534, %v2538
        %v2541 = vshrl.u32 %v2464, 16
        %v2543 = vrot.slane %v2541, 4
        %v2544 = vshll.u32 %v2464, 16
        %v2546 = vrot.slane %v2544, 5
        %v2547 = vor.u32 %v2543, %v2546
        %v2548 = vrot.slane %v2547, 4
        %v2550 = vshll.u32 %v2465, 16
        %v2552 = vrot.slane %v2550, 5
        %v2553 = vsel %vm352, %v2548, %v2552
        %v2555 = vshrl.u32 %v2466, 16
        %v2557 = vrot.slane %v2555, 4
        %v2558 = vshll.u32 %v2466, 16
        %v2560 = vrot.slane %v2558, 5
        %v2561 = vor.u32 %v2557, %v2560
        %v2562 = vrot.slane %v2561, 4
        %v2564 = vshll.u32 %v2467, 16
        %v2566 = vrot.slane %v2564, 5
        %v2567 = vsel %vm352, %v2562, %v2566
        %v2569 = vshrl.u32 %v2468, 16
        %v2571 = vrot.slane %v2569, 4
        %v2572 = vshll.u32 %v2468, 16
        %v2574 = vrot.slane %v2572, 5
        %v2575 = vor.u32 %v2571, %v2574
        %v2576 = vrot.slane %v2575, 4
        %v2578 = vshll.u32 %v2469, 16
        %v2580 = vrot.slane %v2578, 5
        %v2581 = vsel %vm352, %v2576, %v2580
        %2582 = vrot.lane.b32.xlu0 %v2483, 8
        %v2583 = vpop.permute.xlu0 %2582
        %2584 = vrot.lane.b32.xlu0 %v2497, 8
        %v2585 = vpop.permute.xlu0 %2584
        %2586 = vrot.lane.b32.xlu0 %v2511, 8
        %v2587 = vpop.permute.xlu0 %2586
        %2588 = vrot.lane.b32.xlu0 %v2525, 8
        %v2589 = vpop.permute.xlu0 %2588
        %2590 = vrot.lane.b32.xlu0 %v2539, 8
        %v2591 = vpop.permute.xlu0 %2590
        %2592 = vrot.lane.b32.xlu0 %v2553, 8
        %v2593 = vpop.permute.xlu0 %2592
        %2594 = vrot.lane.b32.xlu0 %v2567, 8
        %v2595 = vpop.permute.xlu0 %2594
        %2596 = vrot.lane.b32.xlu0 %v2581, 8
        %v2597 = vpop.permute.xlu0 %2596
        %2606 = vst.msk [vmem:[#allocation5] sm:$0xf] %vm489, %v2583
        %2607 = vst.msk [vmem:[#allocation5 + $0x4] sm:$0xf] %vm489, %v2585
        %2608 = vst.msk [vmem:[#allocation5 + $0x8] sm:$0xf] %vm489, %v2587
        %2609 = vst.msk [vmem:[#allocation5 + $0xc] sm:$0xf] %vm489, %v2589
        %2610 = vst.msk [vmem:[#allocation5 + $0x10] sm:$0xf] %vm489, %v2591
        %2611 = vst.msk [vmem:[#allocation5 + $0x14] sm:$0xf] %vm489, %v2593
        %2612 = vst.msk [vmem:[#allocation5 + $0x18] sm:$0xf] %vm489, %v2595
        %2613 = vst.msk [vmem:[#allocation5 + $0x1c] sm:$0xf] %vm489, %v2597
        %v2614 = vld [vmem:[#allocation3] sm:$0xe]
        %v2615 = vld [vmem:[#allocation3 + $0x4] sm:$0x1]
        %v2616 = vld [vmem:[#allocation3 + $0x8] sm:$0xe]
        %v2617 = vld [vmem:[#allocation3 + $0xc] sm:$0x1]
        %v2618 = vld [vmem:[#allocation3 + $0x10] sm:$0xe]
        %v2619 = vld [vmem:[#allocation3 + $0x14] sm:$0x1]
        %v2620 = vld [vmem:[#allocation3 + $0x18] sm:$0xe]
        %v2621 = vld [vmem:[#allocation3 + $0x1c] sm:$0x1]
        %v2622 = vld [vmem:[#allocation3 + $0x20] sm:$0xe]
        %v2623 = vld [vmem:[#allocation3 + $0x24] sm:$0x1]
        %v2624 = vld [vmem:[#allocation3 + $0x28] sm:$0xe]
        %v2625 = vld [vmem:[#allocation3 + $0x2c] sm:$0x1]
        %v2626 = vld [vmem:[#allocation3 + $0x30] sm:$0xe]
        %v2627 = vld [vmem:[#allocation3 + $0x34] sm:$0x1]
        %v2628 = vld [vmem:[#allocation3 + $0x38] sm:$0xe]
        %v2629 = vld [vmem:[#allocation3 + $0x3c] sm:$0x1]
        %v2646 = vrot.slane %v2614, 5
        %v2647 = vrot.slane %v2646, 4
        %v2648 = vrot.slane %v2615, 5
        %v2649 = vsel %vm1388, %v2647, %v2648
        %v2650 = vrot.slane %v2616, 5
        %v2651 = vrot.slane %v2650, 4
        %v2652 = vrot.slane %v2617, 5
        %v2653 = vsel %vm1388, %v2651, %v2652
        %v2654 = vrot.slane %v2618, 5
        %v2655 = vrot.slane %v2654, 4
        %v2656 = vrot.slane %v2619, 5
        %v2657 = vsel %vm1388, %v2655, %v2656
        %v2658 = vrot.slane %v2620, 5
        %v2659 = vrot.slane %v2658, 4
        %v2660 = vrot.slane %v2621, 5
        %v2661 = vsel %vm1388, %v2659, %v2660
        %v2662 = vrot.slane %v2622, 5
        %v2663 = vrot.slane %v2662, 4
        %v2664 = vrot.slane %v2623, 5
        %v2665 = vsel %vm1388, %v2663, %v2664
        %v2666 = vrot.slane %v2624, 5
        %v2667 = vrot.slane %v2666, 4
        %v2668 = vrot.slane %v2625, 5
        %v2669 = vsel %vm1388, %v2667, %v2668
        %v2670 = vrot.slane %v2626, 5
        %v2671 = vrot.slane %v2670, 4
        %v2672 = vrot.slane %v2627, 5
        %v2673 = vsel %vm1388, %v2671, %v2672
        %v2674 = vrot.slane %v2628, 5
        %v2675 = vrot.slane %v2674, 4
        %v2676 = vrot.slane %v2629, 5
        %v2677 = vsel %vm1388, %v2675, %v2676
        %2678 = vrot.lane.b32.xlu0 %v2649, 16
        %v2679 = vpop.permute.xlu0 %2678
        %2680 = vrot.lane.b32.xlu0 %v2653, 16
        %v2681 = vpop.permute.xlu0 %2680
        %2682 = vrot.lane.b32.xlu0 %v2657, 16
        %v2683 = vpop.permute.xlu0 %2682
        %2684 = vrot.lane.b32.xlu0 %v2661, 16
        %v2685 = vpop.permute.xlu0 %2684
        %2686 = vrot.lane.b32.xlu0 %v2665, 16
        %v2687 = vpop.permute.xlu0 %2686
        %2688 = vrot.lane.b32.xlu0 %v2669, 16
        %v2689 = vpop.permute.xlu0 %2688
        %2690 = vrot.lane.b32.xlu0 %v2673, 16
        %v2691 = vpop.permute.xlu0 %2690
        %2692 = vrot.lane.b32.xlu0 %v2677, 16
        %v2693 = vpop.permute.xlu0 %2692
        %2702 = vst.msk [vmem:[#allocation5] sm:$0xf] %vm530, %v2679
        %2703 = vst.msk [vmem:[#allocation5 + $0x4] sm:$0xf] %vm530, %v2681
        %2704 = vst.msk [vmem:[#allocation5 + $0x8] sm:$0xf] %vm530, %v2683
        %2705 = vst.msk [vmem:[#allocation5 + $0xc] sm:$0xf] %vm530, %v2685
        %2706 = vst.msk [vmem:[#allocation5 + $0x10] sm:$0xf] %vm530, %v2687
        %2707 = vst.msk [vmem:[#allocation5 + $0x14] sm:$0xf] %vm530, %v2689
        %2708 = vst.msk [vmem:[#allocation5 + $0x18] sm:$0xf] %vm530, %v2691
        %2709 = vst.msk [vmem:[#allocation5 + $0x1c] sm:$0xf] %vm530, %v2693
        %v2710 = vld [vmem:[%s2389] sm:$0xf]
        %v2711 = vld [vmem:[%s2389 + $0x8] sm:$0xf]
        %v2712 = vld [vmem:[%s2389 + $0x10] sm:$0xf]
        %v2713 = vld [vmem:[%s2389 + $0x18] sm:$0xf]
        %v2714 = vld [vmem:[%s2389 + $0x20] sm:$0xf]
        %v2715 = vld [vmem:[%s2389 + $0x28] sm:$0xf]
        %v2716 = vld [vmem:[%s2389 + $0x30] sm:$0xf]
        %v2717 = vld [vmem:[%s2389 + $0x38] sm:$0xf]
        %2726 = vrot.lane.b32.xlu0 %v2710, 24
        %v2727 = vpop.permute.xlu0 %2726
        %2728 = vrot.lane.b32.xlu0 %v2711, 24
        %v2729 = vpop.permute.xlu0 %2728
        %2730 = vrot.lane.b32.xlu0 %v2712, 24
        %v2731 = vpop.permute.xlu0 %2730
        %2732 = vrot.lane.b32.xlu0 %v2713, 24
        %v2733 = vpop.permute.xlu0 %2732
        %2734 = vrot.lane.b32.xlu0 %v2714, 24
        %v2735 = vpop.permute.xlu0 %2734
        %2736 = vrot.lane.b32.xlu0 %v2715, 24
        %v2737 = vpop.permute.xlu0 %2736
        %2738 = vrot.lane.b32.xlu0 %v2716, 24
        %v2739 = vpop.permute.xlu0 %2738
        %2740 = vrot.lane.b32.xlu0 %v2717, 24
        %v2741 = vpop.permute.xlu0 %2740
        %2750 = vst.msk [vmem:[#allocation5] sm:$0xf] %vm675, %v2727
        %2751 = vst.msk [vmem:[#allocation5 + $0x4] sm:$0xf] %vm675, %v2729
        %2752 = vst.msk [vmem:[#allocation5 + $0x8] sm:$0xf] %vm675, %v2731
        %2753 = vst.msk [vmem:[#allocation5 + $0xc] sm:$0xf] %vm675, %v2733
        %2754 = vst.msk [vmem:[#allocation5 + $0x10] sm:$0xf] %vm675, %v2735
        %2755 = vst.msk [vmem:[#allocation5 + $0x14] sm:$0xf] %vm675, %v2737
        %2756 = vst.msk [vmem:[#allocation5 + $0x18] sm:$0xf] %vm675, %v2739
        %2757 = vst.msk [vmem:[#allocation5 + $0x1c] sm:$0xf] %vm675, %v2741
        %v2758 = vld [vmem:[%s2389] sm:$0xf]
        %v2759 = vld [vmem:[%s2389 + $0x4] sm:$0x1]
        %v2760 = vld [vmem:[%s2389 + $0x8] sm:$0xf]
        %v2761 = vld [vmem:[%s2389 + $0xc] sm:$0x1]
        %v2762 = vld [vmem:[%s2389 + $0x10] sm:$0xf]
        %v2763 = vld [vmem:[%s2389 + $0x14] sm:$0x1]
        %v2764 = vld [vmem:[%s2389 + $0x18] sm:$0xf]
        %v2765 = vld [vmem:[%s2389 + $0x1c] sm:$0x1]
        %v2766 = vld [vmem:[%s2389 + $0x20] sm:$0xf]
        %v2767 = vld [vmem:[%s2389 + $0x24] sm:$0x1]
        %v2768 = vld [vmem:[%s2389 + $0x28] sm:$0xf]
        %v2769 = vld [vmem:[%s2389 + $0x2c] sm:$0x1]
        %v2770 = vld [vmem:[%s2389 + $0x30] sm:$0xf]
        %v2771 = vld [vmem:[%s2389 + $0x34] sm:$0x1]
        %v2772 = vld [vmem:[%s2389 + $0x38] sm:$0xf]
        %v2773 = vld [vmem:[%s2389 + $0x3c] sm:$0x1]
        %v2775 = vshrl.u32 %v2758, 16
        %v2777 = vrot.slane %v2775, 4
        %v2778 = vshll.u32 %v2758, 16
        %v2780 = vrot.slane %v2778, 5
        %v2781 = vor.u32 %v2777, %v2780
        %v2782 = vrot.slane %v2781, 4
        %v2784 = vshll.u32 %v2759, 16
        %v2786 = vrot.slane %v2784, 5
        %v2787 = vsel %vm352, %v2782, %v2786
        %v2789 = vshrl.u32 %v2760, 16
        %v2791 = vrot.slane %v2789, 4
        %v2792 = vshll.u32 %v2760, 16
        %v2794 = vrot.slane %v2792, 5
        %v2795 = vor.u32 %v2791, %v2794
        %v2796 = vrot.slane %v2795, 4
        %v2798 = vshll.u32 %v2761, 16
        %v2800 = vrot.slane %v2798, 5
        %v2801 = vsel %vm352, %v2796, %v2800
        %v2803 = vshrl.u32 %v2762, 16
        %v2805 = vrot.slane %v2803, 4
        %v2806 = vshll.u32 %v2762, 16
        %v2808 = vrot.slane %v2806, 5
        %v2809 = vor.u32 %v2805, %v2808
        %v2810 = vrot.slane %v2809, 4
        %v2812 = vshll.u32 %v2763, 16
        %v2814 = vrot.slane %v2812, 5
        %v2815 = vsel %vm352, %v2810, %v2814
        %v2817 = vshrl.u32 %v2764, 16
        %v2819 = vrot.slane %v2817, 4
        %v2820 = vshll.u32 %v2764, 16
        %v2822 = vrot.slane %v2820, 5
        %v2823 = vor.u32 %v2819, %v2822
        %v2824 = vrot.slane %v2823, 4
        %v2826 = vshll.u32 %v2765, 16
        %v2828 = vrot.slane %v2826, 5
        %v2829 = vsel %vm352, %v2824, %v2828
        %v2831 = vshrl.u32 %v2766, 16
        %v2833 = vrot.slane %v2831, 4
        %v2834 = vshll.u32 %v2766, 16
        %v2836 = vrot.slane %v2834, 5
        %v2837 = vor.u32 %v2833, %v2836
        %v2838 = vrot.slane %v2837, 4
        %v2840 = vshll.u32 %v2767, 16
        %v2842 = vrot.slane %v2840, 5
        %v2843 = vsel %vm352, %v2838, %v2842
        %v2845 = vshrl.u32 %v2768, 16
        %v2847 = vrot.slane %v2845, 4
        %v2848 = vshll.u32 %v2768, 16
        %v2850 = vrot.slane %v2848, 5
        %v2851 = vor.u32 %v2847, %v2850
        %v2852 = vrot.slane %v2851, 4
        %v2854 = vshll.u32 %v2769, 16
        %v2856 = vrot.slane %v2854, 5
        %v2857 = vsel %vm352, %v2852, %v2856
        %v2859 = vshrl.u32 %v2770, 16
        %v2861 = vrot.slane %v2859, 4
        %v2862 = vshll.u32 %v2770, 16
        %v2864 = vrot.slane %v2862, 5
        %v2865 = vor.u32 %v2861, %v2864
        %v2866 = vrot.slane %v2865, 4
        %v2868 = vshll.u32 %v2771, 16
        %v2870 = vrot.slane %v2868, 5
        %v2871 = vsel %vm352, %v2866, %v2870
        %v2873 = vshrl.u32 %v2772, 16
        %v2875 = vrot.slane %v2873, 4
        %v2876 = vshll.u32 %v2772, 16
        %v2878 = vrot.slane %v2876, 5
        %v2879 = vor.u32 %v2875, %v2878
        %v2880 = vrot.slane %v2879, 4
        %v2882 = vshll.u32 %v2773, 16
        %v2884 = vrot.slane %v2882, 5
        %v2885 = vsel %vm352, %v2880, %v2884
        %2886 = vrot.lane.b32.xlu0 %v2787, 32
        %v2887 = vpop.permute.xlu0 %2886
        %2888 = vrot.lane.b32.xlu0 %v2801, 32
        %v2889 = vpop.permute.xlu0 %2888
        %2890 = vrot.lane.b32.xlu0 %v2815, 32
        %v2891 = vpop.permute.xlu0 %2890
        %2892 = vrot.lane.b32.xlu0 %v2829, 32
        %v2893 = vpop.permute.xlu0 %2892
        %2894 = vrot.lane.b32.xlu0 %v2843, 32
        %v2895 = vpop.permute.xlu0 %2894
        %2896 = vrot.lane.b32.xlu0 %v2857, 32
        %v2897 = vpop.permute.xlu0 %2896
        %2898 = vrot.lane.b32.xlu0 %v2871, 32
        %v2899 = vpop.permute.xlu0 %2898
        %2900 = vrot.lane.b32.xlu0 %v2885, 32
        %v2901 = vpop.permute.xlu0 %2900
        %2910 = vst.msk [vmem:[#allocation5] sm:$0xf] %vm716, %v2887
        %2911 = vst.msk [vmem:[#allocation5 + $0x4] sm:$0xf] %vm716, %v2889
        %2912 = vst.msk [vmem:[#allocation5 + $0x8] sm:$0xf] %vm716, %v2891
        %2913 = vst.msk [vmem:[#allocation5 + $0xc] sm:$0xf] %vm716, %v2893
        %2914 = vst.msk [vmem:[#allocation5 + $0x10] sm:$0xf] %vm716, %v2895
        %2915 = vst.msk [vmem:[#allocation5 + $0x14] sm:$0xf] %vm716, %v2897
        %2916 = vst.msk [vmem:[#allocation5 + $0x18] sm:$0xf] %vm716, %v2899
        %2917 = vst.msk [vmem:[#allocation5 + $0x1c] sm:$0xf] %vm716, %v2901
        %v2918 = vld [vmem:[%s2389] sm:$0xe]
        %v2919 = vld [vmem:[%s2389 + $0x4] sm:$0x1]
        %v2920 = vld [vmem:[%s2389 + $0x8] sm:$0xe]
        %v2921 = vld [vmem:[%s2389 + $0xc] sm:$0x1]
        %v2922 = vld [vmem:[%s2389 + $0x10] sm:$0xe]
        %v2923 = vld [vmem:[%s2389 + $0x14] sm:$0x1]
        %v2924 = vld [vmem:[%s2389 + $0x18] sm:$0xe]
        %v2925 = vld [vmem:[%s2389 + $0x1c] sm:$0x1]
        %v2926 = vld [vmem:[%s2389 + $0x20] sm:$0xe]
        %v2927 = vld [vmem:[%s2389 + $0x24] sm:$0x1]
        %v2928 = vld [vmem:[%s2389 + $0x28] sm:$0xe]
        %v2929 = vld [vmem:[%s2389 + $0x2c] sm:$0x1]
        %v2930 = vld [vmem:[%s2389 + $0x30] sm:$0xe]
        %v2931 = vld [vmem:[%s2389 + $0x34] sm:$0x1]
        %v2932 = vld [vmem:[%s2389 + $0x38] sm:$0xe]
        %v2933 = vld [vmem:[%s2389 + $0x3c] sm:$0x1]
        %v2950 = vrot.slane %v2918, 5
        %v2951 = vrot.slane %v2950, 4
        %v2952 = vrot.slane %v2919, 5
        %v2953 = vsel %vm1388, %v2951, %v2952
        %v2954 = vrot.slane %v2920, 5
        %v2955 = vrot.slane %v2954, 4
        %v2956 = vrot.slane %v2921, 5
        %v2957 = vsel %vm1388, %v2955, %v2956
        %v2958 = vrot.slane %v2922, 5
        %v2959 = vrot.slane %v2958, 4
        %v2960 = vrot.slane %v2923, 5
        %v2961 = vsel %vm1388, %v2959, %v2960
        %v2962 = vrot.slane %v2924, 5
        %v2963 = vrot.slane %v2962, 4
        %v2964 = vrot.slane %v2925, 5
        %v2965 = vsel %vm1388, %v2963, %v2964
        %v2966 = vrot.slane %v2926, 5
        %v2967 = vrot.slane %v2966, 4
        %v2968 = vrot.slane %v2927, 5
        %v2969 = vsel %vm1388, %v2967, %v2968
        %v2970 = vrot.slane %v2928, 5
        %v2971 = vrot.slane %v2970, 4
        %v2972 = vrot.slane %v2929, 5
        %v2973 = vsel %vm1388, %v2971, %v2972
        %v2974 = vrot.slane %v2930, 5
        %v2975 = vrot.slane %v2974, 4
        %v2976 = vrot.slane %v2931, 5
        %v2977 = vsel %vm1388, %v2975, %v2976
        %v2978 = vrot.slane %v2932, 5
        %v2979 = vrot.slane %v2978, 4
        %v2980 = vrot.slane %v2933, 5
        %v2981 = vsel %vm1388, %v2979, %v2980
        %2982 = vrot.lane.b32.xlu0 %v2953, 40
        %v2983 = vpop.permute.xlu0 %2982
        %2984 = vrot.lane.b32.xlu0 %v2957, 40
        %v2985 = vpop.permute.xlu0 %2984
        %2986 = vrot.lane.b32.xlu0 %v2961, 40
        %v2987 = vpop.permute.xlu0 %2986
        %2988 = vrot.lane.b32.xlu0 %v2965, 40
        %v2989 = vpop.permute.xlu0 %2988
        %2990 = vrot.lane.b32.xlu0 %v2969, 40
        %v2991 = vpop.permute.xlu0 %2990
        %2992 = vrot.lane.b32.xlu0 %v2973, 40
        %v2993 = vpop.permute.xlu0 %2992
        %2994 = vrot.lane.b32.xlu0 %v2977, 40
        %v2995 = vpop.permute.xlu0 %2994
        %2996 = vrot.lane.b32.xlu0 %v2981, 40
        %v2997 = vpop.permute.xlu0 %2996
        %3006 = vst.msk [vmem:[#allocation5] sm:$0xf] %vm763, %v2983
        %3007 = vst.msk [vmem:[#allocation5 + $0x4] sm:$0xf] %vm763, %v2985
        %3008 = vst.msk [vmem:[#allocation5 + $0x8] sm:$0xf] %vm763, %v2987
        %3009 = vst.msk [vmem:[#allocation5 + $0xc] sm:$0xf] %vm763, %v2989
        %3010 = vst.msk [vmem:[#allocation5 + $0x10] sm:$0xf] %vm763, %v2991
        %3011 = vst.msk [vmem:[#allocation5 + $0x14] sm:$0xf] %vm763, %v2993
        %3012 = vst.msk [vmem:[#allocation5 + $0x18] sm:$0xf] %vm763, %v2995
        %3013 = vst.msk [vmem:[#allocation5 + $0x1c] sm:$0xf] %vm763, %v2997
        %s3014 = scalar_lea.vmem [#allocation3], 16
        %v3015 = vld [vmem:[%s3014] sm:$0xf]
        %v3016 = vld [vmem:[%s3014 + $0x8] sm:$0xf]
        %v3017 = vld [vmem:[%s3014 + $0x10] sm:$0xf]
        %v3018 = vld [vmem:[%s3014 + $0x18] sm:$0xf]
        %v3019 = vld [vmem:[%s3014 + $0x20] sm:$0xf]
        %v3020 = vld [vmem:[%s3014 + $0x28] sm:$0xf]
        %v3021 = vld [vmem:[%s3014 + $0x30] sm:$0xf]
        %v3022 = vld [vmem:[%s3014 + $0x38] sm:$0xf]
        %3031 = vrot.lane.b32.xlu0 %v3015, 48
        %v3032 = vpop.permute.xlu0 %3031
        %3033 = vrot.lane.b32.xlu0 %v3016, 48
        %v3034 = vpop.permute.xlu0 %3033
        %3035 = vrot.lane.b32.xlu0 %v3017, 48
        %v3036 = vpop.permute.xlu0 %3035
        %3037 = vrot.lane.b32.xlu0 %v3018, 48
        %v3038 = vpop.permute.xlu0 %3037
        %3039 = vrot.lane.b32.xlu0 %v3019, 48
        %v3040 = vpop.permute.xlu0 %3039
        %3041 = vrot.lane.b32.xlu0 %v3020, 48
        %v3042 = vpop.permute.xlu0 %3041
        %3043 = vrot.lane.b32.xlu0 %v3021, 48
        %v3044 = vpop.permute.xlu0 %3043
        %3045 = vrot.lane.b32.xlu0 %v3022, 48
        %v3046 = vpop.permute.xlu0 %3045
        %3055 = vst.msk [vmem:[#allocation5] sm:$0xf] %vm797, %v3032
        %3056 = vst.msk [vmem:[#allocation5 + $0x4] sm:$0xf] %vm797, %v3034
        %3057 = vst.msk [vmem:[#allocation5 + $0x8] sm:$0xf] %vm797, %v3036
        %3058 = vst.msk [vmem:[#allocation5 + $0xc] sm:$0xf] %vm797, %v3038
        %3059 = vst.msk [vmem:[#allocation5 + $0x10] sm:$0xf] %vm797, %v3040
        %3060 = vst.msk [vmem:[#allocation5 + $0x14] sm:$0xf] %vm797, %v3042
        %3061 = vst.msk [vmem:[#allocation5 + $0x18] sm:$0xf] %vm797, %v3044
        %3062 = vst.msk [vmem:[#allocation5 + $0x1c] sm:$0xf] %vm797, %v3046
        %v3063 = vld [vmem:[%s3014] sm:$0xf]
        %v3064 = vld [vmem:[%s3014 + $0x4] sm:$0x1]
        %v3065 = vld [vmem:[%s3014 + $0x8] sm:$0xf]
        %v3066 = vld [vmem:[%s3014 + $0xc] sm:$0x1]
        %v3067 = vld [vmem:[%s3014 + $0x10] sm:$0xf]
        %v3068 = vld [vmem:[%s3014 + $0x14] sm:$0x1]
        %v3069 = vld [vmem:[%s3014 + $0x18] sm:$0xf]
        %v3070 = vld [vmem:[%s3014 + $0x1c] sm:$0x1]
        %v3071 = vld [vmem:[%s3014 + $0x20] sm:$0xf]
        %v3072 = vld [vmem:[%s3014 + $0x24] sm:$0x1]
        %v3073 = vld [vmem:[%s3014 + $0x28] sm:$0xf]
        %v3074 = vld [vmem:[%s3014 + $0x2c] sm:$0x1]
        %v3075 = vld [vmem:[%s3014 + $0x30] sm:$0xf]
        %v3076 = vld [vmem:[%s3014 + $0x34] sm:$0x1]
        %v3077 = vld [vmem:[%s3014 + $0x38] sm:$0xf]
        %v3078 = vld [vmem:[%s3014 + $0x3c] sm:$0x1]
        %v3080 = vshrl.u32 %v3063, 16
        %v3082 = vrot.slane %v3080, 4
        %v3083 = vshll.u32 %v3063, 16
        %v3085 = vrot.slane %v3083, 5
        %v3086 = vor.u32 %v3082, %v3085
        %v3087 = vrot.slane %v3086, 4
        %v3089 = vshll.u32 %v3064, 16
        %v3091 = vrot.slane %v3089, 5
        %v3092 = vsel %vm352, %v3087, %v3091
        %v3094 = vshrl.u32 %v3065, 16
        %v3096 = vrot.slane %v3094, 4
        %v3097 = vshll.u32 %v3065, 16
        %v3099 = vrot.slane %v3097, 5
        %v3100 = vor.u32 %v3096, %v3099
        %v3101 = vrot.slane %v3100, 4
        %v3103 = vshll.u32 %v3066, 16
        %v3105 = vrot.slane %v3103, 5
        %v3106 = vsel %vm352, %v3101, %v3105
        %v3108 = vshrl.u32 %v3067, 16
        %v3110 = vrot.slane %v3108, 4
        %v3111 = vshll.u32 %v3067, 16
        %v3113 = vrot.slane %v3111, 5
        %v3114 = vor.u32 %v3110, %v3113
        %v3115 = vrot.slane %v3114, 4
        %v3117 = vshll.u32 %v3068, 16
        %v3119 = vrot.slane %v3117, 5
        %v3120 = vsel %vm352, %v3115, %v3119
        %v3122 = vshrl.u32 %v3069, 16
        %v3124 = vrot.slane %v3122, 4
        %v3125 = vshll.u32 %v3069, 16
        %v3127 = vrot.slane %v3125, 5
        %v3128 = vor.u32 %v3124, %v3127
        %v3129 = vrot.slane %v3128, 4
        %v3131 = vshll.u32 %v3070, 16
        %v3133 = vrot.slane %v3131, 5
        %v3134 = vsel %vm352, %v3129, %v3133
        %v3136 = vshrl.u32 %v3071, 16
        %v3138 = vrot.slane %v3136, 4
        %v3139 = vshll.u32 %v3071, 16
        %v3141 = vrot.slane %v3139, 5
        %v3142 = vor.u32 %v3138, %v3141
        %v3143 = vrot.slane %v3142, 4
        %v3145 = vshll.u32 %v3072, 16
        %v3147 = vrot.slane %v3145, 5
        %v3148 = vsel %vm352, %v3143, %v3147
        %v3150 = vshrl.u32 %v3073, 16
        %v3152 = vrot.slane %v3150, 4
        %v3153 = vshll.u32 %v3073, 16
        %v3155 = vrot.slane %v3153, 5
        %v3156 = vor.u32 %v3152, %v3155
        %v3157 = vrot.slane %v3156, 4
        %v3159 = vshll.u32 %v3074, 16
        %v3161 = vrot.slane %v3159, 5
        %v3162 = vsel %vm352, %v3157, %v3161
        %v3164 = vshrl.u32 %v3075, 16
        %v3166 = vrot.slane %v3164, 4
        %v3167 = vshll.u32 %v3075, 16
        %v3169 = vrot.slane %v3167, 5
        %v3170 = vor.u32 %v3166, %v3169
        %v3171 = vrot.slane %v3170, 4
        %v3173 = vshll.u32 %v3076, 16
        %v3175 = vrot.slane %v3173, 5
        %v3176 = vsel %vm352, %v3171, %v3175
        %v3178 = vshrl.u32 %v3077, 16
        %v3180 = vrot.slane %v3178, 4
        %v3181 = vshll.u32 %v3077, 16
        %v3183 = vrot.slane %v3181, 5
        %v3184 = vor.u32 %v3180, %v3183
        %v3185 = vrot.slane %v3184, 4
        %v3187 = vshll.u32 %v3078, 16
        %v3189 = vrot.slane %v3187, 5
        %v3190 = vsel %vm352, %v3185, %v3189
        %3191 = vrot.lane.b32.xlu0 %v3092, 56
        %v3192 = vpop.permute.xlu0 %3191
        %3193 = vrot.lane.b32.xlu0 %v3106, 56
        %v3194 = vpop.permute.xlu0 %3193
        %3195 = vrot.lane.b32.xlu0 %v3120, 56
        %v3196 = vpop.permute.xlu0 %3195
        %3197 = vrot.lane.b32.xlu0 %v3134, 56
        %v3198 = vpop.permute.xlu0 %3197
        %3199 = vrot.lane.b32.xlu0 %v3148, 56
        %v3200 = vpop.permute.xlu0 %3199
        %3201 = vrot.lane.b32.xlu0 %v3162, 56
        %v3202 = vpop.permute.xlu0 %3201
        %3203 = vrot.lane.b32.xlu0 %v3176, 56
        %v3204 = vpop.permute.xlu0 %3203
        %3205 = vrot.lane.b32.xlu0 %v3190, 56
        %v3206 = vpop.permute.xlu0 %3205
        %3215 = vst.msk [vmem:[#allocation5] sm:$0xf] %vm844, %v3192
        %3216 = vst.msk [vmem:[#allocation5 + $0x4] sm:$0xf] %vm844, %v3194
        %3217 = vst.msk [vmem:[#allocation5 + $0x8] sm:$0xf] %vm844, %v3196
        %3218 = vst.msk [vmem:[#allocation5 + $0xc] sm:$0xf] %vm844, %v3198
        %3219 = vst.msk [vmem:[#allocation5 + $0x10] sm:$0xf] %vm844, %v3200
        %3220 = vst.msk [vmem:[#allocation5 + $0x14] sm:$0xf] %vm844, %v3202
        %3221 = vst.msk [vmem:[#allocation5 + $0x18] sm:$0xf] %vm844, %v3204
        %3222 = vst.msk [vmem:[#allocation5 + $0x1c] sm:$0xf] %vm844, %v3206
        %v3223 = vld [vmem:[%s3014] sm:$0xe]
        %v3224 = vld [vmem:[%s3014 + $0x4] sm:$0x1]
        %v3225 = vld [vmem:[%s3014 + $0x8] sm:$0xe]
        %v3226 = vld [vmem:[%s3014 + $0xc] sm:$0x1]
        %v3227 = vld [vmem:[%s3014 + $0x10] sm:$0xe]
        %v3228 = vld [vmem:[%s3014 + $0x14] sm:$0x1]
        %v3229 = vld [vmem:[%s3014 + $0x18] sm:$0xe]
        %v3230 = vld [vmem:[%s3014 + $0x1c] sm:$0x1]
        %v3231 = vld [vmem:[%s3014 + $0x20] sm:$0xe]
        %v3232 = vld [vmem:[%s3014 + $0x24] sm:$0x1]
        %v3233 = vld [vmem:[%s3014 + $0x28] sm:$0xe]
        %v3234 = vld [vmem:[%s3014 + $0x2c] sm:$0x1]
        %v3235 = vld [vmem:[%s3014 + $0x30] sm:$0xe]
        %v3236 = vld [vmem:[%s3014 + $0x34] sm:$0x1]
        %v3237 = vld [vmem:[%s3014 + $0x38] sm:$0xe]
        %v3238 = vld [vmem:[%s3014 + $0x3c] sm:$0x1]
        %v3255 = vrot.slane %v3223, 5
        %v3256 = vrot.slane %v3255, 4
        %v3257 = vrot.slane %v3224, 5
        %v3258 = vsel %vm1388, %v3256, %v3257
        %v3259 = vrot.slane %v3225, 5
        %v3260 = vrot.slane %v3259, 4
        %v3261 = vrot.slane %v3226, 5
        %v3262 = vsel %vm1388, %v3260, %v3261
        %v3263 = vrot.slane %v3227, 5
        %v3264 = vrot.slane %v3263, 4
        %v3265 = vrot.slane %v3228, 5
        %v3266 = vsel %vm1388, %v3264, %v3265
        %v3267 = vrot.slane %v3229, 5
        %v3268 = vrot.slane %v3267, 4
        %v3269 = vrot.slane %v3230, 5
        %v3270 = vsel %vm1388, %v3268, %v3269
        %v3271 = vrot.slane %v3231, 5
        %v3272 = vrot.slane %v3271, 4
        %v3273 = vrot.slane %v3232, 5
        %v3274 = vsel %vm1388, %v3272, %v3273
        %v3275 = vrot.slane %v3233, 5
        %v3276 = vrot.slane %v3275, 4
        %v3277 = vrot.slane %v3234, 5
        %v3278 = vsel %vm1388, %v3276, %v3277
        %v3279 = vrot.slane %v3235, 5
        %v3280 = vrot.slane %v3279, 4
        %v3281 = vrot.slane %v3236, 5
        %v3282 = vsel %vm1388, %v3280, %v3281
        %v3283 = vrot.slane %v3237, 5
        %v3284 = vrot.slane %v3283, 4
        %v3285 = vrot.slane %v3238, 5
        %v3286 = vsel %vm1388, %v3284, %v3285
        %3287 = vrot.lane.b32.xlu0 %v3258, 64
        %v3288 = vpop.permute.xlu0 %3287
        %3289 = vrot.lane.b32.xlu0 %v3262, 64
        %v3290 = vpop.permute.xlu0 %3289
        %3291 = vrot.lane.b32.xlu0 %v3266, 64
        %v3292 = vpop.permute.xlu0 %3291
        %3293 = vrot.lane.b32.xlu0 %v3270, 64
        %v3294 = vpop.permute.xlu0 %3293
        %3295 = vrot.lane.b32.xlu0 %v3274, 64
        %v3296 = vpop.permute.xlu0 %3295
        %3297 = vrot.lane.b32.xlu0 %v3278, 64
        %v3298 = vpop.permute.xlu0 %3297
        %3299 = vrot.lane.b32.xlu0 %v3282, 64
        %v3300 = vpop.permute.xlu0 %3299
        %3301 = vrot.lane.b32.xlu0 %v3286, 64
        %v3302 = vpop.permute.xlu0 %3301
        %3311 = vst.msk [vmem:[#allocation5] sm:$0xf] %vm2054, %v3288
        %3312 = vst.msk [vmem:[#allocation5 + $0x4] sm:$0xf] %vm2054, %v3290
        %3313 = vst.msk [vmem:[#allocation5 + $0x8] sm:$0xf] %vm2054, %v3292
        %3314 = vst.msk [vmem:[#allocation5 + $0xc] sm:$0xf] %vm2054, %v3294
        %3315 = vst.msk [vmem:[#allocation5 + $0x10] sm:$0xf] %vm2054, %v3296
        %3316 = vst.msk [vmem:[#allocation5 + $0x14] sm:$0xf] %vm2054, %v3298
        %3317 = vst.msk [vmem:[#allocation5 + $0x18] sm:$0xf] %vm2054, %v3300
        %3318 = vst.msk [vmem:[#allocation5 + $0x1c] sm:$0xf] %vm2054, %v3302
        %v3319 = vld [vmem:[#allocation5] sm:$0xf]
        %v3320 = vld [vmem:[#allocation5 + $0x4] sm:$0xf]
        %v3321 = vld [vmem:[#allocation5 + $0x8] sm:$0xf]
        %v3322 = vld [vmem:[#allocation5 + $0xc] sm:$0xf]
        %v3323 = vld [vmem:[#allocation5 + $0x10] sm:$0xf]
        %v3324 = vld [vmem:[#allocation5 + $0x14] sm:$0xf]
        %v3325 = vld [vmem:[#allocation5 + $0x18] sm:$0xf]
        %v3326 = vld [vmem:[#allocation5 + $0x1c] sm:$0xf]
        %v3327 = vld [vmem:[%s5] sm:$0xf]
        %v3328 = vld [vmem:[%s5 + $0x4] sm:$0xf]
        %v3329 = vld [vmem:[%s5 + $0x8] sm:$0xf]
        %v3330 = vld [vmem:[%s5 + $0xc] sm:$0xf]
        %v3331 = vld [vmem:[%s5 + $0x10] sm:$0xf]
        %v3332 = vld [vmem:[%s5 + $0x14] sm:$0xf]
        %v3333 = vld [vmem:[%s5 + $0x18] sm:$0xf]
        %v3334 = vld [vmem:[%s5 + $0x1c] sm:$0xf]
        %v3335 = vld [vmem:[%s5 + $0x20] sm:$0xf]
        %v3336 = vld [vmem:[%s6] sm:$0x1]
        %v3338 = vlaneseq
        %v3339 = vshrl.u32 %v3338, 7
        %v3340 = vsub.s32 0, %v3339
        %v3341 = vrot.slane %v3336, %v3340
        %v3351 = vunpack.c.l.b16 %v3319
        %v3352 = vunpack.c.l.b16 %v3320
        %v3353 = vunpack.c.l.b16 %v3321
        %v3354 = vunpack.c.l.b16 %v3322
        %v3355 = vunpack.c.l.b16 %v3323
        %v3356 = vunpack.c.l.b16 %v3324
        %v3357 = vunpack.c.l.b16 %v3325
        %v3358 = vunpack.c.l.b16 %v3326
        %v3359 = vpack.c.b16 %v3352, %v3351
        %v3360 = vpack.c.b16 %v3354, %v3353
        %v3361 = vpack.c.b16 %v3356, %v3355
        %v3362 = vpack.c.b16 %v3358, %v3357
        %v3372 = vunpack.c.l.b16 %v3327
        %v3373 = vunpack.c.l.b16 %v3328
        %v3374 = vunpack.c.l.b16 %v3329
        %v3375 = vunpack.c.l.b16 %v3330
        %v3376 = vunpack.c.l.b16 %v3331
        %v3377 = vunpack.c.l.b16 %v3332
        %v3378 = vunpack.c.l.b16 %v3333
        %v3379 = vunpack.c.l.b16 %v3334
        %v3380 = vunpack.c.l.b16 %v3335
        %v3381 = vpack.c.b16 %v3373, %v3372
        %v3382 = vpack.c.b16 %v3375, %v3374
        %v3383 = vpack.c.b16 %v3377, %v3376
        %v3384 = vpack.c.b16 %v3379, %v3378
        %v3385 = vpack.c.b16 %v3380, %v3380
        %v3391 = vsel %vm2127, %v3359, 0
        %v3394 = vsel %vm2127, %v3360, 0
        %v3397 = vsel %vm2127, %v3361, 0
        %v3400 = vsel %vm2127, %v3362, 0
        %v3403 = vsel %vm2140, %v3385, 0
        %3405 = vmatprep.subr.bf16.mxu0 0
        %3406 = vmatpush1.bf16.msra.mxu0 0
        %3407 = vmatprep.subr.bf16.mxu0 0
        %3408 = vmatpush1.bf16.msra.mxu0 0
        %3409 = vmatprep.subr.bf16.mxu0 0
        %3410 = vmatpush1.bf16.msra.mxu0 0
        %3411 = vmatprep.subr.bf16.mxu0 0
        %3412 = vmatpush1.bf16.msra.mxu0 %v3403
        %3413 = vmatprep.subr.bf16.mxu0 0
        %3414 = vmatpush1.bf16.msra.mxu0 %v3384
        %3415 = vmatprep.subr.bf16.mxu0 0
        %3416 = vmatpush1.bf16.msra.mxu0 %v3383
        %3417 = vmatprep.subr.bf16.mxu0 0
        %3418 = vmatpush1.bf16.msra.mxu0 %v3382
        %3419 = vmatprep.subr.bf16.mxu0 0
        %3420 = vmatpush1.bf16.msra.mxu0 %v3381
        %3421 = vmatprep.subr.bf16.mxu0 0
        %3422 = vmatpush2.bf16.msra.mxu0 0
        %3423 = vmatprep.subr.bf16.mxu0 0
        %3424 = vmatpush2.bf16.msra.mxu0 0
        %3425 = vmatprep.subr.bf16.mxu0 0
        %3426 = vmatpush2.bf16.msra.mxu0 0
        %3427 = vmatprep.subr.bf16.mxu0 0
        %3428 = vmatpush2.bf16.msra.mxu0 0
        %3429 = vmatprep.subr.bf16.mxu0 0
        %3430 = vmatpush2.bf16.msra.mxu0 0
        %3431 = vmatprep.subr.bf16.mxu0 0
        %3432 = vmatpush2.bf16.msra.mxu0 0
        %3433 = vmatprep.subr.bf16.mxu0 0
        %3434 = vmatpush2.bf16.msra.mxu0 0
        %3435 = vmatprep.subr.bf16.mxu0 0
        %3436 = vmatpush2.bf16.msra.mxu0 0
        %3437 = vmatprep.mubr.bf16.mxu0 0
        %3438 = vmatmul.mubr.bf16.gmra.mxu0 %v3391
        %v3439 = vpop.f32.mrf.mxu0
        %v3440 = vadd.f32 %v3341, %v3439
        %v3441 = vpop.f32.mrf.mxu0
        %v3442 = vpop.f32.mrf.mxu0
        %v3443 = vadd.f32 %v3341, %v3442
        %v3444 = vpop.f32.mrf.mxu0
        %3445 = vmatprep.mubr.bf16.mxu0 0
        %3446 = vmatmul.mubr.bf16.gmra.mxu0 %v3394
        %v3447 = vpop.f32.mrf.mxu0
        %v3448 = vadd.f32 %v3341, %v3447
        %v3449 = vpop.f32.mrf.mxu0
        %v3450 = vpop.f32.mrf.mxu0
        %v3451 = vadd.f32 %v3341, %v3450
        %v3452 = vpop.f32.mrf.mxu0
        %3453 = vmatprep.mubr.bf16.mxu0 0
        %3454 = vmatmul.mubr.bf16.gmra.mxu0 %v3397
        %v3455 = vpop.f32.mrf.mxu0
        %v3456 = vadd.f32 %v3341, %v3455
        %v3457 = vpop.f32.mrf.mxu0
        %v3458 = vpop.f32.mrf.mxu0
        %v3459 = vadd.f32 %v3341, %v3458
        %v3460 = vpop.f32.mrf.mxu0
        %3461 = vmatprep.mubr.bf16.mxu0 0
        %3462 = vmatmul.mubr.bf16.gmra.mxu0 %v3400
        %v3463 = vpop.f32.mrf.mxu0
        %v3464 = vadd.f32 %v3341, %v3463
        %v3465 = vpop.f32.mrf.mxu0
        %v3466 = vpop.f32.mrf.mxu0
        %v3467 = vadd.f32 %v3341, %v3466
        %v3468 = vpop.f32.mrf.mxu0
        %3469 = vdwg.mxu0
        %vm3470 = vcmp.ge.f32.partialorder %v3440, 0.0
        %vm3471 = vcmp.ge.f32.partialorder %v3443, 0.0
        %vm3472 = vcmp.ge.f32.partialorder %v3448, 0.0
        %vm3473 = vcmp.ge.f32.partialorder %v3451, 0.0
        %vm3474 = vcmp.ge.f32.partialorder %v3456, 0.0
        %vm3475 = vcmp.ge.f32.partialorder %v3459, 0.0
        %vm3476 = vcmp.ge.f32.partialorder %v3464, 0.0
        %vm3477 = vcmp.ge.f32.partialorder %v3467, 0.0
        %v3478 = vmul.f32 %v3440, 0.01
        %v3479 = vmul.f32 %v3443, 0.01
        %v3480 = vmul.f32 %v3448, 0.01
        %v3481 = vmul.f32 %v3451, 0.01
        %v3482 = vmul.f32 %v3456, 0.01
        %v3483 = vmul.f32 %v3459, 0.01
        %v3484 = vmul.f32 %v3464, 0.01
        %v3485 = vmul.f32 %v3467, 0.01
        %v3486 = vsel %vm3470, %v3440, %v3478
        %v3487 = vsel %vm3471, %v3443, %v3479
        %v3488 = vsel %vm3472, %v3448, %v3480
        %v3489 = vsel %vm3473, %v3451, %v3481
        %v3490 = vsel %vm3474, %v3456, %v3482
        %v3491 = vsel %vm3475, %v3459, %v3483
        %v3492 = vsel %vm3476, %v3464, %v3484
        %v3493 = vsel %vm3477, %v3467, %v3485
        %3502 = vrot.lane.b32.xlu0 %v2257, 120
        %v3503 = vpop.permute.xlu0 %3502
        %3504 = vrot.lane.b32.xlu0 %v2258, 120
        %v3505 = vpop.permute.xlu0 %3504
        %3506 = vrot.lane.b32.xlu0 %v2259, 120
        %v3507 = vpop.permute.xlu0 %3506
        %3508 = vrot.lane.b32.xlu0 %v2260, 120
        %v3509 = vpop.permute.xlu0 %3508
        %3510 = vrot.lane.b32.xlu0 %v2261, 120
        %v3511 = vpop.permute.xlu0 %3510
        %3512 = vrot.lane.b32.xlu0 %v2262, 120
        %v3513 = vpop.permute.xlu0 %3512
        %3514 = vrot.lane.b32.xlu0 %v2263, 120
        %v3515 = vpop.permute.xlu0 %3514
        %3516 = vrot.lane.b32.xlu0 %v2264, 120
        %v3517 = vpop.permute.xlu0 %3516
        %v3526 = vadd.f32 %v3486, %v3503
        %v3527 = vadd.f32 %v3487, %v3505
        %v3528 = vadd.f32 %v3488, %v3507
        %v3529 = vadd.f32 %v3489, %v3509
        %v3530 = vadd.f32 %v3490, %v3511
        %v3531 = vadd.f32 %v3491, %v3513
        %v3532 = vadd.f32 %v3492, %v3515
        %v3533 = vadd.f32 %v3493, %v3517
        %3534 = vxpose.xlu0.b32.start [1/16] %v3526, 128
        %3535 = vxpose.xlu0.b32.cont [2/16] %v3527, 128
        %3536 = vxpose.xlu0.b32.cont [3/16] %v3528, 128
        %3537 = vxpose.xlu0.b32.cont [4/16] %v3529, 128
        %3538 = vxpose.xlu0.b32.cont [5/16] %v3530, 128
        %3539 = vxpose.xlu0.b32.cont [6/16] %v3531, 128
        %3540 = vxpose.xlu0.b32.cont [7/16] %v3532, 128
        %3541 = vxpose.xlu0.b32.cont [8/16] %v3533, 128
        %3542 = vxpose.xlu0.b32.cont [9/16] 0.0, 128
        %3543 = vxpose.xlu0.b32.cont [10/16] 0.0, 128
        %3544 = vxpose.xlu0.b32.cont [11/16] 0.0, 128
        %3545 = vxpose.xlu0.b32.cont [12/16] 0.0, 128
        %3546 = vxpose.xlu0.b32.cont [13/16] 0.0, 128
        %3547 = vxpose.xlu0.b32.cont [14/16] 0.0, 128
        %3548 = vxpose.xlu0.b32.cont [15/16] 0.0, 128
        %3549 = vxpose.xlu0.b32.end [16/16] 0.0, 128
        %v3550 = vpop.trf.xlu0
        %v3551 = vpop.trf.xlu0
        %v3552 = vpop.trf.xlu0
        %v3553 = vpop.trf.xlu0
        %v3554 = vpop.trf.xlu0
        %v3555 = vpop.trf.xlu0
        %v3556 = vpop.trf.xlu0
        %v3557 = vpop.trf.xlu0
        %v3558 = vpop.trf.xlu0
        %v3559 = vpop.trf.xlu0
        %v3560 = vpop.trf.xlu0
        %v3561 = vpop.trf.xlu0
        %v3562 = vpop.trf.xlu0
        %v3563 = vpop.trf.xlu0
        %v3564 = vpop.trf.xlu0
        %v3565 = vpop.trf.xlu0
        %3566 = vst.msk [vmem:[%s298] sm:$0xff] %vm920, %v3550
        %s3567 = sand.u32 %s203, 1
        %s3568 = scalar_lea.sflag [#allocation7], %s3567
        %s3569 = sand.u32 %s203, 1
        %s3570 = smul.addr %s3569, 8
        %s3571 = scalar_lea.vmem [#allocation6], %s3570
        // Predicated region
        $region53: #{tpu_custom_call.1} parent=51 // pred_check
          %p3572 = pneg %p213
        $region54: #{tpu_custom_call.1} parent=51 // pred_check_branch
          %3574 = sbr.rel (%p3572) target = $region56
        $region55: #{tpu_custom_call.1} parent=51 // pred_region
          %s3576 = ssub.s32 128, 128
          %3577 = vsyncadd %s3568, %s3576
          %s3578 = smul.addr %s22, 128
          %s3579 = scalar_lea.hbm %s8, %s3578
          %s3581 = sshll.u32 %s3571, 4
          %s3582 = int_to_ptr.vmem [resolvable:$true] %s3581
          %3584 = dma.vmem_to_hbm [thread:$0]  %s3582, 128, %s3579, %s3568
        $region56: #{tpu_custom_call.1} parent=51 // pred_fallthru
          _
      $region52: #{tpu_custom_call.1} parent=5 // pred_fallthru
        _
      %p3585 = scmp.le.s32.totalorder 2, %s17
      // Predicated region
      $region57: #{tpu_custom_call.1} parent=5 // pred_check
        %p3586 = pneg %p3585
      $region58: #{tpu_custom_call.1} parent=5 // pred_check_branch
        %3588 = sbr.rel (%p3586) target = $region60
      $region59: #{tpu_custom_call.1} parent=5 // pred_region
        %s3589 = ssub.s32 %s17, 2
        // Predicated region
        $region61: #{tpu_custom_call.1} parent=59 // pred_check
          %p3590 = pneg %p219
        $region62: #{tpu_custom_call.1} parent=59 // pred_check_branch
          %3592 = sbr.rel (%p3590) target = $region64
        $region63: #{tpu_custom_call.1} parent=59 // pred_region
          %s3593 = sand.u32 %s204, 1
          %s3594 = scalar_lea.sflag [#allocation7], %s3593
          %s3595 = sand.u32 %s204, 1
          %s3596 = smul.addr %s3595, 8
          %s3597 = scalar_lea.vmem [#allocation6], %s3596
          %3598 = dma.done %s3594, 128
        $region64: #{tpu_custom_call.1} parent=59 // pred_fallthru
          _
      $region60: #{tpu_custom_call.1} parent=5 // pred_fallthru
        _
    $region6: #{tpu_custom_call.1} parent=1 // loop_footer
      %s21 = sadd.s32 1, %s17
    $region7: #{tpu_custom_call.1} parent=1 // loop_footer_branch
      %16 = sbr.rel target = $region3
    $region8: #{tpu_custom_call.1} parent=1 // loop_exit
      _
    %3599 = vsyncpa [#allocation7], 1
    %s3600 = scalar_lea.sflag [#allocation7], 1
    %3601 = vsyncpa %s3600, 1

</llo_original>
